<compile_context>
chip_gen: v7x
topology: tpu7x:2x2x1
jax: 0.10.0
libtpu: 0.0.40
codegen_flags: <defaults>
</compile_context>

<pallas_src>
import jax
import jax.numpy as jnp
from jax import lax
from jax.experimental import pallas as pl
from jax.experimental.pallas import tpu as pltpu

VMEM_SPEC = pl.BlockSpec(memory_space=pltpu.MemorySpace.VMEM)


def _tree_max(parts):
    """Elementwise max over a static list via a pairwise tree (list is tiny)."""
    parts = list(parts)
    while len(parts) > 1:
        nxt = [jnp.maximum(parts[j], parts[j + 1])
               for j in range(0, len(parts) - 1, 2)]
        if len(parts) % 2:
            nxt.append(parts[-1])
        parts = nxt
    return parts[0]


# ---------------------------------------------------------------------------
# One fused kernel: conv+BN+ReLU+maxpool  ->  biLSTM  ->  Linear
# ---------------------------------------------------------------------------
def fused_textcnn_lstm(emb2d, kp, *, num_utts, batch_pad, max_len):
    """emb2d: (L*N, E) f32 embeddings in (time, utt, batch)-major row order,
    N = num_utts * batch_pad (batch_pad a multiple of 8).  Returns (N, O)
    logits in (utt, batch)-major row order."""
    NL, E = emb2d.shape
    U, Bp, L = num_utts, batch_pad, max_len
    N = U * Bp
    assert NL == L * N and Bp % 8 == 0
    filter_sizes = kp["filter_sizes"]
    NF = kp["num_filters"]
    Ew, CW = kp["conv_wT"].shape                    # (E, sum(fs)*NF), BN folded in
    assert Ew == E
    H = kp["w_hh_f"].shape[0]
    G = 4 * H
    O = kp["b_fc"].shape[1]

    def kernel(emb_ref, wconv_ref, shift_ref, wih_ref, bih_ref,
               whhf_ref, whhb_ref, wfcf_ref, wfcb_ref, bfc_ref, o_ref):
        # --- conv (all filter sizes, all taps) as ONE 2-D matmul on the MXU ---
        y = jnp.dot(emb_ref[...], wconv_ref[...],
                    preferred_element_type=jnp.float32)       # (L*N, CW)
        # per-timestep row blocks; N is a multiple of 8 -> sublane-aligned slices
        yt = [y[t * N:(t + 1) * N, :] for t in range(L)]

        # --- folded BN + tap sums + ReLU + max-pool over time (VPU only) ---
        pooled = []
        base = 0
        for c, fs in enumerate(filter_sizes):
            T = L - fs + 1
            conv_t = []
            for t in range(T):
                acc = yt[t][:, base:base + NF]
                for i in range(1, fs):
                    acc = acc + yt[t + i][:, base + i * NF:base + (i + 1) * NF]
                conv_t.append(acc)
            m = _tree_max(conv_t)                              # (N, NF)
            # relu(max_t(x) + shift) == max_t(relu(x + shift))  (relu monotone)
            pooled.append(jnp.maximum(m + shift_ref[:, c * NF:(c + 1) * NF], 0.0))
            base += fs * NF
        cat = jnp.concatenate(pooled, axis=-1)                 # (N, D)

        # --- biLSTM: input projection for both directions hoisted, one matmul ---
        gx = jnp.dot(cat, wih_ref[...],
                     preferred_element_type=jnp.float32) + bih_ref[...]   # (N, 8H)
        whh_f = whhf_ref[...]
        whh_b = whhb_ref[...]

        def cell(gx_t, h, c, whh):
            g = gx_t + jnp.dot(h, whh, preferred_element_type=jnp.float32)
            i_g = jax.nn.sigmoid(g[:, 0:H])        # PyTorch gate order: i, f, g, o
            f_g = jax.nn.sigmoid(g[:, H:2 * H])
            g_g = jnp.tanh(g[:, 2 * H:3 * H])
            o_g = jax.nn.sigmoid(g[:, 3 * H:])
            c_n = f_g * c + i_g * g_g
            return o_g * jnp.tanh(c_n), c_n

        zeros = jnp.zeros((Bp, H), jnp.float32)
        h_f, c_f, h_b, c_b = zeros, zeros, zeros, zeros
        hs_f = [None] * U
        hs_b = [None] * U
        # U is small & static -> unrolled; fwd and bwd steps interleaved so the
        # MXU push of one direction overlaps the EUP sigmoid/tanh of the other.
        for s in range(U):
            tb = U - 1 - s
            h_f, c_f = cell(gx[s * Bp:(s + 1) * Bp, 0:G], h_f, c_f, whh_f)
            h_b, c_b = cell(gx[tb * Bp:(tb + 1) * Bp, G:2 * G], h_b, c_b, whh_b)
            hs_f[s] = h_f
            hs_b[tb] = h_b

        # --- whole-sequence Linear: two (N, H) @ (H, O) matmuls, single store ---
        hf_all = jnp.concatenate(hs_f, axis=0)                 # (N, H), (u,b) order
        hb_all = jnp.concatenate(hs_b, axis=0)
        o_ref[...] = (jnp.dot(hf_all, wfcf_ref[...], preferred_element_type=jnp.float32)
                      + jnp.dot(hb_all, wfcb_ref[...], preferred_element_type=jnp.float32)
                      + bfc_ref[...])

    # Everything fits comfortably in VMEM at these sizes, so no grid is needed.
    # TODO(synk): for real GloVe-sized inputs, tile N with a BlockSpec grid
    # ("parallel" N axis, tile sized for v7x's 64 MiB VMEM) and run the fwd/bwd
    # LSTM directions on the two v7x TensorCores.
    return pl.pallas_call(
        kernel,
        out_shape=jax.ShapeDtypeStruct((N, O), jnp.float32),
        in_specs=[VMEM_SPEC] * 10,
        out_specs=VMEM_SPEC,
    )(emb2d, kp["conv_wT"], kp["conv_shift"], kp["w_ih_all"], kp["b_all"],
      kp["w_hh_f"], kp["w_hh_b"], kp["w_fc_f"], kp["w_fc_b"], kp["b_fc"])


# ---------------------------------------------------------------------------
# Full forward (glue: embedding gather, batch padding, tiny reshapes)
# ---------------------------------------------------------------------------
def textcnn_lstm_forward(text, kp):
    """text: (B, U, L) int32 token ids -> (B, U, O) logits."""
    B, U, L = text.shape
    Bp = ((B + 7) // 8) * 8                  # pad batch to full 8-row sublanes
    if Bp != B:
        text = jnp.concatenate(
            [text, jnp.zeros((Bp - B, U, L), text.dtype)], axis=0)
    # time-major token order (L, U, Bp): the in-kernel conv becomes a single
    # aligned 2-D matmul, and each timestep's rows stay (utt, batch)-major so
    # every LSTM slice is a contiguous, sublane-aligned row block.
    tokens = jnp.transpose(text, (2, 1, 0)).reshape(L * U * Bp)
    emb2d = jnp.take(kp["embedding"], tokens, axis=0)          # (L*U*Bp, E) gather
    out = fused_textcnn_lstm(emb2d, kp, num_utts=U, batch_pad=Bp, max_len=L)
    out = out.reshape(U, Bp, -1)[:, :B, :]                     # drop batch padding
    return jnp.transpose(out, (1, 0, 2))                       # (B, U, O)


# ---------------------------------------------------------------------------
# Deterministic parameter construction (shapes follow the nn.Module __init__).
# Returns (kernel_params with folded/stacked weights, ref_params unfolded).
# ---------------------------------------------------------------------------
def init_params(key, vocab_size, E, NF, filter_sizes, H, O):
    eps = 1e-5
    n_conv = len(filter_sizes)
    keys = jax.random.split(key, 3 + n_conv)
    embedding = 0.1 * jax.random.normal(keys[0], (vocab_size, E), jnp.float32)

    ref_convs = []
    w_rows = []
    shift_cols = []
    for idx, fs in enumerate(filter_sizes):
        k = jax.random.split(keys[1 + idx], 6)
        w = 0.1 * jax.random.normal(k[0], (NF, 1, fs, E), jnp.float32)   # torch Conv2d
        b = 0.1 * jax.random.normal(k[1], (NF,), jnp.float32)
        gamma = 1.0 + 0.1 * jax.random.normal(k[2], (NF,), jnp.float32)
        beta = 0.1 * jax.random.normal(k[3], (NF,), jnp.float32)
        run_mean = 0.1 * jax.random.normal(k[4], (NF,), jnp.float32)
        run_var = jnp.abs(1.0 + 0.1 * jax.random.normal(k[5], (NF,), jnp.float32))
        scale = gamma / jnp.sqrt(run_var + eps)             # eval-mode BN affine
        shift = beta - run_mean * scale
        w_taps = jnp.transpose(w[:, 0], (1, 2, 0))          # (fs, E, NF)
        ref_convs.append(dict(w=w_taps, b=b.reshape(1, 1, NF),
                              scale=scale.reshape(1, 1, NF),
                              shift=shift.reshape(1, 1, NF)))
        # fold BN scale into the conv weights; conv bias + BN shift into one shift
        for i in range(fs):
            w_rows.append((w_taps[i] * scale[None, :]).T)   # (NF, E)
        shift_cols.append((shift + b * scale).reshape(1, NF))
    conv_w_all = jnp.concatenate(w_rows, axis=0)            # (sum(fs)*NF, E)
    conv_shift = jnp.concatenate(shift_cols, axis=1)        # (1, n_conv*NF)

    D = NF * n_conv
    k = jax.random.split(keys[1 + n_conv], 10)

    def lstm_dir(kk):
        w_ih = 0.1 * jax.random.normal(kk[0], (4 * H, D), jnp.float32)   # torch layout
        w_hh = 0.1 * jax.random.normal(kk[1], (4 * H, H), jnp.float32)
        b_ih = 0.1 * jax.random.normal(kk[2], (4 * H,), jnp.float32)
        b_hh = 0.1 * jax.random.normal(kk[3], (4 * H,), jnp.float32)
        return w_ih.T, w_hh.T, (b_ih + b_hh).reshape(1, 4 * H)

    w_ih_f, w_hh_f, b_f = lstm_dir(k[0:4])
    w_ih_b, w_hh_b, b_b = lstm_dir(k[4:8])
    w_fc = 0.1 * jax.random.normal(k[8], (O, 2 * H), jnp.float32)        # torch layout
    b_fc = 0.1 * jax.random.normal(k[9], (O,), jnp.float32)

    kernel_params = dict(
        embedding=embedding,
        filter_sizes=tuple(filter_sizes),
        num_filters=NF,
        conv_wT=conv_w_all.T,                                  # (E, sum(fs)*NF)
        conv_shift=conv_shift,
        w_ih_all=jnp.concatenate([w_ih_f, w_ih_b], axis=1),   # (D, 8H)
        b_all=jnp.concatenate([b_f, b_b], axis=1),             # (1, 8H)
        w_hh_f=w_hh_f, w_hh_b=w_hh_b,                           # (H, 4H)
        w_fc_f=w_fc[:, :H].T, w_fc_b=w_fc[:, H:].T,             # (H, O)
        b_fc=b_fc.reshape(1, O),
    )
    ref_params = dict(
        embedding=embedding, filter_sizes=tuple(filter_sizes), convs=ref_convs,
        lstm=dict(w_ih_f=w_ih_f, w_hh_f=w_hh_f, b_f=b_f,
                  w_ih_b=w_ih_b, w_hh_b=w_hh_b, b_b=b_b,
                  w_fc=w_fc.T, b_fc=b_fc.reshape(1, O)),
    )
    return kernel_params, ref_params


# ---------------------------------------------------------------------------
# Pure-JAX reference (unfolded math, no Pallas) used as a sanity check
# ---------------------------------------------------------------------------
def reference_forward(text, rp):
    B, U, L = text.shape
    N = B * U
    emb = jnp.take(rp["embedding"], text.reshape(N, L), axis=0)
    pooled = []
    for fs, cp in zip(rp["filter_sizes"], rp["convs"]):
        T = L - fs + 1
        y = sum(jnp.einsum("nte,ef->ntf", emb[:, i:i + T, :], cp["w"][i])
                for i in range(fs)) + cp["b"]
        y = jnp.maximum(y * cp["scale"] + cp["shift"], 0.0)
        pooled.append(jnp.max(y, axis=1))
    cat = jnp.concatenate(pooled, axis=-1).reshape(B, U, -1)

    lp = rp["lstm"]
    H = lp["w_hh_f"].shape[0]

    def run_dir(x, w_ih, w_hh, b, reverse):
        def step(carry, x_t):
            h, c = carry
            g = x_t @ w_ih + h @ w_hh + b[0]
            i = jax.nn.sigmoid(g[:, :H])
            f = jax.nn.sigmoid(g[:, H:2 * H])
            gg = jnp.tanh(g[:, 2 * H:3 * H])
            o = jax.nn.sigmoid(g[:, 3 * H:])
            c = f * c + i * gg
            h = o * jnp.tanh(c)
            return (h, c), h
        xs = jnp.transpose(x, (1, 0, 2))
        if reverse:
            xs = xs[::-1]
        _, hs = lax.scan(step, (jnp.zeros((B, H)), jnp.zeros((B, H))), xs)
        if reverse:
            hs = hs[::-1]
        return jnp.transpose(hs, (1, 0, 2))

    hf = run_dir(cat, lp["w_ih_f"], lp["w_hh_f"], lp["b_f"], False)
    hb = run_dir(cat, lp["w_ih_b"], lp["w_hh_b"], lp["b_b"], True)
    hcat = jnp.concatenate([hf, hb], axis=-1)
    return hcat @ lp["w_fc"] + lp["b_fc"][0]


if __name__ == "__main__":
    vocab_size, E, NF, H, O = 50, 16, 8, 16, 4
    filter_sizes = (2, 3, 4)
    B, U, L = 2, 5, 12                       # batch, max_utts, max_len

    key = jax.random.PRNGKey(0)
    pkey, tkey = jax.random.split(key)
    kernel_params, ref_params = init_params(pkey, vocab_size, E, NF,
                                            filter_sizes, H, O)
    text = jax.random.randint(tkey, (B, U, L), 0, vocab_size, dtype=jnp.int32)

    out = textcnn_lstm_forward(text, kernel_params)
    out = jax.block_until_ready(out)
    assert out.shape == (B, U, O)

    ref = reference_forward(text, ref_params)
    if not jnp.allclose(out, ref, atol=2e-3, rtol=2e-3):
        raise RuntimeError("Pallas kernel output does not match reference")

    print("KERNEL_OK")
</pallas_src>

<mosaic_0001>
module attributes {stable_mosaic.version = 11 : i64} {
  func.func @kernel(%arg0: memref<480x16xf32, #tpu.memory_space<vmem>>, %arg1: memref<16x72xf32, #tpu.memory_space<vmem>>, %arg2: memref<1x24xf32, #tpu.memory_space<vmem>>, %arg3: memref<24x128xf32, #tpu.memory_space<vmem>>, %arg4: memref<1x128xf32, #tpu.memory_space<vmem>>, %arg5: memref<16x64xf32, #tpu.memory_space<vmem>>, %arg6: memref<16x64xf32, #tpu.memory_space<vmem>>, %arg7: memref<16x4xf32, #tpu.memory_space<vmem>>, %arg8: memref<16x4xf32, #tpu.memory_space<vmem>>, %arg9: memref<1x4xf32, #tpu.memory_space<vmem>>, %arg10: memref<40x4xf32, #tpu.memory_space<vmem>>) attributes {dimension_semantics = [], scalar_prefetch = 0 : i64, scratch_operands = 0 : i64, tpu.core_type = #tpu.core_type<tc>} {
    %c0 = arith.constant 0 : index
    %c0_0 = arith.constant 0 : index
    %0 = vector.load %arg0[%c0, %c0_0] : memref<480x16xf32, #tpu.memory_space<vmem>>, vector<480x16xf32>
    %c0_1 = arith.constant 0 : index
    %c0_2 = arith.constant 0 : index
    %1 = vector.load %arg1[%c0_1, %c0_2] : memref<16x72xf32, #tpu.memory_space<vmem>>, vector<16x72xf32>
    %cst = arith.constant dense<0.000000e+00> : vector<480x72xf32>
    %2 = tpu.matmul %0, %1, %cst {dimension_numbers = #tpu.dot_dimension_numbers<[1], [0], [0], [1], [0, 0, 1, 1], [], []>} : vector<480x16xf32>, vector<16x72xf32>, vector<480x72xf32> -> vector<480x72xf32>
    %3 = vector.extract_strided_slice %2 {offsets = [0, 0], sizes = [40, 72], strides = [1, 1]} : vector<480x72xf32> to vector<40x72xf32>
    %4 = vector.extract_strided_slice %2 {offsets = [40, 0], sizes = [40, 72], strides = [1, 1]} : vector<480x72xf32> to vector<40x72xf32>
    %5 = vector.extract_strided_slice %2 {offsets = [80, 0], sizes = [40, 72], strides = [1, 1]} : vector<480x72xf32> to vector<40x72xf32>
    %6 = vector.extract_strided_slice %2 {offsets = [120, 0], sizes = [40, 72], strides = [1, 1]} : vector<480x72xf32> to vector<40x72xf32>
    %7 = vector.extract_strided_slice %2 {offsets = [160, 0], sizes = [40, 72], strides = [1, 1]} : vector<480x72xf32> to vector<40x72xf32>
    %8 = vector.extract_strided_slice %2 {offsets = [200, 0], sizes = [40, 72], strides = [1, 1]} : vector<480x72xf32> to vector<40x72xf32>
    %9 = vector.extract_strided_slice %2 {offsets = [240, 0], sizes = [40, 72], strides = [1, 1]} : vector<480x72xf32> to vector<40x72xf32>
    %10 = vector.extract_strided_slice %2 {offsets = [280, 0], sizes = [40, 72], strides = [1, 1]} : vector<480x72xf32> to vector<40x72xf32>
    %11 = vector.extract_strided_slice %2 {offsets = [320, 0], sizes = [40, 72], strides = [1, 1]} : vector<480x72xf32> to vector<40x72xf32>
    %12 = vector.extract_strided_slice %2 {offsets = [360, 0], sizes = [40, 72], strides = [1, 1]} : vector<480x72xf32> to vector<40x72xf32>
    %13 = vector.extract_strided_slice %2 {offsets = [400, 0], sizes = [40, 72], strides = [1, 1]} : vector<480x72xf32> to vector<40x72xf32>
    %14 = vector.extract_strided_slice %2 {offsets = [440, 0], sizes = [40, 72], strides = [1, 1]} : vector<480x72xf32> to vector<40x72xf32>
    %15 = vector.extract_strided_slice %3 {offsets = [0, 0], sizes = [40, 8], strides = [1, 1]} : vector<40x72xf32> to vector<40x8xf32>
    %16 = vector.extract_strided_slice %4 {offsets = [0, 8], sizes = [40, 8], strides = [1, 1]} : vector<40x72xf32> to vector<40x8xf32>
    %17 = arith.addf %15, %16 : vector<40x8xf32>
    %18 = vector.extract_strided_slice %4 {offsets = [0, 0], sizes = [40, 8], strides = [1, 1]} : vector<40x72xf32> to vector<40x8xf32>
    %19 = vector.extract_strided_slice %5 {offsets = [0, 8], sizes = [40, 8], strides = [1, 1]} : vector<40x72xf32> to vector<40x8xf32>
    %20 = arith.addf %18, %19 : vector<40x8xf32>
    %21 = vector.extract_strided_slice %5 {offsets = [0, 0], sizes = [40, 8], strides = [1, 1]} : vector<40x72xf32> to vector<40x8xf32>
    %22 = vector.extract_strided_slice %6 {offsets = [0, 8], sizes = [40, 8], strides = [1, 1]} : vector<40x72xf32> to vector<40x8xf32>
    %23 = arith.addf %21, %22 : vector<40x8xf32>
    %24 = vector.extract_strided_slice %6 {offsets = [0, 0], sizes = [40, 8], strides = [1, 1]} : vector<40x72xf32> to vector<40x8xf32>
    %25 = vector.extract_strided_slice %7 {offsets = [0, 8], sizes = [40, 8], strides = [1, 1]} : vector<40x72xf32> to vector<40x8xf32>
    %26 = arith.addf %24, %25 : vector<40x8xf32>
    %27 = vector.extract_strided_slice %7 {offsets = [0, 0], sizes = [40, 8], strides = [1, 1]} : vector<40x72xf32> to vector<40x8xf32>
    %28 = vector.extract_strided_slice %8 {offsets = [0, 8], sizes = [40, 8], strides = [1, 1]} : vector<40x72xf32> to vector<40x8xf32>
    %29 = arith.addf %27, %28 : vector<40x8xf32>
    %30 = vector.extract_strided_slice %8 {offsets = [0, 0], sizes = [40, 8], strides = [1, 1]} : vector<40x72xf32> to vector<40x8xf32>
    %31 = vector.extract_strided_slice %9 {offsets = [0, 8], sizes = [40, 8], strides = [1, 1]} : vector<40x72xf32> to vector<40x8xf32>
    %32 = arith.addf %30, %31 : vector<40x8xf32>
    %33 = vector.extract_strided_slice %9 {offsets = [0, 0], sizes = [40, 8], strides = [1, 1]} : vector<40x72xf32> to vector<40x8xf32>
    %34 = vector.extract_strided_slice %10 {offsets = [0, 8], sizes = [40, 8], strides = [1, 1]} : vector<40x72xf32> to vector<40x8xf32>
    %35 = arith.addf %33, %34 : vector<40x8xf32>
    %36 = vector.extract_strided_slice %10 {offsets = [0, 0], sizes = [40, 8], strides = [1, 1]} : vector<40x72xf32> to vector<40x8xf32>
    %37 = vector.extract_strided_slice %11 {offsets = [0, 8], sizes = [40, 8], strides = [1, 1]} : vector<40x72xf32> to vector<40x8xf32>
    %38 = arith.addf %36, %37 : vector<40x8xf32>
    %39 = vector.extract_strided_slice %11 {offsets = [0, 0], sizes = [40, 8], strides = [1, 1]} : vector<40x72xf32> to vector<40x8xf32>
    %40 = vector.extract_strided_slice %12 {offsets = [0, 8], sizes = [40, 8], strides = [1, 1]} : vector<40x72xf32> to vector<40x8xf32>
    %41 = arith.addf %39, %40 : vector<40x8xf32>
    %42 = vector.extract_strided_slice %12 {offsets = [0, 0], sizes = [40, 8], strides = [1, 1]} : vector<40x72xf32> to vector<40x8xf32>
    %43 = vector.extract_strided_slice %13 {offsets = [0, 8], sizes = [40, 8], strides = [1, 1]} : vector<40x72xf32> to vector<40x8xf32>
    %44 = arith.addf %42, %43 : vector<40x8xf32>
    %45 = vector.extract_strided_slice %13 {offsets = [0, 0], sizes = [40, 8], strides = [1, 1]} : vector<40x72xf32> to vector<40x8xf32>
    %46 = vector.extract_strided_slice %14 {offsets = [0, 8], sizes = [40, 8], strides = [1, 1]} : vector<40x72xf32> to vector<40x8xf32>
    %47 = arith.addf %45, %46 : vector<40x8xf32>
    %48 = arith.maximumf %17, %20 : vector<40x8xf32>
    %49 = arith.maximumf %23, %26 : vector<40x8xf32>
    %50 = arith.maximumf %29, %32 : vector<40x8xf32>
    %51 = arith.maximumf %35, %38 : vector<40x8xf32>
    %52 = arith.maximumf %41, %44 : vector<40x8xf32>
    %53 = arith.maximumf %48, %49 : vector<40x8xf32>
    %54 = arith.maximumf %50, %51 : vector<40x8xf32>
    %55 = arith.maximumf %52, %47 : vector<40x8xf32>
    %56 = arith.maximumf %53, %54 : vector<40x8xf32>
    %57 = arith.maximumf %56, %55 : vector<40x8xf32>
    %c0_3 = arith.constant 0 : index
    %c0_4 = arith.constant 0 : index
    %58 = vector.load %arg2[%c0_3, %c0_4] : memref<1x24xf32, #tpu.memory_space<vmem>>, vector<1x8xf32>
    %59 = vector.broadcast %58 : vector<1x8xf32> to vector<40x8xf32>
    %60 = arith.addf %57, %59 : vector<40x8xf32>
    %cst_5 = arith.constant 0.000000e+00 : f32
    %61 = vector.broadcast %cst_5 : f32 to vector<40x8xf32>
    %62 = arith.maximumf %60, %61 : vector<40x8xf32>
    %63 = vector.extract_strided_slice %3 {offsets = [0, 16], sizes = [40, 8], strides = [1, 1]} : vector<40x72xf32> to vector<40x8xf32>
    %64 = vector.extract_strided_slice %4 {offsets = [0, 24], sizes = [40, 8], strides = [1, 1]} : vector<40x72xf32> to vector<40x8xf32>
    %65 = arith.addf %63, %64 : vector<40x8xf32>
    %66 = vector.extract_strided_slice %5 {offsets = [0, 32], sizes = [40, 8], strides = [1, 1]} : vector<40x72xf32> to vector<40x8xf32>
    %67 = arith.addf %65, %66 : vector<40x8xf32>
    %68 = vector.extract_strided_slice %4 {offsets = [0, 16], sizes = [40, 8], strides = [1, 1]} : vector<40x72xf32> to vector<40x8xf32>
    %69 = vector.extract_strided_slice %5 {offsets = [0, 24], sizes = [40, 8], strides = [1, 1]} : vector<40x72xf32> to vector<40x8xf32>
    %70 = arith.addf %68, %69 : vector<40x8xf32>
    %71 = vector.extract_strided_slice %6 {offsets = [0, 32], sizes = [40, 8], strides = [1, 1]} : vector<40x72xf32> to vector<40x8xf32>
    %72 = arith.addf %70, %71 : vector<40x8xf32>
    %73 = vector.extract_strided_slice %5 {offsets = [0, 16], sizes = [40, 8], strides = [1, 1]} : vector<40x72xf32> to vector<40x8xf32>
    %74 = vector.extract_strided_slice %6 {offsets = [0, 24], sizes = [40, 8], strides = [1, 1]} : vector<40x72xf32> to vector<40x8xf32>
    %75 = arith.addf %73, %74 : vector<40x8xf32>
    %76 = vector.extract_strided_slice %7 {offsets = [0, 32], sizes = [40, 8], strides = [1, 1]} : vector<40x72xf32> to vector<40x8xf32>
    %77 = arith.addf %75, %76 : vector<40x8xf32>
    %78 = vector.extract_strided_slice %6 {offsets = [0, 16], sizes = [40, 8], strides = [1, 1]} : vector<40x72xf32> to vector<40x8xf32>
    %79 = vector.extract_strided_slice %7 {offsets = [0, 24], sizes = [40, 8], strides = [1, 1]} : vector<40x72xf32> to vector<40x8xf32>
    %80 = arith.addf %78, %79 : vector<40x8xf32>
    %81 = vector.extract_strided_slice %8 {offsets = [0, 32], sizes = [40, 8], strides = [1, 1]} : vector<40x72xf32> to vector<40x8xf32>
    %82 = arith.addf %80, %81 : vector<40x8xf32>
    %83 = vector.extract_strided_slice %7 {offsets = [0, 16], sizes = [40, 8], strides = [1, 1]} : vector<40x72xf32> to vector<40x8xf32>
    %84 = vector.extract_strided_slice %8 {offsets = [0, 24], sizes = [40, 8], strides = [1, 1]} : vector<40x72xf32> to vector<40x8xf32>
    %85 = arith.addf %83, %84 : vector<40x8xf32>
    %86 = vector.extract_strided_slice %9 {offsets = [0, 32], sizes = [40, 8], strides = [1, 1]} : vector<40x72xf32> to vector<40x8xf32>
    %87 = arith.addf %85, %86 : vector<40x8xf32>
    %88 = vector.extract_strided_slice %8 {offsets = [0, 16], sizes = [40, 8], strides = [1, 1]} : vector<40x72xf32> to vector<40x8xf32>
    %89 = vector.extract_strided_slice %9 {offsets = [0, 24], sizes = [40, 8], strides = [1, 1]} : vector<40x72xf32> to vector<40x8xf32>
    %90 = arith.addf %88, %89 : vector<40x8xf32>
    %91 = vector.extract_strided_slice %10 {offsets = [0, 32], sizes = [40, 8], strides = [1, 1]} : vector<40x72xf32> to vector<40x8xf32>
    %92 = arith.addf %90, %91 : vector<40x8xf32>
    %93 = vector.extract_strided_slice %9 {offsets = [0, 16], sizes = [40, 8], strides = [1, 1]} : vector<40x72xf32> to vector<40x8xf32>
    %94 = vector.extract_strided_slice %10 {offsets = [0, 24], sizes = [40, 8], strides = [1, 1]} : vector<40x72xf32> to vector<40x8xf32>
    %95 = arith.addf %93, %94 : vector<40x8xf32>
    %96 = vector.extract_strided_slice %11 {offsets = [0, 32], sizes = [40, 8], strides = [1, 1]} : vector<40x72xf32> to vector<40x8xf32>
    %97 = arith.addf %95, %96 : vector<40x8xf32>
    %98 = vector.extract_strided_slice %10 {offsets = [0, 16], sizes = [40, 8], strides = [1, 1]} : vector<40x72xf32> to vector<40x8xf32>
    %99 = vector.extract_strided_slice %11 {offsets = [0, 24], sizes = [40, 8], strides = [1, 1]} : vector<40x72xf32> to vector<40x8xf32>
    %100 = arith.addf %98, %99 : vector<40x8xf32>
    %101 = vector.extract_strided_slice %12 {offsets = [0, 32], sizes = [40, 8], strides = [1, 1]} : vector<40x72xf32> to vector<40x8xf32>
    %102 = arith.addf %100, %101 : vector<40x8xf32>
    %103 = vector.extract_strided_slice %11 {offsets = [0, 16], sizes = [40, 8], strides = [1, 1]} : vector<40x72xf32> to vector<40x8xf32>
    %104 = vector.extract_strided_slice %12 {offsets = [0, 24], sizes = [40, 8], strides = [1, 1]} : vector<40x72xf32> to vector<40x8xf32>
    %105 = arith.addf %103, %104 : vector<40x8xf32>
    %106 = vector.extract_strided_slice %13 {offsets = [0, 32], sizes = [40, 8], strides = [1, 1]} : vector<40x72xf32> to vector<40x8xf32>
    %107 = arith.addf %105, %106 : vector<40x8xf32>
    %108 = vector.extract_strided_slice %12 {offsets = [0, 16], sizes = [40, 8], strides = [1, 1]} : vector<40x72xf32> to vector<40x8xf32>
    %109 = vector.extract_strided_slice %13 {offsets = [0, 24], sizes = [40, 8], strides = [1, 1]} : vector<40x72xf32> to vector<40x8xf32>
    %110 = arith.addf %108, %109 : vector<40x8xf32>
    %111 = vector.extract_strided_slice %14 {offsets = [0, 32], sizes = [40, 8], strides = [1, 1]} : vector<40x72xf32> to vector<40x8xf32>
    %112 = arith.addf %110, %111 : vector<40x8xf32>
    %113 = arith.maximumf %67, %72 : vector<40x8xf32>
    %114 = arith.maximumf %77, %82 : vector<40x8xf32>
    %115 = arith.maximumf %87, %92 : vector<40x8xf32>
    %116 = arith.maximumf %97, %102 : vector<40x8xf32>
    %117 = arith.maximumf %107, %112 : vector<40x8xf32>
    %118 = arith.maximumf %113, %114 : vector<40x8xf32>
    %119 = arith.maximumf %115, %116 : vector<40x8xf32>
    %120 = arith.maximumf %118, %119 : vector<40x8xf32>
    %121 = arith.maximumf %120, %117 : vector<40x8xf32>
    %c0_6 = arith.constant 0 : index
    %c8 = arith.constant 8 : index
    %122 = vector.load %arg2[%c0_6, %c8] : memref<1x24xf32, #tpu.memory_space<vmem>>, vector<1x8xf32>
    %123 = vector.broadcast %122 : vector<1x8xf32> to vector<40x8xf32>
    %124 = arith.addf %121, %123 : vector<40x8xf32>
    %cst_7 = arith.constant 0.000000e+00 : f32
    %125 = vector.broadcast %cst_7 : f32 to vector<40x8xf32>
    %126 = arith.maximumf %124, %125 : vector<40x8xf32>
    %127 = vector.extract_strided_slice %3 {offsets = [0, 40], sizes = [40, 8], strides = [1, 1]} : vector<40x72xf32> to vector<40x8xf32>
    %128 = vector.extract_strided_slice %4 {offsets = [0, 48], sizes = [40, 8], strides = [1, 1]} : vector<40x72xf32> to vector<40x8xf32>
    %129 = arith.addf %127, %128 : vector<40x8xf32>
    %130 = vector.extract_strided_slice %5 {offsets = [0, 56], sizes = [40, 8], strides = [1, 1]} : vector<40x72xf32> to vector<40x8xf32>
    %131 = arith.addf %129, %130 : vector<40x8xf32>
    %132 = vector.extract_strided_slice %6 {offsets = [0, 64], sizes = [40, 8], strides = [1, 1]} : vector<40x72xf32> to vector<40x8xf32>
    %133 = arith.addf %131, %132 : vector<40x8xf32>
    %134 = vector.extract_strided_slice %4 {offsets = [0, 40], sizes = [40, 8], strides = [1, 1]} : vector<40x72xf32> to vector<40x8xf32>
    %135 = vector.extract_strided_slice %5 {offsets = [0, 48], sizes = [40, 8], strides = [1, 1]} : vector<40x72xf32> to vector<40x8xf32>
    %136 = arith.addf %134, %135 : vector<40x8xf32>
    %137 = vector.extract_strided_slice %6 {offsets = [0, 56], sizes = [40, 8], strides = [1, 1]} : vector<40x72xf32> to vector<40x8xf32>
    %138 = arith.addf %136, %137 : vector<40x8xf32>
    %139 = vector.extract_strided_slice %7 {offsets = [0, 64], sizes = [40, 8], strides = [1, 1]} : vector<40x72xf32> to vector<40x8xf32>
    %140 = arith.addf %138, %139 : vector<40x8xf32>
    %141 = vector.extract_strided_slice %5 {offsets = [0, 40], sizes = [40, 8], strides = [1, 1]} : vector<40x72xf32> to vector<40x8xf32>
    %142 = vector.extract_strided_slice %6 {offsets = [0, 48], sizes = [40, 8], strides = [1, 1]} : vector<40x72xf32> to vector<40x8xf32>
    %143 = arith.addf %141, %142 : vector<40x8xf32>
    %144 = vector.extract_strided_slice %7 {offsets = [0, 56], sizes = [40, 8], strides = [1, 1]} : vector<40x72xf32> to vector<40x8xf32>
    %145 = arith.addf %143, %144 : vector<40x8xf32>
    %146 = vector.extract_strided_slice %8 {offsets = [0, 64], sizes = [40, 8], strides = [1, 1]} : vector<40x72xf32> to vector<40x8xf32>
    %147 = arith.addf %145, %146 : vector<40x8xf32>
    %148 = vector.extract_strided_slice %6 {offsets = [0, 40], sizes = [40, 8], strides = [1, 1]} : vector<40x72xf32> to vector<40x8xf32>
    %149 = vector.extract_strided_slice %7 {offsets = [0, 48], sizes = [40, 8], strides = [1, 1]} : vector<40x72xf32> to vector<40x8xf32>
    %150 = arith.addf %148, %149 : vector<40x8xf32>
    %151 = vector.extract_strided_slice %8 {offsets = [0, 56], sizes = [40, 8], strides = [1, 1]} : vector<40x72xf32> to vector<40x8xf32>
    %152 = arith.addf %150, %151 : vector<40x8xf32>
    %153 = vector.extract_strided_slice %9 {offsets = [0, 64], sizes = [40, 8], strides = [1, 1]} : vector<40x72xf32> to vector<40x8xf32>
    %154 = arith.addf %152, %153 : vector<40x8xf32>
    %155 = vector.extract_strided_slice %7 {offsets = [0, 40], sizes = [40, 8], strides = [1, 1]} : vector<40x72xf32> to vector<40x8xf32>
    %156 = vector.extract_strided_slice %8 {offsets = [0, 48], sizes = [40, 8], strides = [1, 1]} : vector<40x72xf32> to vector<40x8xf32>
    %157 = arith.addf %155, %156 : vector<40x8xf32>
    %158 = vector.extract_strided_slice %9 {offsets = [0, 56], sizes = [40, 8], strides = [1, 1]} : vector<40x72xf32> to vector<40x8xf32>
    %159 = arith.addf %157, %158 : vector<40x8xf32>
    %160 = vector.extract_strided_slice %10 {offsets = [0, 64], sizes = [40, 8], strides = [1, 1]} : vector<40x72xf32> to vector<40x8xf32>
    %161 = arith.addf %159, %160 : vector<40x8xf32>
    %162 = vector.extract_strided_slice %8 {offsets = [0, 40], sizes = [40, 8], strides = [1, 1]} : vector<40x72xf32> to vector<40x8xf32>
    %163 = vector.extract_strided_slice %9 {offsets = [0, 48], sizes = [40, 8], strides = [1, 1]} : vector<40x72xf32> to vector<40x8xf32>
    %164 = arith.addf %162, %163 : vector<40x8xf32>
    %165 = vector.extract_strided_slice %10 {offsets = [0, 56], sizes = [40, 8], strides = [1, 1]} : vector<40x72xf32> to vector<40x8xf32>
    %166 = arith.addf %164, %165 : vector<40x8xf32>
    %167 = vector.extract_strided_slice %11 {offsets = [0, 64], sizes = [40, 8], strides = [1, 1]} : vector<40x72xf32> to vector<40x8xf32>
    %168 = arith.addf %166, %167 : vector<40x8xf32>
    %169 = vector.extract_strided_slice %9 {offsets = [0, 40], sizes = [40, 8], strides = [1, 1]} : vector<40x72xf32> to vector<40x8xf32>
    %170 = vector.extract_strided_slice %10 {offsets = [0, 48], sizes = [40, 8], strides = [1, 1]} : vector<40x72xf32> to vector<40x8xf32>
    %171 = arith.addf %169, %170 : vector<40x8xf32>
    %172 = vector.extract_strided_slice %11 {offsets = [0, 56], sizes = [40, 8], strides = [1, 1]} : vector<40x72xf32> to vector<40x8xf32>
    %173 = arith.addf %171, %172 : vector<40x8xf32>
    %174 = vector.extract_strided_slice %12 {offsets = [0, 64], sizes = [40, 8], strides = [1, 1]} : vector<40x72xf32> to vector<40x8xf32>
    %175 = arith.addf %173, %174 : vector<40x8xf32>
    %176 = vector.extract_strided_slice %10 {offsets = [0, 40], sizes = [40, 8], strides = [1, 1]} : vector<40x72xf32> to vector<40x8xf32>
    %177 = vector.extract_strided_slice %11 {offsets = [0, 48], sizes = [40, 8], strides = [1, 1]} : vector<40x72xf32> to vector<40x8xf32>
    %178 = arith.addf %176, %177 : vector<40x8xf32>
    %179 = vector.extract_strided_slice %12 {offsets = [0, 56], sizes = [40, 8], strides = [1, 1]} : vector<40x72xf32> to vector<40x8xf32>
    %180 = arith.addf %178, %179 : vector<40x8xf32>
    %181 = vector.extract_strided_slice %13 {offsets = [0, 64], sizes = [40, 8], strides = [1, 1]} : vector<40x72xf32> to vector<40x8xf32>
    %182 = arith.addf %180, %181 : vector<40x8xf32>
    %183 = vector.extract_strided_slice %11 {offsets = [0, 40], sizes = [40, 8], strides = [1, 1]} : vector<40x72xf32> to vector<40x8xf32>
    %184 = vector.extract_strided_slice %12 {offsets = [0, 48], sizes = [40, 8], strides = [1, 1]} : vector<40x72xf32> to vector<40x8xf32>
    %185 = arith.addf %183, %184 : vector<40x8xf32>
    %186 = vector.extract_strided_slice %13 {offsets = [0, 56], sizes = [40, 8], strides = [1, 1]} : vector<40x72xf32> to vector<40x8xf32>
    %187 = arith.addf %185, %186 : vector<40x8xf32>
    %188 = vector.extract_strided_slice %14 {offsets = [0, 64], sizes = [40, 8], strides = [1, 1]} : vector<40x72xf32> to vector<40x8xf32>
    %189 = arith.addf %187, %188 : vector<40x8xf32>
    %190 = arith.maximumf %133, %140 : vector<40x8xf32>
    %191 = arith.maximumf %147, %154 : vector<40x8xf32>
    %192 = arith.maximumf %161, %168 : vector<40x8xf32>
    %193 = arith.maximumf %175, %182 : vector<40x8xf32>
    %194 = arith.maximumf %190, %191 : vector<40x8xf32>
    %195 = arith.maximumf %192, %193 : vector<40x8xf32>
    %196 = arith.maximumf %194, %195 : vector<40x8xf32>
    %197 = arith.maximumf %196, %189 : vector<40x8xf32>
    %c0_8 = arith.constant 0 : index
    %c16 = arith.constant 16 : index
    %198 = vector.load %arg2[%c0_8, %c16] : memref<1x24xf32, #tpu.memory_space<vmem>>, vector<1x8xf32>
    %199 = vector.broadcast %198 : vector<1x8xf32> to vector<40x8xf32>
    %200 = arith.addf %197, %199 : vector<40x8xf32>
    %cst_9 = arith.constant 0.000000e+00 : f32
    %201 = vector.broadcast %cst_9 : f32 to vector<40x8xf32>
    %202 = arith.maximumf %200, %201 : vector<40x8xf32>
    %203 = tpu.concatenate %62, %126, %202 in 1 : vector<40x8xf32>, vector<40x8xf32>, vector<40x8xf32> -> vector<40x24xf32>
    %c0_10 = arith.constant 0 : index
    %c0_11 = arith.constant 0 : index
    %204 = vector.load %arg3[%c0_10, %c0_11] : memref<24x128xf32, #tpu.memory_space<vmem>>, vector<24x128xf32>
    %cst_12 = arith.constant dense<0.000000e+00> : vector<40x128xf32>
    %205 = tpu.matmul %203, %204, %cst_12 {dimension_numbers = #tpu.dot_dimension_numbers<[1], [0], [0], [1], [0, 0, 1, 1], [], []>} : vector<40x24xf32>, vector<24x128xf32>, vector<40x128xf32> -> vector<40x128xf32>
    %c0_13 = arith.constant 0 : index
    %c0_14 = arith.constant 0 : index
    %206 = vector.load %arg4[%c0_13, %c0_14] : memref<1x128xf32, #tpu.memory_space<vmem>>, vector<1x128xf32>
    %207 = vector.broadcast %206 : vector<1x128xf32> to vector<40x128xf32>
    %208 = arith.addf %205, %207 : vector<40x128xf32>
    %c0_15 = arith.constant 0 : index
    %c0_16 = arith.constant 0 : index
    %209 = vector.load %arg5[%c0_15, %c0_16] : memref<16x64xf32, #tpu.memory_space<vmem>>, vector<16x64xf32>
    %c0_17 = arith.constant 0 : index
    %c0_18 = arith.constant 0 : index
    %210 = vector.load %arg6[%c0_17, %c0_18] : memref<16x64xf32, #tpu.memory_space<vmem>>, vector<16x64xf32>
    %cst_19 = arith.constant 0.000000e+00 : f32
    %211 = vector.broadcast %cst_19 : f32 to vector<8x16xf32>
    %212 = vector.extract_strided_slice %208 {offsets = [0, 0], sizes = [8, 64], strides = [1, 1]} : vector<40x128xf32> to vector<8x64xf32>
    %cst_20 = arith.constant dense<0.000000e+00> : vector<8x64xf32>
    %213 = tpu.matmul %211, %209, %cst_20 {dimension_numbers = #tpu.dot_dimension_numbers<[1], [0], [0], [1], [0, 0, 1, 1], [], []>} : vector<8x16xf32>, vector<16x64xf32>, vector<8x64xf32> -> vector<8x64xf32>
    %214 = arith.addf %212, %213 : vector<8x64xf32>
    %215 = vector.extract_strided_slice %214 {offsets = [0, 0], sizes = [8, 16], strides = [1, 1]} : vector<8x64xf32> to vector<8x16xf32>
    %216 = arith.negf %215 : vector<8x16xf32>
    %217 = math.exp %216 : vector<8x16xf32>
    %cst_21 = arith.constant 1.000000e+00 : f32
    %218 = vector.broadcast %cst_21 : f32 to vector<8x16xf32>
    %219 = arith.addf %218, %217 : vector<8x16xf32>
    %220 = arith.divf %218, %219 : vector<8x16xf32>
    %221 = vector.extract_strided_slice %214 {offsets = [0, 16], sizes = [8, 16], strides = [1, 1]} : vector<8x64xf32> to vector<8x16xf32>
    %222 = arith.negf %221 : vector<8x16xf32>
    %223 = math.exp %222 : vector<8x16xf32>
    %cst_22 = arith.constant 1.000000e+00 : f32
    %224 = vector.broadcast %cst_22 : f32 to vector<8x16xf32>
    %225 = arith.addf %224, %223 : vector<8x16xf32>
    %226 = arith.divf %224, %225 : vector<8x16xf32>
    %227 = vector.extract_strided_slice %214 {offsets = [0, 32], sizes = [8, 16], strides = [1, 1]} : vector<8x64xf32> to vector<8x16xf32>
    %228 = math.tanh %227 : vector<8x16xf32>
    %229 = vector.extract_strided_slice %214 {offsets = [0, 48], sizes = [8, 16], strides = [1, 1]} : vector<8x64xf32> to vector<8x16xf32>
    %230 = arith.negf %229 : vector<8x16xf32>
    %231 = math.exp %230 : vector<8x16xf32>
    %cst_23 = arith.constant 1.000000e+00 : f32
    %232 = vector.broadcast %cst_23 : f32 to vector<8x16xf32>
    %233 = arith.addf %232, %231 : vector<8x16xf32>
    %234 = arith.divf %232, %233 : vector<8x16xf32>
    %235 = arith.mulf %226, %211 : vector<8x16xf32>
    %236 = arith.mulf %220, %228 : vector<8x16xf32>
    %237 = arith.addf %235, %236 : vector<8x16xf32>
    %238 = math.tanh %237 : vector<8x16xf32>
    %239 = arith.mulf %234, %238 : vector<8x16xf32>
    %240 = vector.extract_strided_slice %208 {offsets = [32, 64], sizes = [8, 64], strides = [1, 1]} : vector<40x128xf32> to vector<8x64xf32>
    %cst_24 = arith.constant dense<0.000000e+00> : vector<8x64xf32>
    %241 = tpu.matmul %211, %210, %cst_24 {dimension_numbers = #tpu.dot_dimension_numbers<[1], [0], [0], [1], [0, 0, 1, 1], [], []>} : vector<8x16xf32>, vector<16x64xf32>, vector<8x64xf32> -> vector<8x64xf32>
    %242 = arith.addf %240, %241 : vector<8x64xf32>
    %243 = vector.extract_strided_slice %242 {offsets = [0, 0], sizes = [8, 16], strides = [1, 1]} : vector<8x64xf32> to vector<8x16xf32>
    %244 = arith.negf %243 : vector<8x16xf32>
    %245 = math.exp %244 : vector<8x16xf32>
    %cst_25 = arith.constant 1.000000e+00 : f32
    %246 = vector.broadcast %cst_25 : f32 to vector<8x16xf32>
    %247 = arith.addf %246, %245 : vector<8x16xf32>
    %248 = arith.divf %246, %247 : vector<8x16xf32>
    %249 = vector.extract_strided_slice %242 {offsets = [0, 16], sizes = [8, 16], strides = [1, 1]} : vector<8x64xf32> to vector<8x16xf32>
    %250 = arith.negf %249 : vector<8x16xf32>
    %251 = math.exp %250 : vector<8x16xf32>
    %cst_26 = arith.constant 1.000000e+00 : f32
    %252 = vector.broadcast %cst_26 : f32 to vector<8x16xf32>
    %253 = arith.addf %252, %251 : vector<8x16xf32>
    %254 = arith.divf %252, %253 : vector<8x16xf32>
    %255 = vector.extract_strided_slice %242 {offsets = [0, 32], sizes = [8, 16], strides = [1, 1]} : vector<8x64xf32> to vector<8x16xf32>
    %256 = math.tanh %255 : vector<8x16xf32>
    %257 = vector.extract_strided_slice %242 {offsets = [0, 48], sizes = [8, 16], strides = [1, 1]} : vector<8x64xf32> to vector<8x16xf32>
    %258 = arith.negf %257 : vector<8x16xf32>
    %259 = math.exp %258 : vector<8x16xf32>
    %cst_27 = arith.constant 1.000000e+00 : f32
    %260 = vector.broadcast %cst_27 : f32 to vector<8x16xf32>
    %261 = arith.addf %260, %259 : vector<8x16xf32>
    %262 = arith.divf %260, %261 : vector<8x16xf32>
    %263 = arith.mulf %254, %211 : vector<8x16xf32>
    %264 = arith.mulf %248, %256 : vector<8x16xf32>
    %265 = arith.addf %263, %264 : vector<8x16xf32>
    %266 = math.tanh %265 : vector<8x16xf32>
    %267 = arith.mulf %262, %266 : vector<8x16xf32>
    %268 = vector.extract_strided_slice %208 {offsets = [8, 0], sizes = [8, 64], strides = [1, 1]} : vector<40x128xf32> to vector<8x64xf32>
    %cst_28 = arith.constant dense<0.000000e+00> : vector<8x64xf32>
    %269 = tpu.matmul %239, %209, %cst_28 {dimension_numbers = #tpu.dot_dimension_numbers<[1], [0], [0], [1], [0, 0, 1, 1], [], []>} : vector<8x16xf32>, vector<16x64xf32>, vector<8x64xf32> -> vector<8x64xf32>
    %270 = arith.addf %268, %269 : vector<8x64xf32>
    %271 = vector.extract_strided_slice %270 {offsets = [0, 0], sizes = [8, 16], strides = [1, 1]} : vector<8x64xf32> to vector<8x16xf32>
    %272 = arith.negf %271 : vector<8x16xf32>
    %273 = math.exp %272 : vector<8x16xf32>
    %cst_29 = arith.constant 1.000000e+00 : f32
    %274 = vector.broadcast %cst_29 : f32 to vector<8x16xf32>
    %275 = arith.addf %274, %273 : vector<8x16xf32>
    %276 = arith.divf %274, %275 : vector<8x16xf32>
    %277 = vector.extract_strided_slice %270 {offsets = [0, 16], sizes = [8, 16], strides = [1, 1]} : vector<8x64xf32> to vector<8x16xf32>
    %278 = arith.negf %277 : vector<8x16xf32>
    %279 = math.exp %278 : vector<8x16xf32>
    %cst_30 = arith.constant 1.000000e+00 : f32
    %280 = vector.broadcast %cst_30 : f32 to vector<8x16xf32>
    %281 = arith.addf %280, %279 : vector<8x16xf32>
    %282 = arith.divf %280, %281 : vector<8x16xf32>
    %283 = vector.extract_strided_slice %270 {offsets = [0, 32], sizes = [8, 16], strides = [1, 1]} : vector<8x64xf32> to vector<8x16xf32>
    %284 = math.tanh %283 : vector<8x16xf32>
    %285 = vector.extract_strided_slice %270 {offsets = [0, 48], sizes = [8, 16], strides = [1, 1]} : vector<8x64xf32> to vector<8x16xf32>
    %286 = arith.negf %285 : vector<8x16xf32>
    %287 = math.exp %286 : vector<8x16xf32>
    %cst_31 = arith.constant 1.000000e+00 : f32
    %288 = vector.broadcast %cst_31 : f32 to vector<8x16xf32>
    %289 = arith.addf %288, %287 : vector<8x16xf32>
    %290 = arith.divf %288, %289 : vector<8x16xf32>
    %291 = arith.mulf %282, %237 : vector<8x16xf32>
    %292 = arith.mulf %276, %284 : vector<8x16xf32>
    %293 = arith.addf %291, %292 : vector<8x16xf32>
    %294 = math.tanh %293 : vector<8x16xf32>
    %295 = arith.mulf %290, %294 : vector<8x16xf32>
    %296 = vector.extract_strided_slice %208 {offsets = [24, 64], sizes = [8, 64], strides = [1, 1]} : vector<40x128xf32> to vector<8x64xf32>
    %cst_32 = arith.constant dense<0.000000e+00> : vector<8x64xf32>
    %297 = tpu.matmul %267, %210, %cst_32 {dimension_numbers = #tpu.dot_dimension_numbers<[1], [0], [0], [1], [0, 0, 1, 1], [], []>} : vector<8x16xf32>, vector<16x64xf32>, vector<8x64xf32> -> vector<8x64xf32>
    %298 = arith.addf %296, %297 : vector<8x64xf32>
    %299 = vector.extract_strided_slice %298 {offsets = [0, 0], sizes = [8, 16], strides = [1, 1]} : vector<8x64xf32> to vector<8x16xf32>
    %300 = arith.negf %299 : vector<8x16xf32>
    %301 = math.exp %300 : vector<8x16xf32>
    %cst_33 = arith.constant 1.000000e+00 : f32
    %302 = vector.broadcast %cst_33 : f32 to vector<8x16xf32>
    %303 = arith.addf %302, %301 : vector<8x16xf32>
    %304 = arith.divf %302, %303 : vector<8x16xf32>
    %305 = vector.extract_strided_slice %298 {offsets = [0, 16], sizes = [8, 16], strides = [1, 1]} : vector<8x64xf32> to vector<8x16xf32>
    %306 = arith.negf %305 : vector<8x16xf32>
    %307 = math.exp %306 : vector<8x16xf32>
    %cst_34 = arith.constant 1.000000e+00 : f32
    %308 = vector.broadcast %cst_34 : f32 to vector<8x16xf32>
    %309 = arith.addf %308, %307 : vector<8x16xf32>
    %310 = arith.divf %308, %309 : vector<8x16xf32>
    %311 = vector.extract_strided_slice %298 {offsets = [0, 32], sizes = [8, 16], strides = [1, 1]} : vector<8x64xf32> to vector<8x16xf32>
    %312 = math.tanh %311 : vector<8x16xf32>
    %313 = vector.extract_strided_slice %298 {offsets = [0, 48], sizes = [8, 16], strides = [1, 1]} : vector<8x64xf32> to vector<8x16xf32>
    %314 = arith.negf %313 : vector<8x16xf32>
    %315 = math.exp %314 : vector<8x16xf32>
    %cst_35 = arith.constant 1.000000e+00 : f32
    %316 = vector.broadcast %cst_35 : f32 to vector<8x16xf32>
    %317 = arith.addf %316, %315 : vector<8x16xf32>
    %318 = arith.divf %316, %317 : vector<8x16xf32>
    %319 = arith.mulf %310, %265 : vector<8x16xf32>
    %320 = arith.mulf %304, %312 : vector<8x16xf32>
    %321 = arith.addf %319, %320 : vector<8x16xf32>
    %322 = math.tanh %321 : vector<8x16xf32>
    %323 = arith.mulf %318, %322 : vector<8x16xf32>
    %324 = vector.extract_strided_slice %208 {offsets = [16, 0], sizes = [8, 64], strides = [1, 1]} : vector<40x128xf32> to vector<8x64xf32>
    %cst_36 = arith.constant dense<0.000000e+00> : vector<8x64xf32>
    %325 = tpu.matmul %295, %209, %cst_36 {dimension_numbers = #tpu.dot_dimension_numbers<[1], [0], [0], [1], [0, 0, 1, 1], [], []>} : vector<8x16xf32>, vector<16x64xf32>, vector<8x64xf32> -> vector<8x64xf32>
    %326 = arith.addf %324, %325 : vector<8x64xf32>
    %327 = vector.extract_strided_slice %326 {offsets = [0, 0], sizes = [8, 16], strides = [1, 1]} : vector<8x64xf32> to vector<8x16xf32>
    %328 = arith.negf %327 : vector<8x16xf32>
    %329 = math.exp %328 : vector<8x16xf32>
    %cst_37 = arith.constant 1.000000e+00 : f32
    %330 = vector.broadcast %cst_37 : f32 to vector<8x16xf32>
    %331 = arith.addf %330, %329 : vector<8x16xf32>
    %332 = arith.divf %330, %331 : vector<8x16xf32>
    %333 = vector.extract_strided_slice %326 {offsets = [0, 16], sizes = [8, 16], strides = [1, 1]} : vector<8x64xf32> to vector<8x16xf32>
    %334 = arith.negf %333 : vector<8x16xf32>
    %335 = math.exp %334 : vector<8x16xf32>
    %cst_38 = arith.constant 1.000000e+00 : f32
    %336 = vector.broadcast %cst_38 : f32 to vector<8x16xf32>
    %337 = arith.addf %336, %335 : vector<8x16xf32>
    %338 = arith.divf %336, %337 : vector<8x16xf32>
    %339 = vector.extract_strided_slice %326 {offsets = [0, 32], sizes = [8, 16], strides = [1, 1]} : vector<8x64xf32> to vector<8x16xf32>
    %340 = math.tanh %339 : vector<8x16xf32>
    %341 = vector.extract_strided_slice %326 {offsets = [0, 48], sizes = [8, 16], strides = [1, 1]} : vector<8x64xf32> to vector<8x16xf32>
    %342 = arith.negf %341 : vector<8x16xf32>
    %343 = math.exp %342 : vector<8x16xf32>
    %cst_39 = arith.constant 1.000000e+00 : f32
    %344 = vector.broadcast %cst_39 : f32 to vector<8x16xf32>
    %345 = arith.addf %344, %343 : vector<8x16xf32>
    %346 = arith.divf %344, %345 : vector<8x16xf32>
    %347 = arith.mulf %338, %293 : vector<8x16xf32>
    %348 = arith.mulf %332, %340 : vector<8x16xf32>
    %349 = arith.addf %347, %348 : vector<8x16xf32>
    %350 = math.tanh %349 : vector<8x16xf32>
    %351 = arith.mulf %346, %350 : vector<8x16xf32>
    %352 = vector.extract_strided_slice %208 {offsets = [16, 64], sizes = [8, 64], strides = [1, 1]} : vector<40x128xf32> to vector<8x64xf32>
    %cst_40 = arith.constant dense<0.000000e+00> : vector<8x64xf32>
    %353 = tpu.matmul %323, %210, %cst_40 {dimension_numbers = #tpu.dot_dimension_numbers<[1], [0], [0], [1], [0, 0, 1, 1], [], []>} : vector<8x16xf32>, vector<16x64xf32>, vector<8x64xf32> -> vector<8x64xf32>
    %354 = arith.addf %352, %353 : vector<8x64xf32>
    %355 = vector.extract_strided_slice %354 {offsets = [0, 0], sizes = [8, 16], strides = [1, 1]} : vector<8x64xf32> to vector<8x16xf32>
    %356 = arith.negf %355 : vector<8x16xf32>
    %357 = math.exp %356 : vector<8x16xf32>
    %cst_41 = arith.constant 1.000000e+00 : f32
    %358 = vector.broadcast %cst_41 : f32 to vector<8x16xf32>
    %359 = arith.addf %358, %357 : vector<8x16xf32>
    %360 = arith.divf %358, %359 : vector<8x16xf32>
    %361 = vector.extract_strided_slice %354 {offsets = [0, 16], sizes = [8, 16], strides = [1, 1]} : vector<8x64xf32> to vector<8x16xf32>
    %362 = arith.negf %361 : vector<8x16xf32>
    %363 = math.exp %362 : vector<8x16xf32>
    %cst_42 = arith.constant 1.000000e+00 : f32
    %364 = vector.broadcast %cst_42 : f32 to vector<8x16xf32>
    %365 = arith.addf %364, %363 : vector<8x16xf32>
    %366 = arith.divf %364, %365 : vector<8x16xf32>
    %367 = vector.extract_strided_slice %354 {offsets = [0, 32], sizes = [8, 16], strides = [1, 1]} : vector<8x64xf32> to vector<8x16xf32>
    %368 = math.tanh %367 : vector<8x16xf32>
    %369 = vector.extract_strided_slice %354 {offsets = [0, 48], sizes = [8, 16], strides = [1, 1]} : vector<8x64xf32> to vector<8x16xf32>
    %370 = arith.negf %369 : vector<8x16xf32>
    %371 = math.exp %370 : vector<8x16xf32>
    %cst_43 = arith.constant 1.000000e+00 : f32
    %372 = vector.broadcast %cst_43 : f32 to vector<8x16xf32>
    %373 = arith.addf %372, %371 : vector<8x16xf32>
    %374 = arith.divf %372, %373 : vector<8x16xf32>
    %375 = arith.mulf %366, %321 : vector<8x16xf32>
    %376 = arith.mulf %360, %368 : vector<8x16xf32>
    %377 = arith.addf %375, %376 : vector<8x16xf32>
    %378 = math.tanh %377 : vector<8x16xf32>
    %379 = arith.mulf %374, %378 : vector<8x16xf32>
    %380 = vector.extract_strided_slice %208 {offsets = [24, 0], sizes = [8, 64], strides = [1, 1]} : vector<40x128xf32> to vector<8x64xf32>
    %cst_44 = arith.constant dense<0.000000e+00> : vector<8x64xf32>
    %381 = tpu.matmul %351, %209, %cst_44 {dimension_numbers = #tpu.dot_dimension_numbers<[1], [0], [0], [1], [0, 0, 1, 1], [], []>} : vector<8x16xf32>, vector<16x64xf32>, vector<8x64xf32> -> vector<8x64xf32>
    %382 = arith.addf %380, %381 : vector<8x64xf32>
    %383 = vector.extract_strided_slice %382 {offsets = [0, 0], sizes = [8, 16], strides = [1, 1]} : vector<8x64xf32> to vector<8x16xf32>
    %384 = arith.negf %383 : vector<8x16xf32>
    %385 = math.exp %384 : vector<8x16xf32>
    %cst_45 = arith.constant 1.000000e+00 : f32
    %386 = vector.broadcast %cst_45 : f32 to vector<8x16xf32>
    %387 = arith.addf %386, %385 : vector<8x16xf32>
    %388 = arith.divf %386, %387 : vector<8x16xf32>
    %389 = vector.extract_strided_slice %382 {offsets = [0, 16], sizes = [8, 16], strides = [1, 1]} : vector<8x64xf32> to vector<8x16xf32>
    %390 = arith.negf %389 : vector<8x16xf32>
    %391 = math.exp %390 : vector<8x16xf32>
    %cst_46 = arith.constant 1.000000e+00 : f32
    %392 = vector.broadcast %cst_46 : f32 to vector<8x16xf32>
    %393 = arith.addf %392, %391 : vector<8x16xf32>
    %394 = arith.divf %392, %393 : vector<8x16xf32>
    %395 = vector.extract_strided_slice %382 {offsets = [0, 32], sizes = [8, 16], strides = [1, 1]} : vector<8x64xf32> to vector<8x16xf32>
    %396 = math.tanh %395 : vector<8x16xf32>
    %397 = vector.extract_strided_slice %382 {offsets = [0, 48], sizes = [8, 16], strides = [1, 1]} : vector<8x64xf32> to vector<8x16xf32>
    %398 = arith.negf %397 : vector<8x16xf32>
    %399 = math.exp %398 : vector<8x16xf32>
    %cst_47 = arith.constant 1.000000e+00 : f32
    %400 = vector.broadcast %cst_47 : f32 to vector<8x16xf32>
    %401 = arith.addf %400, %399 : vector<8x16xf32>
    %402 = arith.divf %400, %401 : vector<8x16xf32>
    %403 = arith.mulf %394, %349 : vector<8x16xf32>
    %404 = arith.mulf %388, %396 : vector<8x16xf32>
    %405 = arith.addf %403, %404 : vector<8x16xf32>
    %406 = math.tanh %405 : vector<8x16xf32>
    %407 = arith.mulf %402, %406 : vector<8x16xf32>
    %408 = vector.extract_strided_slice %208 {offsets = [8, 64], sizes = [8, 64], strides = [1, 1]} : vector<40x128xf32> to vector<8x64xf32>
    %cst_48 = arith.constant dense<0.000000e+00> : vector<8x64xf32>
    %409 = tpu.matmul %379, %210, %cst_48 {dimension_numbers = #tpu.dot_dimension_numbers<[1], [0], [0], [1], [0, 0, 1, 1], [], []>} : vector<8x16xf32>, vector<16x64xf32>, vector<8x64xf32> -> vector<8x64xf32>
    %410 = arith.addf %408, %409 : vector<8x64xf32>
    %411 = vector.extract_strided_slice %410 {offsets = [0, 0], sizes = [8, 16], strides = [1, 1]} : vector<8x64xf32> to vector<8x16xf32>
    %412 = arith.negf %411 : vector<8x16xf32>
    %413 = math.exp %412 : vector<8x16xf32>
    %cst_49 = arith.constant 1.000000e+00 : f32
    %414 = vector.broadcast %cst_49 : f32 to vector<8x16xf32>
    %415 = arith.addf %414, %413 : vector<8x16xf32>
    %416 = arith.divf %414, %415 : vector<8x16xf32>
    %417 = vector.extract_strided_slice %410 {offsets = [0, 16], sizes = [8, 16], strides = [1, 1]} : vector<8x64xf32> to vector<8x16xf32>
    %418 = arith.negf %417 : vector<8x16xf32>
    %419 = math.exp %418 : vector<8x16xf32>
    %cst_50 = arith.constant 1.000000e+00 : f32
    %420 = vector.broadcast %cst_50 : f32 to vector<8x16xf32>
    %421 = arith.addf %420, %419 : vector<8x16xf32>
    %422 = arith.divf %420, %421 : vector<8x16xf32>
    %423 = vector.extract_strided_slice %410 {offsets = [0, 32], sizes = [8, 16], strides = [1, 1]} : vector<8x64xf32> to vector<8x16xf32>
    %424 = math.tanh %423 : vector<8x16xf32>
    %425 = vector.extract_strided_slice %410 {offsets = [0, 48], sizes = [8, 16], strides = [1, 1]} : vector<8x64xf32> to vector<8x16xf32>
    %426 = arith.negf %425 : vector<8x16xf32>
    %427 = math.exp %426 : vector<8x16xf32>
    %cst_51 = arith.constant 1.000000e+00 : f32
    %428 = vector.broadcast %cst_51 : f32 to vector<8x16xf32>
    %429 = arith.addf %428, %427 : vector<8x16xf32>
    %430 = arith.divf %428, %429 : vector<8x16xf32>
    %431 = arith.mulf %422, %377 : vector<8x16xf32>
    %432 = arith.mulf %416, %424 : vector<8x16xf32>
    %433 = arith.addf %431, %432 : vector<8x16xf32>
    %434 = math.tanh %433 : vector<8x16xf32>
    %435 = arith.mulf %430, %434 : vector<8x16xf32>
    %436 = vector.extract_strided_slice %208 {offsets = [32, 0], sizes = [8, 64], strides = [1, 1]} : vector<40x128xf32> to vector<8x64xf32>
    %cst_52 = arith.constant dense<0.000000e+00> : vector<8x64xf32>
    %437 = tpu.matmul %407, %209, %cst_52 {dimension_numbers = #tpu.dot_dimension_numbers<[1], [0], [0], [1], [0, 0, 1, 1], [], []>} : vector<8x16xf32>, vector<16x64xf32>, vector<8x64xf32> -> vector<8x64xf32>
    %438 = arith.addf %436, %437 : vector<8x64xf32>
    %439 = vector.extract_strided_slice %438 {offsets = [0, 0], sizes = [8, 16], strides = [1, 1]} : vector<8x64xf32> to vector<8x16xf32>
    %440 = arith.negf %439 : vector<8x16xf32>
    %441 = math.exp %440 : vector<8x16xf32>
    %cst_53 = arith.constant 1.000000e+00 : f32
    %442 = vector.broadcast %cst_53 : f32 to vector<8x16xf32>
    %443 = arith.addf %442, %441 : vector<8x16xf32>
    %444 = arith.divf %442, %443 : vector<8x16xf32>
    %445 = vector.extract_strided_slice %438 {offsets = [0, 16], sizes = [8, 16], strides = [1, 1]} : vector<8x64xf32> to vector<8x16xf32>
    %446 = arith.negf %445 : vector<8x16xf32>
    %447 = math.exp %446 : vector<8x16xf32>
    %cst_54 = arith.constant 1.000000e+00 : f32
    %448 = vector.broadcast %cst_54 : f32 to vector<8x16xf32>
    %449 = arith.addf %448, %447 : vector<8x16xf32>
    %450 = arith.divf %448, %449 : vector<8x16xf32>
    %451 = vector.extract_strided_slice %438 {offsets = [0, 32], sizes = [8, 16], strides = [1, 1]} : vector<8x64xf32> to vector<8x16xf32>
    %452 = math.tanh %451 : vector<8x16xf32>
    %453 = vector.extract_strided_slice %438 {offsets = [0, 48], sizes = [8, 16], strides = [1, 1]} : vector<8x64xf32> to vector<8x16xf32>
    %454 = arith.negf %453 : vector<8x16xf32>
    %455 = math.exp %454 : vector<8x16xf32>
    %cst_55 = arith.constant 1.000000e+00 : f32
    %456 = vector.broadcast %cst_55 : f32 to vector<8x16xf32>
    %457 = arith.addf %456, %455 : vector<8x16xf32>
    %458 = arith.divf %456, %457 : vector<8x16xf32>
    %459 = arith.mulf %450, %405 : vector<8x16xf32>
    %460 = arith.mulf %444, %452 : vector<8x16xf32>
    %461 = arith.addf %459, %460 : vector<8x16xf32>
    %462 = math.tanh %461 : vector<8x16xf32>
    %463 = arith.mulf %458, %462 : vector<8x16xf32>
    %464 = vector.extract_strided_slice %208 {offsets = [0, 64], sizes = [8, 64], strides = [1, 1]} : vector<40x128xf32> to vector<8x64xf32>
    %cst_56 = arith.constant dense<0.000000e+00> : vector<8x64xf32>
    %465 = tpu.matmul %435, %210, %cst_56 {dimension_numbers = #tpu.dot_dimension_numbers<[1], [0], [0], [1], [0, 0, 1, 1], [], []>} : vector<8x16xf32>, vector<16x64xf32>, vector<8x64xf32> -> vector<8x64xf32>
    %466 = arith.addf %464, %465 : vector<8x64xf32>
    %467 = vector.extract_strided_slice %466 {offsets = [0, 0], sizes = [8, 16], strides = [1, 1]} : vector<8x64xf32> to vector<8x16xf32>
    %468 = arith.negf %467 : vector<8x16xf32>
    %469 = math.exp %468 : vector<8x16xf32>
    %cst_57 = arith.constant 1.000000e+00 : f32
    %470 = vector.broadcast %cst_57 : f32 to vector<8x16xf32>
    %471 = arith.addf %470, %469 : vector<8x16xf32>
    %472 = arith.divf %470, %471 : vector<8x16xf32>
    %473 = vector.extract_strided_slice %466 {offsets = [0, 16], sizes = [8, 16], strides = [1, 1]} : vector<8x64xf32> to vector<8x16xf32>
    %474 = arith.negf %473 : vector<8x16xf32>
    %475 = math.exp %474 : vector<8x16xf32>
    %cst_58 = arith.constant 1.000000e+00 : f32
    %476 = vector.broadcast %cst_58 : f32 to vector<8x16xf32>
    %477 = arith.addf %476, %475 : vector<8x16xf32>
    %478 = arith.divf %476, %477 : vector<8x16xf32>
    %479 = vector.extract_strided_slice %466 {offsets = [0, 32], sizes = [8, 16], strides = [1, 1]} : vector<8x64xf32> to vector<8x16xf32>
    %480 = math.tanh %479 : vector<8x16xf32>
    %481 = vector.extract_strided_slice %466 {offsets = [0, 48], sizes = [8, 16], strides = [1, 1]} : vector<8x64xf32> to vector<8x16xf32>
    %482 = arith.negf %481 : vector<8x16xf32>
    %483 = math.exp %482 : vector<8x16xf32>
    %cst_59 = arith.constant 1.000000e+00 : f32
    %484 = vector.broadcast %cst_59 : f32 to vector<8x16xf32>
    %485 = arith.addf %484, %483 : vector<8x16xf32>
    %486 = arith.divf %484, %485 : vector<8x16xf32>
    %487 = arith.mulf %478, %433 : vector<8x16xf32>
    %488 = arith.mulf %472, %480 : vector<8x16xf32>
    %489 = arith.addf %487, %488 : vector<8x16xf32>
    %490 = math.tanh %489 : vector<8x16xf32>
    %491 = arith.mulf %486, %490 : vector<8x16xf32>
    %492 = tpu.concatenate %239, %295, %351, %407, %463 in 0 : vector<8x16xf32>, vector<8x16xf32>, vector<8x16xf32>, vector<8x16xf32>, vector<8x16xf32> -> vector<40x16xf32>
    %493 = tpu.concatenate %491, %435, %379, %323, %267 in 0 : vector<8x16xf32>, vector<8x16xf32>, vector<8x16xf32>, vector<8x16xf32>, vector<8x16xf32> -> vector<40x16xf32>
    %c0_60 = arith.constant 0 : index
    %c0_61 = arith.constant 0 : index
    %494 = vector.load %arg7[%c0_60, %c0_61] : memref<16x4xf32, #tpu.memory_space<vmem>>, vector<16x4xf32>
    %cst_62 = arith.constant dense<0.000000e+00> : vector<40x4xf32>
    %495 = tpu.matmul %492, %494, %cst_62 {dimension_numbers = #tpu.dot_dimension_numbers<[1], [0], [0], [1], [0, 0, 1, 1], [], []>} : vector<40x16xf32>, vector<16x4xf32>, vector<40x4xf32> -> vector<40x4xf32>
    %c0_63 = arith.constant 0 : index
    %c0_64 = arith.constant 0 : index
    %496 = vector.load %arg8[%c0_63, %c0_64] : memref<16x4xf32, #tpu.memory_space<vmem>>, vector<16x4xf32>
    %cst_65 = arith.constant dense<0.000000e+00> : vector<40x4xf32>
    %497 = tpu.matmul %493, %496, %cst_65 {dimension_numbers = #tpu.dot_dimension_numbers<[1], [0], [0], [1], [0, 0, 1, 1], [], []>} : vector<40x16xf32>, vector<16x4xf32>, vector<40x4xf32> -> vector<40x4xf32>
    %498 = arith.addf %495, %497 : vector<40x4xf32>
    %c0_66 = arith.constant 0 : index
    %c0_67 = arith.constant 0 : index
    %499 = vector.load %arg9[%c0_66, %c0_67] : memref<1x4xf32, #tpu.memory_space<vmem>>, vector<1x4xf32>
    %500 = vector.broadcast %499 : vector<1x4xf32> to vector<40x4xf32>
    %501 = arith.addf %498, %500 : vector<40x4xf32>
    %c0_68 = arith.constant 0 : index
    %c0_69 = arith.constant 0 : index
    %502 = vector.load %arg10[%c0_68, %c0_69] : memref<40x4xf32, #tpu.memory_space<vmem>>, vector<40x4xf32>
    tpu.vector_store %arg10[%c0_68, %c0_69], %501 {strides = array<i32>} : memref<40x4xf32, #tpu.memory_space<vmem>>, vector<40x4xf32>,
    return
  }
}

</mosaic_0001>

<llo_original>
// kernel: tpu_custom_call.1
$region0: #{tpu_custom_call.1}
  #allocation0 [shape = 'u32[]', space=smem, size = 0x4, offset = 0x4, fixed_abs, tag = 'smem constant byte address 0x4 - core index']
  #allocation1 [shape = 'u32[144,128]{1,0:T(1,128)}', space=vmem, size = 0x12000, scoped, tag = 'internal scratch']
  %s0 = inlined_call_operand.vmem [shape: f32[480,16], index: 0, kind: input, shape index: {}]
  %s1 = inlined_call_operand.vmem [shape: f32[16,72], index: 1, kind: input, shape index: {}]
  %s2 = inlined_call_operand.vmem [shape: f32[1,24], index: 2, kind: input, shape index: {}]
  %s3 = inlined_call_operand.vmem [shape: f32[24,128], index: 3, kind: input, shape index: {}]
  %s4 = inlined_call_operand.vmem [shape: f32[1,128], index: 4, kind: input, shape index: {}]
  %s5 = inlined_call_operand.vmem [shape: f32[16,64], index: 5, kind: input, shape index: {}]
  %s6 = inlined_call_operand.vmem [shape: f32[16,64], index: 6, kind: input, shape index: {}]
  %s7 = inlined_call_operand.vmem [shape: f32[16,4], index: 7, kind: input, shape index: {}]
  %s8 = inlined_call_operand.vmem [shape: f32[16,4], index: 8, kind: input, shape index: {}]
  %s9 = inlined_call_operand.vmem [shape: f32[1,4], index: 9, kind: input, shape index: {}]
  %s10 = inlined_call_operand.vmem [shape: f32[40,4], index: 10, kind: output, shape index: {}]
  %s11 = sld [smem:[#allocation0]]
  $region50: #{tpu_custom_call.1} parent=0
    _
  %s13 = ssub.s32 1, %s11
  %s14 = scalar_select 0, %s13, %s11
  // Predicated region
  $region2: #{tpu_custom_call.1} parent=0 // pred_check
    _
  $region3: #{tpu_custom_call.1} parent=0 // pred_check_branch
    %16 = sbr.rel (0) target = $region5
  $region4: #{tpu_custom_call.1} parent=0 // pred_region
    _
  $region5: #{tpu_custom_call.1} parent=0 // pred_fallthru
    _
  // Predicated region
  $region6: #{tpu_custom_call.1} parent=0 // pred_check
    _
  $region7: #{tpu_custom_call.1} parent=0 // pred_check_branch
    %18 = sbr.rel (0) target = $region9
  $region8: #{tpu_custom_call.1} parent=0 // pred_region
    _
  $region9: #{tpu_custom_call.1} parent=0 // pred_fallthru
    _
  // Predicated region
  $region10: #{tpu_custom_call.1} parent=0 // pred_check
    _
  $region11: #{tpu_custom_call.1} parent=0 // pred_check_branch
    %20 = sbr.rel (0) target = $region13
  $region12: #{tpu_custom_call.1} parent=0 // pred_region
    _
  $region13: #{tpu_custom_call.1} parent=0 // pred_fallthru
    _
  // Predicated region
  $region14: #{tpu_custom_call.1} parent=0 // pred_check
    _
  $region15: #{tpu_custom_call.1} parent=0 // pred_check_branch
    %22 = sbr.rel (0) target = $region17
  $region16: #{tpu_custom_call.1} parent=0 // pred_region
    _
  $region17: #{tpu_custom_call.1} parent=0 // pred_fallthru
    _
  // Predicated region
  $region18: #{tpu_custom_call.1} parent=0 // pred_check
    _
  $region19: #{tpu_custom_call.1} parent=0 // pred_check_branch
    %24 = sbr.rel (0) target = $region21
  $region20: #{tpu_custom_call.1} parent=0 // pred_region
    _
  $region21: #{tpu_custom_call.1} parent=0 // pred_fallthru
    _
  // Predicated region
  $region22: #{tpu_custom_call.1} parent=0 // pred_check
    _
  $region23: #{tpu_custom_call.1} parent=0 // pred_check_branch
    %26 = sbr.rel (0) target = $region25
  $region24: #{tpu_custom_call.1} parent=0 // pred_region
    _
  $region25: #{tpu_custom_call.1} parent=0 // pred_fallthru
    _
  // Predicated region
  $region26: #{tpu_custom_call.1} parent=0 // pred_check
    _
  $region27: #{tpu_custom_call.1} parent=0 // pred_check_branch
    %28 = sbr.rel (0) target = $region29
  $region28: #{tpu_custom_call.1} parent=0 // pred_region
    _
  $region29: #{tpu_custom_call.1} parent=0 // pred_fallthru
    _
  // Predicated region
  $region30: #{tpu_custom_call.1} parent=0 // pred_check
    _
  $region31: #{tpu_custom_call.1} parent=0 // pred_check_branch
    %30 = sbr.rel (0) target = $region33
  $region32: #{tpu_custom_call.1} parent=0 // pred_region
    _
  $region33: #{tpu_custom_call.1} parent=0 // pred_fallthru
    _
  // Predicated region
  $region34: #{tpu_custom_call.1} parent=0 // pred_check
    _
  $region35: #{tpu_custom_call.1} parent=0 // pred_check_branch
    %32 = sbr.rel (0) target = $region37
  $region36: #{tpu_custom_call.1} parent=0 // pred_region
    _
  $region37: #{tpu_custom_call.1} parent=0 // pred_fallthru
    _
  // Predicated region
  $region38: #{tpu_custom_call.1} parent=0 // pred_check
    _
  $region39: #{tpu_custom_call.1} parent=0 // pred_check_branch
    %34 = sbr.rel (0) target = $region41
  $region40: #{tpu_custom_call.1} parent=0 // pred_region
    _
  $region41: #{tpu_custom_call.1} parent=0 // pred_fallthru
    _
  %v35 = vld [vmem:[%s0] sm:$0xff]
  %v36 = vld [vmem:[%s0 + $0x8] sm:$0xff]
  %v37 = vld [vmem:[%s0 + $0x10] sm:$0xff]
  %v38 = vld [vmem:[%s0 + $0x18] sm:$0xff]
  %v39 = vld [vmem:[%s0 + $0x20] sm:$0xff]
  %v40 = vld [vmem:[%s0 + $0x28] sm:$0xff]
  %v41 = vld [vmem:[%s0 + $0x30] sm:$0xff]
  %v42 = vld [vmem:[%s0 + $0x38] sm:$0xff]
  %v43 = vld [vmem:[%s0 + $0x40] sm:$0xff]
  %v44 = vld [vmem:[%s0 + $0x48] sm:$0xff]
  %v45 = vld [vmem:[%s0 + $0x50] sm:$0xff]
  %v46 = vld [vmem:[%s0 + $0x58] sm:$0xff]
  %v47 = vld [vmem:[%s0 + $0x60] sm:$0xff]
  %v48 = vld [vmem:[%s0 + $0x68] sm:$0xff]
  %v49 = vld [vmem:[%s0 + $0x70] sm:$0xff]
  %v50 = vld [vmem:[%s0 + $0x78] sm:$0xff]
  %v51 = vld [vmem:[%s0 + $0x80] sm:$0xff]
  %v52 = vld [vmem:[%s0 + $0x88] sm:$0xff]
  %v53 = vld [vmem:[%s0 + $0x90] sm:$0xff]
  %v54 = vld [vmem:[%s0 + $0x98] sm:$0xff]
  %v55 = vld [vmem:[%s0 + $0xa0] sm:$0xff]
  %v56 = vld [vmem:[%s0 + $0xa8] sm:$0xff]
  %v57 = vld [vmem:[%s0 + $0xb0] sm:$0xff]
  %v58 = vld [vmem:[%s0 + $0xb8] sm:$0xff]
  %v59 = vld [vmem:[%s0 + $0xc0] sm:$0xff]
  %v60 = vld [vmem:[%s0 + $0xc8] sm:$0xff]
  %v61 = vld [vmem:[%s0 + $0xd0] sm:$0xff]
  %v62 = vld [vmem:[%s0 + $0xd8] sm:$0xff]
  %v63 = vld [vmem:[%s0 + $0xe0] sm:$0xff]
  %v64 = vld [vmem:[%s0 + $0xe8] sm:$0xff]
  %v65 = vld [vmem:[%s0 + $0xf0] sm:$0xff]
  %v66 = vld [vmem:[%s0 + $0xf8] sm:$0xff]
  %v67 = vld [vmem:[%s0 + $0x100] sm:$0xff]
  %v68 = vld [vmem:[%s0 + $0x108] sm:$0xff]
  %v69 = vld [vmem:[%s0 + $0x110] sm:$0xff]
  %v70 = vld [vmem:[%s0 + $0x118] sm:$0xff]
  %v71 = vld [vmem:[%s0 + $0x120] sm:$0xff]
  %v72 = vld [vmem:[%s0 + $0x128] sm:$0xff]
  %v73 = vld [vmem:[%s0 + $0x130] sm:$0xff]
  %v74 = vld [vmem:[%s0 + $0x138] sm:$0xff]
  %v75 = vld [vmem:[%s0 + $0x140] sm:$0xff]
  %v76 = vld [vmem:[%s0 + $0x148] sm:$0xff]
  %v77 = vld [vmem:[%s0 + $0x150] sm:$0xff]
  %v78 = vld [vmem:[%s0 + $0x158] sm:$0xff]
  %v79 = vld [vmem:[%s0 + $0x160] sm:$0xff]
  %v80 = vld [vmem:[%s0 + $0x168] sm:$0xff]
  %v81 = vld [vmem:[%s0 + $0x170] sm:$0xff]
  %v82 = vld [vmem:[%s0 + $0x178] sm:$0xff]
  %v83 = vld [vmem:[%s0 + $0x180] sm:$0xff]
  %v84 = vld [vmem:[%s0 + $0x188] sm:$0xff]
  %v85 = vld [vmem:[%s0 + $0x190] sm:$0xff]
  %v86 = vld [vmem:[%s0 + $0x198] sm:$0xff]
  %v87 = vld [vmem:[%s0 + $0x1a0] sm:$0xff]
  %v88 = vld [vmem:[%s0 + $0x1a8] sm:$0xff]
  %v89 = vld [vmem:[%s0 + $0x1b0] sm:$0xff]
  %v90 = vld [vmem:[%s0 + $0x1b8] sm:$0xff]
  %v91 = vld [vmem:[%s0 + $0x1c0] sm:$0xff]
  %v92 = vld [vmem:[%s0 + $0x1c8] sm:$0xff]
  %v93 = vld [vmem:[%s0 + $0x1d0] sm:$0xff]
  %v94 = vld [vmem:[%s0 + $0x1d8] sm:$0xff]
  %v95 = vld [vmem:[%s1] sm:$0xff]
  %v96 = vld [vmem:[%s1 + $0x8] sm:$0xff]
  %vm97 = vcmask 130048
  %v99 = vsel %vm97, %v35, 0
  %v102 = vsel %vm97, %v36, 0
  %v105 = vsel %vm97, %v37, 0
  %v108 = vsel %vm97, %v38, 0
  %v111 = vsel %vm97, %v39, 0
  %v114 = vsel %vm97, %v40, 0
  %v117 = vsel %vm97, %v41, 0
  %v120 = vsel %vm97, %v42, 0
  %v123 = vsel %vm97, %v43, 0
  %v126 = vsel %vm97, %v44, 0
  %v129 = vsel %vm97, %v45, 0
  %v132 = vsel %vm97, %v46, 0
  %v135 = vsel %vm97, %v47, 0
  %v138 = vsel %vm97, %v48, 0
  %v141 = vsel %vm97, %v49, 0
  %v144 = vsel %vm97, %v50, 0
  %v147 = vsel %vm97, %v51, 0
  %v150 = vsel %vm97, %v52, 0
  %v153 = vsel %vm97, %v53, 0
  %v156 = vsel %vm97, %v54, 0
  %v159 = vsel %vm97, %v55, 0
  %v162 = vsel %vm97, %v56, 0
  %v165 = vsel %vm97, %v57, 0
  %v168 = vsel %vm97, %v58, 0
  %v171 = vsel %vm97, %v59, 0
  %v174 = vsel %vm97, %v60, 0
  %v177 = vsel %vm97, %v61, 0
  %v180 = vsel %vm97, %v62, 0
  %v183 = vsel %vm97, %v63, 0
  %v186 = vsel %vm97, %v64, 0
  %v189 = vsel %vm97, %v65, 0
  %v192 = vsel %vm97, %v66, 0
  %v195 = vsel %vm97, %v67, 0
  %v198 = vsel %vm97, %v68, 0
  %v201 = vsel %vm97, %v69, 0
  %v204 = vsel %vm97, %v70, 0
  %v207 = vsel %vm97, %v71, 0
  %v210 = vsel %vm97, %v72, 0
  %v213 = vsel %vm97, %v73, 0
  %v216 = vsel %vm97, %v74, 0
  %v219 = vsel %vm97, %v75, 0
  %v222 = vsel %vm97, %v76, 0
  %v225 = vsel %vm97, %v77, 0
  %v228 = vsel %vm97, %v78, 0
  %v231 = vsel %vm97, %v79, 0
  %v234 = vsel %vm97, %v80, 0
  %v237 = vsel %vm97, %v81, 0
  %v240 = vsel %vm97, %v82, 0
  %v243 = vsel %vm97, %v83, 0
  %v246 = vsel %vm97, %v84, 0
  %v249 = vsel %vm97, %v85, 0
  %v252 = vsel %vm97, %v86, 0
  %v255 = vsel %vm97, %v87, 0
  %v258 = vsel %vm97, %v88, 0
  %v261 = vsel %vm97, %v89, 0
  %v264 = vsel %vm97, %v90, 0
  %v267 = vsel %vm97, %v91, 0
  %v270 = vsel %vm97, %v92, 0
  %v273 = vsel %vm97, %v93, 0
  %v276 = vsel %vm97, %v94, 0
  %278 = vmatprep.subr.mxu0 0.0
  %279 = vmatpush1.msra.mxu0 %v95
  %280 = vmatprep.subr.mxu0 0.0
  %281 = vmatpush1.msra.mxu0 %v96
  %282 = vmatprep.subr.mxu0 0.0
  %283 = vmatpush1.msra.mxu0 0.0
  %284 = vmatprep.subr.mxu0 0.0
  %285 = vmatpush1.msra.mxu0 0.0
  %286 = vmatprep.subr.mxu0 0.0
  %287 = vmatpush1.msra.mxu0 0.0
  %288 = vmatprep.subr.mxu0 0.0
  %289 = vmatpush1.msra.mxu0 0.0
  %290 = vmatprep.subr.mxu0 0.0
  %291 = vmatpush1.msra.mxu0 0.0
  %292 = vmatprep.subr.mxu0 0.0
  %293 = vmatpush1.msra.mxu0 0.0
  %294 = vmatprep.subr.mxu0 0.0
  %295 = vmatpush1.msra.mxu0 0.0
  %296 = vmatprep.subr.mxu0 0.0
  %297 = vmatpush1.msra.mxu0 0.0
  %298 = vmatprep.subr.mxu0 0.0
  %299 = vmatpush1.msra.mxu0 0.0
  %300 = vmatprep.subr.mxu0 0.0
  %301 = vmatpush1.msra.mxu0 0.0
  %302 = vmatprep.subr.mxu0 0.0
  %303 = vmatpush1.msra.mxu0 0.0
  %304 = vmatprep.subr.mxu0 0.0
  %305 = vmatpush1.msra.mxu0 0.0
  %306 = vmatprep.subr.mxu0 0.0
  %307 = vmatpush1.msra.mxu0 0.0
  %308 = vmatprep.subr.mxu0 0.0
  %309 = vmatpush1.msra.mxu0 0.0
  %310 = vmatprep.subr.mxu0 0.0
  %311 = vmatpush1.msra.mxu0 0.0
  %312 = vmatprep.subr.mxu0 0.0
  %313 = vmatpush1.msra.mxu0 0.0
  %314 = vmatprep.subr.mxu0 0.0
  %315 = vmatpush1.msra.mxu0 0.0
  %316 = vmatprep.subr.mxu0 0.0
  %317 = vmatpush1.msra.mxu0 0.0
  %318 = vmatprep.subr.mxu0 0.0
  %319 = vmatpush1.msra.mxu0 0.0
  %320 = vmatprep.subr.mxu0 0.0
  %321 = vmatpush1.msra.mxu0 0.0
  %322 = vmatprep.subr.mxu0 0.0
  %323 = vmatpush1.msra.mxu0 0.0
  %324 = vmatprep.subr.mxu0 0.0
  %325 = vmatpush1.msra.mxu0 0.0
  %326 = vmatprep.subr.mxu0 0.0
  %327 = vmatpush1.msra.mxu0 0.0
  %328 = vmatprep.subr.mxu0 0.0
  %329 = vmatpush1.msra.mxu0 0.0
  %330 = vmatprep.subr.mxu0 0.0
  %331 = vmatpush1.msra.mxu0 0.0
  %332 = vmatprep.subr.mxu0 0.0
  %333 = vmatpush1.msra.mxu0 0.0
  %334 = vmatprep.subr.mxu0 0.0
  %335 = vmatpush1.msra.mxu0 0.0
  %336 = vmatprep.subr.mxu0 0.0
  %337 = vmatpush1.msra.mxu0 0.0
  %338 = vmatprep.subr.mxu0 0.0
  %339 = vmatpush1.msra.mxu0 0.0
  %340 = vmatprep.subr.mxu0 0.0
  %341 = vmatpush1.msra.mxu0 0.0
  %342 = vmatprep.mubr.f32.mxu0 0.0
  %343 = vmatmul.mubr.f32.gmra.mrb[0].mxu0 %v99
  %v344 = vpop.f32.mrb[0].mxu0
  %v345 = vadd.f32 0.0, %v344
  %v346 = vpop.f32.mrb[0].mxu0
  %347 = vmatprep.mubr.f32.mxu0 0.0
  %348 = vmatmul.mubr.f32.gmra.mrb[0].mxu0 %v102
  %v349 = vpop.f32.mrb[0].mxu0
  %v350 = vadd.f32 0.0, %v349
  %v351 = vpop.f32.mrb[0].mxu0
  %352 = vmatprep.mubr.f32.mxu0 0.0
  %353 = vmatmul.mubr.f32.gmra.mrb[0].mxu0 %v105
  %v354 = vpop.f32.mrb[0].mxu0
  %v355 = vadd.f32 0.0, %v354
  %v356 = vpop.f32.mrb[0].mxu0
  %357 = vmatprep.mubr.f32.mxu0 0.0
  %358 = vmatmul.mubr.f32.gmra.mrb[0].mxu0 %v108
  %v359 = vpop.f32.mrb[0].mxu0
  %v360 = vadd.f32 0.0, %v359
  %v361 = vpop.f32.mrb[0].mxu0
  %362 = vmatprep.mubr.f32.mxu0 0.0
  %363 = vmatmul.mubr.f32.gmra.mrb[0].mxu0 %v111
  %v364 = vpop.f32.mrb[0].mxu0
  %v365 = vadd.f32 0.0, %v364
  %v366 = vpop.f32.mrb[0].mxu0
  %367 = vmatprep.mubr.f32.mxu0 0.0
  %368 = vmatmul.mubr.f32.gmra.mrb[0].mxu0 %v114
  %v369 = vpop.f32.mrb[0].mxu0
  %v370 = vadd.f32 0.0, %v369
  %v371 = vpop.f32.mrb[0].mxu0
  %372 = vmatprep.mubr.f32.mxu0 0.0
  %373 = vmatmul.mubr.f32.gmra.mrb[0].mxu0 %v117
  %v374 = vpop.f32.mrb[0].mxu0
  %v375 = vadd.f32 0.0, %v374
  %v376 = vpop.f32.mrb[0].mxu0
  %377 = vmatprep.mubr.f32.mxu0 0.0
  %378 = vmatmul.mubr.f32.gmra.mrb[0].mxu0 %v120
  %v379 = vpop.f32.mrb[0].mxu0
  %v380 = vadd.f32 0.0, %v379
  %v381 = vpop.f32.mrb[0].mxu0
  %382 = vmatprep.mubr.f32.mxu0 0.0
  %383 = vmatmul.mubr.f32.gmra.mrb[0].mxu0 %v123
  %v384 = vpop.f32.mrb[0].mxu0
  %v385 = vadd.f32 0.0, %v384
  %v386 = vpop.f32.mrb[0].mxu0
  %387 = vmatprep.mubr.f32.mxu0 0.0
  %388 = vmatmul.mubr.f32.gmra.mrb[0].mxu0 %v126
  %v389 = vpop.f32.mrb[0].mxu0
  %v390 = vadd.f32 0.0, %v389
  %v391 = vpop.f32.mrb[0].mxu0
  %392 = vmatprep.mubr.f32.mxu0 0.0
  %393 = vmatmul.mubr.f32.gmra.mrb[0].mxu0 %v129
  %v394 = vpop.f32.mrb[0].mxu0
  %v395 = vadd.f32 0.0, %v394
  %v396 = vpop.f32.mrb[0].mxu0
  %397 = vmatprep.mubr.f32.mxu0 0.0
  %398 = vmatmul.mubr.f32.gmra.mrb[0].mxu0 %v132
  %v399 = vpop.f32.mrb[0].mxu0
  %v400 = vadd.f32 0.0, %v399
  %v401 = vpop.f32.mrb[0].mxu0
  %402 = vmatprep.mubr.f32.mxu0 0.0
  %403 = vmatmul.mubr.f32.gmra.mrb[0].mxu0 %v135
  %v404 = vpop.f32.mrb[0].mxu0
  %v405 = vadd.f32 0.0, %v404
  %v406 = vpop.f32.mrb[0].mxu0
  %407 = vmatprep.mubr.f32.mxu0 0.0
  %408 = vmatmul.mubr.f32.gmra.mrb[0].mxu0 %v138
  %v409 = vpop.f32.mrb[0].mxu0
  %v410 = vadd.f32 0.0, %v409
  %v411 = vpop.f32.mrb[0].mxu0
  %412 = vmatprep.mubr.f32.mxu0 0.0
  %413 = vmatmul.mubr.f32.gmra.mrb[0].mxu0 %v141
  %v414 = vpop.f32.mrb[0].mxu0
  %v415 = vadd.f32 0.0, %v414
  %v416 = vpop.f32.mrb[0].mxu0
  %417 = vmatprep.mubr.f32.mxu0 0.0
  %418 = vmatmul.mubr.f32.gmra.mrb[0].mxu0 %v144
  %v419 = vpop.f32.mrb[0].mxu0
  %v420 = vadd.f32 0.0, %v419
  %v421 = vpop.f32.mrb[0].mxu0
  %422 = vmatprep.mubr.f32.mxu0 0.0
  %423 = vmatmul.mubr.f32.gmra.mrb[0].mxu0 %v147
  %v424 = vpop.f32.mrb[0].mxu0
  %v425 = vadd.f32 0.0, %v424
  %v426 = vpop.f32.mrb[0].mxu0
  %427 = vmatprep.mubr.f32.mxu0 0.0
  %428 = vmatmul.mubr.f32.gmra.mrb[0].mxu0 %v150
  %v429 = vpop.f32.mrb[0].mxu0
  %v430 = vadd.f32 0.0, %v429
  %v431 = vpop.f32.mrb[0].mxu0
  %432 = vmatprep.mubr.f32.mxu0 0.0
  %433 = vmatmul.mubr.f32.gmra.mrb[0].mxu0 %v153
  %v434 = vpop.f32.mrb[0].mxu0
  %v435 = vadd.f32 0.0, %v434
  %v436 = vpop.f32.mrb[0].mxu0
  %437 = vmatprep.mubr.f32.mxu0 0.0
  %438 = vmatmul.mubr.f32.gmra.mrb[0].mxu0 %v156
  %v439 = vpop.f32.mrb[0].mxu0
  %v440 = vadd.f32 0.0, %v439
  %v441 = vpop.f32.mrb[0].mxu0
  %442 = vmatprep.mubr.f32.mxu0 0.0
  %443 = vmatmul.mubr.f32.gmra.mrb[0].mxu0 %v159
  %v444 = vpop.f32.mrb[0].mxu0
  %v445 = vadd.f32 0.0, %v444
  %v446 = vpop.f32.mrb[0].mxu0
  %447 = vmatprep.mubr.f32.mxu0 0.0
  %448 = vmatmul.mubr.f32.gmra.mrb[0].mxu0 %v162
  %v449 = vpop.f32.mrb[0].mxu0
  %v450 = vadd.f32 0.0, %v449
  %v451 = vpop.f32.mrb[0].mxu0
  %452 = vmatprep.mubr.f32.mxu0 0.0
  %453 = vmatmul.mubr.f32.gmra.mrb[0].mxu0 %v165
  %v454 = vpop.f32.mrb[0].mxu0
  %v455 = vadd.f32 0.0, %v454
  %v456 = vpop.f32.mrb[0].mxu0
  %457 = vmatprep.mubr.f32.mxu0 0.0
  %458 = vmatmul.mubr.f32.gmra.mrb[0].mxu0 %v168
  %v459 = vpop.f32.mrb[0].mxu0
  %v460 = vadd.f32 0.0, %v459
  %v461 = vpop.f32.mrb[0].mxu0
  %462 = vmatprep.mubr.f32.mxu0 0.0
  %463 = vmatmul.mubr.f32.gmra.mrb[0].mxu0 %v171
  %v464 = vpop.f32.mrb[0].mxu0
  %v465 = vadd.f32 0.0, %v464
  %v466 = vpop.f32.mrb[0].mxu0
  %467 = vmatprep.mubr.f32.mxu0 0.0
  %468 = vmatmul.mubr.f32.gmra.mrb[0].mxu0 %v174
  %v469 = vpop.f32.mrb[0].mxu0
  %v470 = vadd.f32 0.0, %v469
  %v471 = vpop.f32.mrb[0].mxu0
  %472 = vmatprep.mubr.f32.mxu0 0.0
  %473 = vmatmul.mubr.f32.gmra.mrb[0].mxu0 %v177
  %v474 = vpop.f32.mrb[0].mxu0
  %v475 = vadd.f32 0.0, %v474
  %v476 = vpop.f32.mrb[0].mxu0
  %477 = vmatprep.mubr.f32.mxu0 0.0
  %478 = vmatmul.mubr.f32.gmra.mrb[0].mxu0 %v180
  %v479 = vpop.f32.mrb[0].mxu0
  %v480 = vadd.f32 0.0, %v479
  %v481 = vpop.f32.mrb[0].mxu0
  %482 = vmatprep.mubr.f32.mxu0 0.0
  %483 = vmatmul.mubr.f32.gmra.mrb[0].mxu0 %v183
  %v484 = vpop.f32.mrb[0].mxu0
  %v485 = vadd.f32 0.0, %v484
  %v486 = vpop.f32.mrb[0].mxu0
  %487 = vmatprep.mubr.f32.mxu0 0.0
  %488 = vmatmul.mubr.f32.gmra.mrb[0].mxu0 %v186
  %v489 = vpop.f32.mrb[0].mxu0
  %v490 = vadd.f32 0.0, %v489
  %v491 = vpop.f32.mrb[0].mxu0
  %492 = vmatprep.mubr.f32.mxu0 0.0
  %493 = vmatmul.mubr.f32.gmra.mrb[0].mxu0 %v189
  %v494 = vpop.f32.mrb[0].mxu0
  %v495 = vadd.f32 0.0, %v494
  %v496 = vpop.f32.mrb[0].mxu0
  %497 = vmatprep.mubr.f32.mxu0 0.0
  %498 = vmatmul.mubr.f32.gmra.mrb[0].mxu0 %v192
  %v499 = vpop.f32.mrb[0].mxu0
  %v500 = vadd.f32 0.0, %v499
  %v501 = vpop.f32.mrb[0].mxu0
  %502 = vmatprep.mubr.f32.mxu0 0.0
  %503 = vmatmul.mubr.f32.gmra.mrb[0].mxu0 %v195
  %v504 = vpop.f32.mrb[0].mxu0
  %v505 = vadd.f32 0.0, %v504
  %v506 = vpop.f32.mrb[0].mxu0
  %507 = vmatprep.mubr.f32.mxu0 0.0
  %508 = vmatmul.mubr.f32.gmra.mrb[0].mxu0 %v198
  %v509 = vpop.f32.mrb[0].mxu0
  %v510 = vadd.f32 0.0, %v509
  %v511 = vpop.f32.mrb[0].mxu0
  %512 = vmatprep.mubr.f32.mxu0 0.0
  %513 = vmatmul.mubr.f32.gmra.mrb[0].mxu0 %v201
  %v514 = vpop.f32.mrb[0].mxu0
  %v515 = vadd.f32 0.0, %v514
  %v516 = vpop.f32.mrb[0].mxu0
  %517 = vmatprep.mubr.f32.mxu0 0.0
  %518 = vmatmul.mubr.f32.gmra.mrb[0].mxu0 %v204
  %v519 = vpop.f32.mrb[0].mxu0
  %v520 = vadd.f32 0.0, %v519
  %v521 = vpop.f32.mrb[0].mxu0
  %522 = vmatprep.mubr.f32.mxu0 0.0
  %523 = vmatmul.mubr.f32.gmra.mrb[0].mxu0 %v207
  %v524 = vpop.f32.mrb[0].mxu0
  %v525 = vadd.f32 0.0, %v524
  %v526 = vpop.f32.mrb[0].mxu0
  %527 = vmatprep.mubr.f32.mxu0 0.0
  %528 = vmatmul.mubr.f32.gmra.mrb[0].mxu0 %v210
  %v529 = vpop.f32.mrb[0].mxu0
  %v530 = vadd.f32 0.0, %v529
  %v531 = vpop.f32.mrb[0].mxu0
  %532 = vmatprep.mubr.f32.mxu0 0.0
  %533 = vmatmul.mubr.f32.gmra.mrb[0].mxu0 %v213
  %v534 = vpop.f32.mrb[0].mxu0
  %v535 = vadd.f32 0.0, %v534
  %v536 = vpop.f32.mrb[0].mxu0
  %537 = vmatprep.mubr.f32.mxu0 0.0
  %538 = vmatmul.mubr.f32.gmra.mrb[0].mxu0 %v216
  %v539 = vpop.f32.mrb[0].mxu0
  %v540 = vadd.f32 0.0, %v539
  %v541 = vpop.f32.mrb[0].mxu0
  %542 = vmatprep.mubr.f32.mxu0 0.0
  %543 = vmatmul.mubr.f32.gmra.mrb[0].mxu0 %v219
  %v544 = vpop.f32.mrb[0].mxu0
  %v545 = vadd.f32 0.0, %v544
  %v546 = vpop.f32.mrb[0].mxu0
  %547 = vmatprep.mubr.f32.mxu0 0.0
  %548 = vmatmul.mubr.f32.gmra.mrb[0].mxu0 %v222
  %v549 = vpop.f32.mrb[0].mxu0
  %v550 = vadd.f32 0.0, %v549
  %v551 = vpop.f32.mrb[0].mxu0
  %552 = vmatprep.mubr.f32.mxu0 0.0
  %553 = vmatmul.mubr.f32.gmra.mrb[0].mxu0 %v225
  %v554 = vpop.f32.mrb[0].mxu0
  %v555 = vadd.f32 0.0, %v554
  %v556 = vpop.f32.mrb[0].mxu0
  %557 = vmatprep.mubr.f32.mxu0 0.0
  %558 = vmatmul.mubr.f32.gmra.mrb[0].mxu0 %v228
  %v559 = vpop.f32.mrb[0].mxu0
  %v560 = vadd.f32 0.0, %v559
  %v561 = vpop.f32.mrb[0].mxu0
  %562 = vmatprep.mubr.f32.mxu0 0.0
  %563 = vmatmul.mubr.f32.gmra.mrb[0].mxu0 %v231
  %v564 = vpop.f32.mrb[0].mxu0
  %v565 = vadd.f32 0.0, %v564
  %v566 = vpop.f32.mrb[0].mxu0
  %567 = vmatprep.mubr.f32.mxu0 0.0
  %568 = vmatmul.mubr.f32.gmra.mrb[0].mxu0 %v234
  %v569 = vpop.f32.mrb[0].mxu0
  %v570 = vadd.f32 0.0, %v569
  %v571 = vpop.f32.mrb[0].mxu0
  %572 = vmatprep.mubr.f32.mxu0 0.0
  %573 = vmatmul.mubr.f32.gmra.mrb[0].mxu0 %v237
  %v574 = vpop.f32.mrb[0].mxu0
  %v575 = vadd.f32 0.0, %v574
  %v576 = vpop.f32.mrb[0].mxu0
  %577 = vmatprep.mubr.f32.mxu0 0.0
  %578 = vmatmul.mubr.f32.gmra.mrb[0].mxu0 %v240
  %v579 = vpop.f32.mrb[0].mxu0
  %v580 = vadd.f32 0.0, %v579
  %v581 = vpop.f32.mrb[0].mxu0
  %582 = vmatprep.mubr.f32.mxu0 0.0
  %583 = vmatmul.mubr.f32.gmra.mrb[0].mxu0 %v243
  %v584 = vpop.f32.mrb[0].mxu0
  %v585 = vadd.f32 0.0, %v584
  %v586 = vpop.f32.mrb[0].mxu0
  %587 = vmatprep.mubr.f32.mxu0 0.0
  %588 = vmatmul.mubr.f32.gmra.mrb[0].mxu0 %v246
  %v589 = vpop.f32.mrb[0].mxu0
  %v590 = vadd.f32 0.0, %v589
  %v591 = vpop.f32.mrb[0].mxu0
  %592 = vmatprep.mubr.f32.mxu0 0.0
  %593 = vmatmul.mubr.f32.gmra.mrb[0].mxu0 %v249
  %v594 = vpop.f32.mrb[0].mxu0
  %v595 = vadd.f32 0.0, %v594
  %v596 = vpop.f32.mrb[0].mxu0
  %597 = vmatprep.mubr.f32.mxu0 0.0
  %598 = vmatmul.mubr.f32.gmra.mrb[0].mxu0 %v252
  %v599 = vpop.f32.mrb[0].mxu0
  %v600 = vadd.f32 0.0, %v599
  %v601 = vpop.f32.mrb[0].mxu0
  %602 = vmatprep.mubr.f32.mxu0 0.0
  %603 = vmatmul.mubr.f32.gmra.mrb[0].mxu0 %v255
  %v604 = vpop.f32.mrb[0].mxu0
  %v605 = vadd.f32 0.0, %v604
  %v606 = vpop.f32.mrb[0].mxu0
  %607 = vmatprep.mubr.f32.mxu0 0.0
  %608 = vmatmul.mubr.f32.gmra.mrb[0].mxu0 %v258
  %v609 = vpop.f32.mrb[0].mxu0
  %v610 = vadd.f32 0.0, %v609
  %v611 = vpop.f32.mrb[0].mxu0
  %612 = vmatprep.mubr.f32.mxu0 0.0
  %613 = vmatmul.mubr.f32.gmra.mrb[0].mxu0 %v261
  %v614 = vpop.f32.mrb[0].mxu0
  %v615 = vadd.f32 0.0, %v614
  %v616 = vpop.f32.mrb[0].mxu0
  %617 = vmatprep.mubr.f32.mxu0 0.0
  %618 = vmatmul.mubr.f32.gmra.mrb[0].mxu0 %v264
  %v619 = vpop.f32.mrb[0].mxu0
  %v620 = vadd.f32 0.0, %v619
  %v621 = vpop.f32.mrb[0].mxu0
  %622 = vmatprep.mubr.f32.mxu0 0.0
  %623 = vmatmul.mubr.f32.gmra.mrb[0].mxu0 %v267
  %v624 = vpop.f32.mrb[0].mxu0
  %v625 = vadd.f32 0.0, %v624
  %v626 = vpop.f32.mrb[0].mxu0
  %627 = vmatprep.mubr.f32.mxu0 0.0
  %628 = vmatmul.mubr.f32.gmra.mrb[0].mxu0 %v270
  %v629 = vpop.f32.mrb[0].mxu0
  %v630 = vadd.f32 0.0, %v629
  %v631 = vpop.f32.mrb[0].mxu0
  %632 = vmatprep.mubr.f32.mxu0 0.0
  %633 = vmatmul.mubr.f32.gmra.mrb[0].mxu0 %v273
  %v634 = vpop.f32.mrb[0].mxu0
  %v635 = vadd.f32 0.0, %v634
  %v636 = vpop.f32.mrb[0].mxu0
  %637 = vmatprep.mubr.f32.mxu0 0.0
  %638 = vmatmul.mubr.f32.gmra.mrb[0].mxu0 %v276
  %v639 = vpop.f32.mrb[0].mxu0
  %v640 = vadd.f32 0.0, %v639
  %v641 = vpop.f32.mrb[0].mxu0
  %642 = vdwg.mxu0
  %648 = vrot.lane.b32.xlu0 %v370, 120
  %v649 = vpop.permute.xlu0 %648
  %650 = vrot.lane.b32.xlu0 %v375, 120
  %v651 = vpop.permute.xlu0 %650
  %652 = vrot.lane.b32.xlu0 %v380, 120
  %v653 = vpop.permute.xlu0 %652
  %654 = vrot.lane.b32.xlu0 %v385, 120
  %v655 = vpop.permute.xlu0 %654
  %656 = vrot.lane.b32.xlu0 %v390, 120
  %v657 = vpop.permute.xlu0 %656
  %v663 = vadd.f32 %v345, %v649
  %v664 = vadd.f32 %v350, %v651
  %v665 = vadd.f32 %v355, %v653
  %v666 = vadd.f32 %v360, %v655
  %v667 = vadd.f32 %v365, %v657
  %673 = vrot.lane.b32.xlu0 %v395, 120
  %v674 = vpop.permute.xlu0 %673
  %675 = vrot.lane.b32.xlu0 %v400, 120
  %v676 = vpop.permute.xlu0 %675
  %677 = vrot.lane.b32.xlu0 %v405, 120
  %v678 = vpop.permute.xlu0 %677
  %679 = vrot.lane.b32.xlu0 %v410, 120
  %v680 = vpop.permute.xlu0 %679
  %681 = vrot.lane.b32.xlu0 %v415, 120
  %v682 = vpop.permute.xlu0 %681
  %v688 = vadd.f32 %v370, %v674
  %v689 = vadd.f32 %v375, %v676
  %v690 = vadd.f32 %v380, %v678
  %v691 = vadd.f32 %v385, %v680
  %v692 = vadd.f32 %v390, %v682
  %698 = vrot.lane.b32.xlu0 %v420, 120
  %v699 = vpop.permute.xlu0 %698
  %700 = vrot.lane.b32.xlu0 %v425, 120
  %v701 = vpop.permute.xlu0 %700
  %702 = vrot.lane.b32.xlu0 %v430, 120
  %v703 = vpop.permute.xlu0 %702
  %704 = vrot.lane.b32.xlu0 %v435, 120
  %v705 = vpop.permute.xlu0 %704
  %706 = vrot.lane.b32.xlu0 %v440, 120
  %v707 = vpop.permute.xlu0 %706
  %v713 = vadd.f32 %v395, %v699
  %v714 = vadd.f32 %v400, %v701
  %v715 = vadd.f32 %v405, %v703
  %v716 = vadd.f32 %v410, %v705
  %v717 = vadd.f32 %v415, %v707
  %723 = vrot.lane.b32.xlu0 %v445, 120
  %v724 = vpop.permute.xlu0 %723
  %725 = vrot.lane.b32.xlu0 %v450, 120
  %v726 = vpop.permute.xlu0 %725
  %727 = vrot.lane.b32.xlu0 %v455, 120
  %v728 = vpop.permute.xlu0 %727
  %729 = vrot.lane.b32.xlu0 %v460, 120
  %v730 = vpop.permute.xlu0 %729
  %731 = vrot.lane.b32.xlu0 %v465, 120
  %v732 = vpop.permute.xlu0 %731
  %v738 = vadd.f32 %v420, %v724
  %v739 = vadd.f32 %v425, %v726
  %v740 = vadd.f32 %v430, %v728
  %v741 = vadd.f32 %v435, %v730
  %v742 = vadd.f32 %v440, %v732
  %748 = vrot.lane.b32.xlu0 %v470, 120
  %v749 = vpop.permute.xlu0 %748
  %750 = vrot.lane.b32.xlu0 %v475, 120
  %v751 = vpop.permute.xlu0 %750
  %752 = vrot.lane.b32.xlu0 %v480, 120
  %v753 = vpop.permute.xlu0 %752
  %754 = vrot.lane.b32.xlu0 %v485, 120
  %v755 = vpop.permute.xlu0 %754
  %756 = vrot.lane.b32.xlu0 %v490, 120
  %v757 = vpop.permute.xlu0 %756
  %v763 = vadd.f32 %v445, %v749
  %v764 = vadd.f32 %v450, %v751
  %v765 = vadd.f32 %v455, %v753
  %v766 = vadd.f32 %v460, %v755
  %v767 = vadd.f32 %v465, %v757
  %773 = vrot.lane.b32.xlu0 %v495, 120
  %v774 = vpop.permute.xlu0 %773
  %775 = vrot.lane.b32.xlu0 %v500, 120
  %v776 = vpop.permute.xlu0 %775
  %777 = vrot.lane.b32.xlu0 %v505, 120
  %v778 = vpop.permute.xlu0 %777
  %779 = vrot.lane.b32.xlu0 %v510, 120
  %v780 = vpop.permute.xlu0 %779
  %781 = vrot.lane.b32.xlu0 %v515, 120
  %v782 = vpop.permute.xlu0 %781
  %v788 = vadd.f32 %v470, %v774
  %v789 = vadd.f32 %v475, %v776
  %v790 = vadd.f32 %v480, %v778
  %v791 = vadd.f32 %v485, %v780
  %v792 = vadd.f32 %v490, %v782
  %798 = vrot.lane.b32.xlu0 %v520, 120
  %v799 = vpop.permute.xlu0 %798
  %800 = vrot.lane.b32.xlu0 %v525, 120
  %v801 = vpop.permute.xlu0 %800
  %802 = vrot.lane.b32.xlu0 %v530, 120
  %v803 = vpop.permute.xlu0 %802
  %804 = vrot.lane.b32.xlu0 %v535, 120
  %v805 = vpop.permute.xlu0 %804
  %806 = vrot.lane.b32.xlu0 %v540, 120
  %v807 = vpop.permute.xlu0 %806
  %v813 = vadd.f32 %v495, %v799
  %v814 = vadd.f32 %v500, %v801
  %v815 = vadd.f32 %v505, %v803
  %v816 = vadd.f32 %v510, %v805
  %v817 = vadd.f32 %v515, %v807
  %823 = vrot.lane.b32.xlu0 %v545, 120
  %v824 = vpop.permute.xlu0 %823
  %825 = vrot.lane.b32.xlu0 %v550, 120
  %v826 = vpop.permute.xlu0 %825
  %827 = vrot.lane.b32.xlu0 %v555, 120
  %v828 = vpop.permute.xlu0 %827
  %829 = vrot.lane.b32.xlu0 %v560, 120
  %v830 = vpop.permute.xlu0 %829
  %831 = vrot.lane.b32.xlu0 %v565, 120
  %v832 = vpop.permute.xlu0 %831
  %v838 = vadd.f32 %v520, %v824
  %v839 = vadd.f32 %v525, %v826
  %v840 = vadd.f32 %v530, %v828
  %v841 = vadd.f32 %v535, %v830
  %v842 = vadd.f32 %v540, %v832
  %848 = vrot.lane.b32.xlu0 %v570, 120
  %v849 = vpop.permute.xlu0 %848
  %850 = vrot.lane.b32.xlu0 %v575, 120
  %v851 = vpop.permute.xlu0 %850
  %852 = vrot.lane.b32.xlu0 %v580, 120
  %v853 = vpop.permute.xlu0 %852
  %854 = vrot.lane.b32.xlu0 %v585, 120
  %v855 = vpop.permute.xlu0 %854
  %856 = vrot.lane.b32.xlu0 %v590, 120
  %v857 = vpop.permute.xlu0 %856
  %v863 = vadd.f32 %v545, %v849
  %v864 = vadd.f32 %v550, %v851
  %v865 = vadd.f32 %v555, %v853
  %v866 = vadd.f32 %v560, %v855
  %v867 = vadd.f32 %v565, %v857
  %873 = vrot.lane.b32.xlu0 %v595, 120
  %v874 = vpop.permute.xlu0 %873
  %875 = vrot.lane.b32.xlu0 %v600, 120
  %v876 = vpop.permute.xlu0 %875
  %877 = vrot.lane.b32.xlu0 %v605, 120
  %v878 = vpop.permute.xlu0 %877
  %879 = vrot.lane.b32.xlu0 %v610, 120
  %v880 = vpop.permute.xlu0 %879
  %881 = vrot.lane.b32.xlu0 %v615, 120
  %v882 = vpop.permute.xlu0 %881
  %v888 = vadd.f32 %v570, %v874
  %v889 = vadd.f32 %v575, %v876
  %v890 = vadd.f32 %v580, %v878
  %v891 = vadd.f32 %v585, %v880
  %v892 = vadd.f32 %v590, %v882
  %898 = vrot.lane.b32.xlu0 %v620, 120
  %v899 = vpop.permute.xlu0 %898
  %900 = vrot.lane.b32.xlu0 %v625, 120
  %v901 = vpop.permute.xlu0 %900
  %902 = vrot.lane.b32.xlu0 %v630, 120
  %v903 = vpop.permute.xlu0 %902
  %904 = vrot.lane.b32.xlu0 %v635, 120
  %v905 = vpop.permute.xlu0 %904
  %906 = vrot.lane.b32.xlu0 %v640, 120
  %v907 = vpop.permute.xlu0 %906
  %v913 = vadd.f32 %v595, %v899
  %v914 = vadd.f32 %v600, %v901
  %v915 = vadd.f32 %v605, %v903
  %v916 = vadd.f32 %v610, %v905
  %v917 = vadd.f32 %v615, %v907
  %v918 = vmax.f32 %v663, %v688
  %v919 = vmax.f32 %v664, %v689
  %v920 = vmax.f32 %v665, %v690
  %v921 = vmax.f32 %v666, %v691
  %v922 = vmax.f32 %v667, %v692
  %v923 = vmax.f32 %v713, %v738
  %v924 = vmax.f32 %v714, %v739
  %v925 = vmax.f32 %v715, %v740
  %v926 = vmax.f32 %v716, %v741
  %v927 = vmax.f32 %v717, %v742
  %v928 = vmax.f32 %v763, %v788
  %v929 = vmax.f32 %v764, %v789
  %v930 = vmax.f32 %v765, %v790
  %v931 = vmax.f32 %v766, %v791
  %v932 = vmax.f32 %v767, %v792
  %v933 = vmax.f32 %v813, %v838
  %v934 = vmax.f32 %v814, %v839
  %v935 = vmax.f32 %v815, %v840
  %v936 = vmax.f32 %v816, %v841
  %v937 = vmax.f32 %v817, %v842
  %v938 = vmax.f32 %v863, %v888
  %v939 = vmax.f32 %v864, %v889
  %v940 = vmax.f32 %v865, %v890
  %v941 = vmax.f32 %v866, %v891
  %v942 = vmax.f32 %v867, %v892
  %v943 = vmax.f32 %v918, %v923
  %v944 = vmax.f32 %v919, %v924
  %v945 = vmax.f32 %v920, %v925
  %v946 = vmax.f32 %v921, %v926
  %v947 = vmax.f32 %v922, %v927
  %v948 = vmax.f32 %v928, %v933
  %v949 = vmax.f32 %v929, %v934
  %v950 = vmax.f32 %v930, %v935
  %v951 = vmax.f32 %v931, %v936
  %v952 = vmax.f32 %v932, %v937
  %v953 = vmax.f32 %v938, %v913
  %v954 = vmax.f32 %v939, %v914
  %v955 = vmax.f32 %v940, %v915
  %v956 = vmax.f32 %v941, %v916
  %v957 = vmax.f32 %v942, %v917
  %v958 = vmax.f32 %v943, %v948
  %v959 = vmax.f32 %v944, %v949
  %v960 = vmax.f32 %v945, %v950
  %v961 = vmax.f32 %v946, %v951
  %v962 = vmax.f32 %v947, %v952
  %v963 = vmax.f32 %v958, %v953
  %v964 = vmax.f32 %v959, %v954
  %v965 = vmax.f32 %v960, %v955
  %v966 = vmax.f32 %v961, %v956
  %v967 = vmax.f32 %v962, %v957
  %v968 = vld [vmem:[%s2] sm:$0x1]
  %v970 = vlaneseq
  %v971 = vshrl.u32 %v970, 7
  %v972 = vsub.s32 0, %v971
  %v973 = vrot.slane %v968, %v972
  %v975 = vadd.f32 %v963, %v973
  %v976 = vadd.f32 %v964, %v973
  %v977 = vadd.f32 %v965, %v973
  %v978 = vadd.f32 %v966, %v973
  %v979 = vadd.f32 %v967, %v973
  %v980 = vmax.f32 %v975, 0.0
  %v981 = vmax.f32 %v976, 0.0
  %v982 = vmax.f32 %v977, 0.0
  %v983 = vmax.f32 %v978, 0.0
  %v984 = vmax.f32 %v979, 0.0
  %985 = vrot.lane.b32.xlu0 %v395, 112
  %v986 = vpop.permute.xlu0 %985
  %987 = vrot.lane.b32.xlu0 %v400, 112
  %v988 = vpop.permute.xlu0 %987
  %989 = vrot.lane.b32.xlu0 %v405, 112
  %v990 = vpop.permute.xlu0 %989
  %991 = vrot.lane.b32.xlu0 %v410, 112
  %v992 = vpop.permute.xlu0 %991
  %993 = vrot.lane.b32.xlu0 %v415, 112
  %v994 = vpop.permute.xlu0 %993
  %v1000 = vadd.f32 %v663, %v986
  %v1001 = vadd.f32 %v664, %v988
  %v1002 = vadd.f32 %v665, %v990
  %v1003 = vadd.f32 %v666, %v992
  %v1004 = vadd.f32 %v667, %v994
  %1005 = vrot.lane.b32.xlu0 %v420, 112
  %v1006 = vpop.permute.xlu0 %1005
  %1007 = vrot.lane.b32.xlu0 %v425, 112
  %v1008 = vpop.permute.xlu0 %1007
  %1009 = vrot.lane.b32.xlu0 %v430, 112
  %v1010 = vpop.permute.xlu0 %1009
  %1011 = vrot.lane.b32.xlu0 %v435, 112
  %v1012 = vpop.permute.xlu0 %1011
  %1013 = vrot.lane.b32.xlu0 %v440, 112
  %v1014 = vpop.permute.xlu0 %1013
  %v1020 = vadd.f32 %v688, %v1006
  %v1021 = vadd.f32 %v689, %v1008
  %v1022 = vadd.f32 %v690, %v1010
  %v1023 = vadd.f32 %v691, %v1012
  %v1024 = vadd.f32 %v692, %v1014
  %1025 = vrot.lane.b32.xlu0 %v445, 112
  %v1026 = vpop.permute.xlu0 %1025
  %1027 = vrot.lane.b32.xlu0 %v450, 112
  %v1028 = vpop.permute.xlu0 %1027
  %1029 = vrot.lane.b32.xlu0 %v455, 112
  %v1030 = vpop.permute.xlu0 %1029
  %1031 = vrot.lane.b32.xlu0 %v460, 112
  %v1032 = vpop.permute.xlu0 %1031
  %1033 = vrot.lane.b32.xlu0 %v465, 112
  %v1034 = vpop.permute.xlu0 %1033
  %v1040 = vadd.f32 %v713, %v1026
  %v1041 = vadd.f32 %v714, %v1028
  %v1042 = vadd.f32 %v715, %v1030
  %v1043 = vadd.f32 %v716, %v1032
  %v1044 = vadd.f32 %v717, %v1034
  %1045 = vrot.lane.b32.xlu0 %v470, 112
  %v1046 = vpop.permute.xlu0 %1045
  %1047 = vrot.lane.b32.xlu0 %v475, 112
  %v1048 = vpop.permute.xlu0 %1047
  %1049 = vrot.lane.b32.xlu0 %v480, 112
  %v1050 = vpop.permute.xlu0 %1049
  %1051 = vrot.lane.b32.xlu0 %v485, 112
  %v1052 = vpop.permute.xlu0 %1051
  %1053 = vrot.lane.b32.xlu0 %v490, 112
  %v1054 = vpop.permute.xlu0 %1053
  %v1060 = vadd.f32 %v738, %v1046
  %v1061 = vadd.f32 %v739, %v1048
  %v1062 = vadd.f32 %v740, %v1050
  %v1063 = vadd.f32 %v741, %v1052
  %v1064 = vadd.f32 %v742, %v1054
  %1065 = vrot.lane.b32.xlu0 %v495, 112
  %v1066 = vpop.permute.xlu0 %1065
  %1067 = vrot.lane.b32.xlu0 %v500, 112
  %v1068 = vpop.permute.xlu0 %1067
  %1069 = vrot.lane.b32.xlu0 %v505, 112
  %v1070 = vpop.permute.xlu0 %1069
  %1071 = vrot.lane.b32.xlu0 %v510, 112
  %v1072 = vpop.permute.xlu0 %1071
  %1073 = vrot.lane.b32.xlu0 %v515, 112
  %v1074 = vpop.permute.xlu0 %1073
  %v1080 = vadd.f32 %v763, %v1066
  %v1081 = vadd.f32 %v764, %v1068
  %v1082 = vadd.f32 %v765, %v1070
  %v1083 = vadd.f32 %v766, %v1072
  %v1084 = vadd.f32 %v767, %v1074
  %1085 = vrot.lane.b32.xlu0 %v520, 112
  %v1086 = vpop.permute.xlu0 %1085
  %1087 = vrot.lane.b32.xlu0 %v525, 112
  %v1088 = vpop.permute.xlu0 %1087
  %1089 = vrot.lane.b32.xlu0 %v530, 112
  %v1090 = vpop.permute.xlu0 %1089
  %1091 = vrot.lane.b32.xlu0 %v535, 112
  %v1092 = vpop.permute.xlu0 %1091
  %1093 = vrot.lane.b32.xlu0 %v540, 112
  %v1094 = vpop.permute.xlu0 %1093
  %v1100 = vadd.f32 %v788, %v1086
  %v1101 = vadd.f32 %v789, %v1088
  %v1102 = vadd.f32 %v790, %v1090
  %v1103 = vadd.f32 %v791, %v1092
  %v1104 = vadd.f32 %v792, %v1094
  %1105 = vrot.lane.b32.xlu0 %v545, 112
  %v1106 = vpop.permute.xlu0 %1105
  %1107 = vrot.lane.b32.xlu0 %v550, 112
  %v1108 = vpop.permute.xlu0 %1107
  %1109 = vrot.lane.b32.xlu0 %v555, 112
  %v1110 = vpop.permute.xlu0 %1109
  %1111 = vrot.lane.b32.xlu0 %v560, 112
  %v1112 = vpop.permute.xlu0 %1111
  %1113 = vrot.lane.b32.xlu0 %v565, 112
  %v1114 = vpop.permute.xlu0 %1113
  %v1120 = vadd.f32 %v813, %v1106
  %v1121 = vadd.f32 %v814, %v1108
  %v1122 = vadd.f32 %v815, %v1110
  %v1123 = vadd.f32 %v816, %v1112
  %v1124 = vadd.f32 %v817, %v1114
  %1125 = vrot.lane.b32.xlu0 %v570, 112
  %v1126 = vpop.permute.xlu0 %1125
  %1127 = vrot.lane.b32.xlu0 %v575, 112
  %v1128 = vpop.permute.xlu0 %1127
  %1129 = vrot.lane.b32.xlu0 %v580, 112
  %v1130 = vpop.permute.xlu0 %1129
  %1131 = vrot.lane.b32.xlu0 %v585, 112
  %v1132 = vpop.permute.xlu0 %1131
  %1133 = vrot.lane.b32.xlu0 %v590, 112
  %v1134 = vpop.permute.xlu0 %1133
  %v1140 = vadd.f32 %v838, %v1126
  %v1141 = vadd.f32 %v839, %v1128
  %v1142 = vadd.f32 %v840, %v1130
  %v1143 = vadd.f32 %v841, %v1132
  %v1144 = vadd.f32 %v842, %v1134
  %1145 = vrot.lane.b32.xlu0 %v595, 112
  %v1146 = vpop.permute.xlu0 %1145
  %1147 = vrot.lane.b32.xlu0 %v600, 112
  %v1148 = vpop.permute.xlu0 %1147
  %1149 = vrot.lane.b32.xlu0 %v605, 112
  %v1150 = vpop.permute.xlu0 %1149
  %1151 = vrot.lane.b32.xlu0 %v610, 112
  %v1152 = vpop.permute.xlu0 %1151
  %1153 = vrot.lane.b32.xlu0 %v615, 112
  %v1154 = vpop.permute.xlu0 %1153
  %v1160 = vadd.f32 %v863, %v1146
  %v1161 = vadd.f32 %v864, %v1148
  %v1162 = vadd.f32 %v865, %v1150
  %v1163 = vadd.f32 %v866, %v1152
  %v1164 = vadd.f32 %v867, %v1154
  %1165 = vrot.lane.b32.xlu0 %v620, 112
  %v1166 = vpop.permute.xlu0 %1165
  %1167 = vrot.lane.b32.xlu0 %v625, 112
  %v1168 = vpop.permute.xlu0 %1167
  %1169 = vrot.lane.b32.xlu0 %v630, 112
  %v1170 = vpop.permute.xlu0 %1169
  %1171 = vrot.lane.b32.xlu0 %v635, 112
  %v1172 = vpop.permute.xlu0 %1171
  %1173 = vrot.lane.b32.xlu0 %v640, 112
  %v1174 = vpop.permute.xlu0 %1173
  %v1180 = vadd.f32 %v888, %v1166
  %v1181 = vadd.f32 %v889, %v1168
  %v1182 = vadd.f32 %v890, %v1170
  %v1183 = vadd.f32 %v891, %v1172
  %v1184 = vadd.f32 %v892, %v1174
  %v1185 = vmax.f32 %v1000, %v1020
  %v1186 = vmax.f32 %v1001, %v1021
  %v1187 = vmax.f32 %v1002, %v1022
  %v1188 = vmax.f32 %v1003, %v1023
  %v1189 = vmax.f32 %v1004, %v1024
  %v1190 = vmax.f32 %v1040, %v1060
  %v1191 = vmax.f32 %v1041, %v1061
  %v1192 = vmax.f32 %v1042, %v1062
  %v1193 = vmax.f32 %v1043, %v1063
  %v1194 = vmax.f32 %v1044, %v1064
  %v1195 = vmax.f32 %v1080, %v1100
  %v1196 = vmax.f32 %v1081, %v1101
  %v1197 = vmax.f32 %v1082, %v1102
  %v1198 = vmax.f32 %v1083, %v1103
  %v1199 = vmax.f32 %v1084, %v1104
  %v1200 = vmax.f32 %v1120, %v1140
  %v1201 = vmax.f32 %v1121, %v1141
  %v1202 = vmax.f32 %v1122, %v1142
  %v1203 = vmax.f32 %v1123, %v1143
  %v1204 = vmax.f32 %v1124, %v1144
  %v1205 = vmax.f32 %v1160, %v1180
  %v1206 = vmax.f32 %v1161, %v1181
  %v1207 = vmax.f32 %v1162, %v1182
  %v1208 = vmax.f32 %v1163, %v1183
  %v1209 = vmax.f32 %v1164, %v1184
  %v1210 = vmax.f32 %v1185, %v1190
  %v1211 = vmax.f32 %v1186, %v1191
  %v1212 = vmax.f32 %v1187, %v1192
  %v1213 = vmax.f32 %v1188, %v1193
  %v1214 = vmax.f32 %v1189, %v1194
  %v1215 = vmax.f32 %v1195, %v1200
  %v1216 = vmax.f32 %v1196, %v1201
  %v1217 = vmax.f32 %v1197, %v1202
  %v1218 = vmax.f32 %v1198, %v1203
  %v1219 = vmax.f32 %v1199, %v1204
  %v1220 = vmax.f32 %v1210, %v1215
  %v1221 = vmax.f32 %v1211, %v1216
  %v1222 = vmax.f32 %v1212, %v1217
  %v1223 = vmax.f32 %v1213, %v1218
  %v1224 = vmax.f32 %v1214, %v1219
  %v1225 = vmax.f32 %v1220, %v1205
  %v1226 = vmax.f32 %v1221, %v1206
  %v1227 = vmax.f32 %v1222, %v1207
  %v1228 = vmax.f32 %v1223, %v1208
  %v1229 = vmax.f32 %v1224, %v1209
  %1230 = vrot.lane.b32.xlu0 %v973, 8
  %v1231 = vpop.permute.xlu0 %1230
  %v1233 = vadd.f32 %v1225, %v1231
  %v1234 = vadd.f32 %v1226, %v1231
  %v1235 = vadd.f32 %v1227, %v1231
  %v1236 = vadd.f32 %v1228, %v1231
  %v1237 = vadd.f32 %v1229, %v1231
  %v1238 = vmax.f32 %v1233, 0.0
  %v1239 = vmax.f32 %v1234, 0.0
  %v1240 = vmax.f32 %v1235, 0.0
  %v1241 = vmax.f32 %v1236, 0.0
  %v1242 = vmax.f32 %v1237, 0.0
  %1243 = vrot.lane.b32.xlu0 %v420, 104
  %v1244 = vpop.permute.xlu0 %1243
  %1245 = vrot.lane.b32.xlu0 %v425, 104
  %v1246 = vpop.permute.xlu0 %1245
  %1247 = vrot.lane.b32.xlu0 %v430, 104
  %v1248 = vpop.permute.xlu0 %1247
  %1249 = vrot.lane.b32.xlu0 %v435, 104
  %v1250 = vpop.permute.xlu0 %1249
  %1251 = vrot.lane.b32.xlu0 %v440, 104
  %v1252 = vpop.permute.xlu0 %1251
  %v1258 = vadd.f32 %v1000, %v1244
  %v1259 = vadd.f32 %v1001, %v1246
  %v1260 = vadd.f32 %v1002, %v1248
  %v1261 = vadd.f32 %v1003, %v1250
  %v1262 = vadd.f32 %v1004, %v1252
  %1263 = vrot.lane.b32.xlu0 %v445, 104
  %v1264 = vpop.permute.xlu0 %1263
  %1265 = vrot.lane.b32.xlu0 %v450, 104
  %v1266 = vpop.permute.xlu0 %1265
  %1267 = vrot.lane.b32.xlu0 %v455, 104
  %v1268 = vpop.permute.xlu0 %1267
  %1269 = vrot.lane.b32.xlu0 %v460, 104
  %v1270 = vpop.permute.xlu0 %1269
  %1271 = vrot.lane.b32.xlu0 %v465, 104
  %v1272 = vpop.permute.xlu0 %1271
  %v1278 = vadd.f32 %v1020, %v1264
  %v1279 = vadd.f32 %v1021, %v1266
  %v1280 = vadd.f32 %v1022, %v1268
  %v1281 = vadd.f32 %v1023, %v1270
  %v1282 = vadd.f32 %v1024, %v1272
  %1283 = vrot.lane.b32.xlu0 %v470, 104
  %v1284 = vpop.permute.xlu0 %1283
  %1285 = vrot.lane.b32.xlu0 %v475, 104
  %v1286 = vpop.permute.xlu0 %1285
  %1287 = vrot.lane.b32.xlu0 %v480, 104
  %v1288 = vpop.permute.xlu0 %1287
  %1289 = vrot.lane.b32.xlu0 %v485, 104
  %v1290 = vpop.permute.xlu0 %1289
  %1291 = vrot.lane.b32.xlu0 %v490, 104
  %v1292 = vpop.permute.xlu0 %1291
  %v1298 = vadd.f32 %v1040, %v1284
  %v1299 = vadd.f32 %v1041, %v1286
  %v1300 = vadd.f32 %v1042, %v1288
  %v1301 = vadd.f32 %v1043, %v1290
  %v1302 = vadd.f32 %v1044, %v1292
  %1303 = vrot.lane.b32.xlu0 %v495, 104
  %v1304 = vpop.permute.xlu0 %1303
  %1305 = vrot.lane.b32.xlu0 %v500, 104
  %v1306 = vpop.permute.xlu0 %1305
  %1307 = vrot.lane.b32.xlu0 %v505, 104
  %v1308 = vpop.permute.xlu0 %1307
  %1309 = vrot.lane.b32.xlu0 %v510, 104
  %v1310 = vpop.permute.xlu0 %1309
  %1311 = vrot.lane.b32.xlu0 %v515, 104
  %v1312 = vpop.permute.xlu0 %1311
  %v1318 = vadd.f32 %v1060, %v1304
  %v1319 = vadd.f32 %v1061, %v1306
  %v1320 = vadd.f32 %v1062, %v1308
  %v1321 = vadd.f32 %v1063, %v1310
  %v1322 = vadd.f32 %v1064, %v1312
  %1323 = vrot.lane.b32.xlu0 %v520, 104
  %v1324 = vpop.permute.xlu0 %1323
  %1325 = vrot.lane.b32.xlu0 %v525, 104
  %v1326 = vpop.permute.xlu0 %1325
  %1327 = vrot.lane.b32.xlu0 %v530, 104
  %v1328 = vpop.permute.xlu0 %1327
  %1329 = vrot.lane.b32.xlu0 %v535, 104
  %v1330 = vpop.permute.xlu0 %1329
  %1331 = vrot.lane.b32.xlu0 %v540, 104
  %v1332 = vpop.permute.xlu0 %1331
  %v1338 = vadd.f32 %v1080, %v1324
  %v1339 = vadd.f32 %v1081, %v1326
  %v1340 = vadd.f32 %v1082, %v1328
  %v1341 = vadd.f32 %v1083, %v1330
  %v1342 = vadd.f32 %v1084, %v1332
  %1343 = vrot.lane.b32.xlu0 %v545, 104
  %v1344 = vpop.permute.xlu0 %1343
  %1345 = vrot.lane.b32.xlu0 %v550, 104
  %v1346 = vpop.permute.xlu0 %1345
  %1347 = vrot.lane.b32.xlu0 %v555, 104
  %v1348 = vpop.permute.xlu0 %1347
  %1349 = vrot.lane.b32.xlu0 %v560, 104
  %v1350 = vpop.permute.xlu0 %1349
  %1351 = vrot.lane.b32.xlu0 %v565, 104
  %v1352 = vpop.permute.xlu0 %1351
  %v1358 = vadd.f32 %v1100, %v1344
  %v1359 = vadd.f32 %v1101, %v1346
  %v1360 = vadd.f32 %v1102, %v1348
  %v1361 = vadd.f32 %v1103, %v1350
  %v1362 = vadd.f32 %v1104, %v1352
  %1363 = vrot.lane.b32.xlu0 %v570, 104
  %v1364 = vpop.permute.xlu0 %1363
  %1365 = vrot.lane.b32.xlu0 %v575, 104
  %v1366 = vpop.permute.xlu0 %1365
  %1367 = vrot.lane.b32.xlu0 %v580, 104
  %v1368 = vpop.permute.xlu0 %1367
  %1369 = vrot.lane.b32.xlu0 %v585, 104
  %v1370 = vpop.permute.xlu0 %1369
  %1371 = vrot.lane.b32.xlu0 %v590, 104
  %v1372 = vpop.permute.xlu0 %1371
  %v1378 = vadd.f32 %v1120, %v1364
  %v1379 = vadd.f32 %v1121, %v1366
  %v1380 = vadd.f32 %v1122, %v1368
  %v1381 = vadd.f32 %v1123, %v1370
  %v1382 = vadd.f32 %v1124, %v1372
  %1383 = vrot.lane.b32.xlu0 %v595, 104
  %v1384 = vpop.permute.xlu0 %1383
  %1385 = vrot.lane.b32.xlu0 %v600, 104
  %v1386 = vpop.permute.xlu0 %1385
  %1387 = vrot.lane.b32.xlu0 %v605, 104
  %v1388 = vpop.permute.xlu0 %1387
  %1389 = vrot.lane.b32.xlu0 %v610, 104
  %v1390 = vpop.permute.xlu0 %1389
  %1391 = vrot.lane.b32.xlu0 %v615, 104
  %v1392 = vpop.permute.xlu0 %1391
  %v1398 = vadd.f32 %v1140, %v1384
  %v1399 = vadd.f32 %v1141, %v1386
  %v1400 = vadd.f32 %v1142, %v1388
  %v1401 = vadd.f32 %v1143, %v1390
  %v1402 = vadd.f32 %v1144, %v1392
  %1403 = vrot.lane.b32.xlu0 %v620, 104
  %v1404 = vpop.permute.xlu0 %1403
  %1405 = vrot.lane.b32.xlu0 %v625, 104
  %v1406 = vpop.permute.xlu0 %1405
  %1407 = vrot.lane.b32.xlu0 %v630, 104
  %v1408 = vpop.permute.xlu0 %1407
  %1409 = vrot.lane.b32.xlu0 %v635, 104
  %v1410 = vpop.permute.xlu0 %1409
  %1411 = vrot.lane.b32.xlu0 %v640, 104
  %v1412 = vpop.permute.xlu0 %1411
  %v1418 = vadd.f32 %v1160, %v1404
  %v1419 = vadd.f32 %v1161, %v1406
  %v1420 = vadd.f32 %v1162, %v1408
  %v1421 = vadd.f32 %v1163, %v1410
  %v1422 = vadd.f32 %v1164, %v1412
  %v1423 = vmax.f32 %v1258, %v1278
  %v1424 = vmax.f32 %v1259, %v1279
  %v1425 = vmax.f32 %v1260, %v1280
  %v1426 = vmax.f32 %v1261, %v1281
  %v1427 = vmax.f32 %v1262, %v1282
  %v1428 = vmax.f32 %v1298, %v1318
  %v1429 = vmax.f32 %v1299, %v1319
  %v1430 = vmax.f32 %v1300, %v1320
  %v1431 = vmax.f32 %v1301, %v1321
  %v1432 = vmax.f32 %v1302, %v1322
  %v1433 = vmax.f32 %v1338, %v1358
  %v1434 = vmax.f32 %v1339, %v1359
  %v1435 = vmax.f32 %v1340, %v1360
  %v1436 = vmax.f32 %v1341, %v1361
  %v1437 = vmax.f32 %v1342, %v1362
  %v1438 = vmax.f32 %v1378, %v1398
  %v1439 = vmax.f32 %v1379, %v1399
  %v1440 = vmax.f32 %v1380, %v1400
  %v1441 = vmax.f32 %v1381, %v1401
  %v1442 = vmax.f32 %v1382, %v1402
  %v1443 = vmax.f32 %v1423, %v1428
  %v1444 = vmax.f32 %v1424, %v1429
  %v1445 = vmax.f32 %v1425, %v1430
  %v1446 = vmax.f32 %v1426, %v1431
  %v1447 = vmax.f32 %v1427, %v1432
  %v1448 = vmax.f32 %v1433, %v1438
  %v1449 = vmax.f32 %v1434, %v1439
  %v1450 = vmax.f32 %v1435, %v1440
  %v1451 = vmax.f32 %v1436, %v1441
  %v1452 = vmax.f32 %v1437, %v1442
  %v1453 = vmax.f32 %v1443, %v1448
  %v1454 = vmax.f32 %v1444, %v1449
  %v1455 = vmax.f32 %v1445, %v1450
  %v1456 = vmax.f32 %v1446, %v1451
  %v1457 = vmax.f32 %v1447, %v1452
  %v1458 = vmax.f32 %v1453, %v1418
  %v1459 = vmax.f32 %v1454, %v1419
  %v1460 = vmax.f32 %v1455, %v1420
  %v1461 = vmax.f32 %v1456, %v1421
  %v1462 = vmax.f32 %v1457, %v1422
  %1463 = vrot.lane.b32.xlu0 %v973, 24
  %v1464 = vpop.permute.xlu0 %1463
  %v1466 = vadd.f32 %v1458, %v1464
  %v1467 = vadd.f32 %v1459, %v1464
  %v1468 = vadd.f32 %v1460, %v1464
  %v1469 = vadd.f32 %v1461, %v1464
  %v1470 = vadd.f32 %v1462, %v1464
  %v1471 = vmax.f32 %v1466, 0.0
  %v1472 = vmax.f32 %v1467, 0.0
  %v1473 = vmax.f32 %v1468, 0.0
  %v1474 = vmax.f32 %v1469, 0.0
  %v1475 = vmax.f32 %v1470, 0.0
  %1481 = vrot.lane.b32.xlu0 %v1238, 120
  %v1482 = vpop.permute.xlu0 %1481
  %1483 = vrot.lane.b32.xlu0 %v1239, 120
  %v1484 = vpop.permute.xlu0 %1483
  %1485 = vrot.lane.b32.xlu0 %v1240, 120
  %v1486 = vpop.permute.xlu0 %1485
  %1487 = vrot.lane.b32.xlu0 %v1241, 120
  %v1488 = vpop.permute.xlu0 %1487
  %1489 = vrot.lane.b32.xlu0 %v1242, 120
  %v1490 = vpop.permute.xlu0 %1489
  %1501 = vrot.lane.b32.xlu0 %v1471, 104
  %v1502 = vpop.permute.xlu0 %1501
  %1503 = vrot.lane.b32.xlu0 %v1472, 104
  %v1504 = vpop.permute.xlu0 %1503
  %1505 = vrot.lane.b32.xlu0 %v1473, 104
  %v1506 = vpop.permute.xlu0 %1505
  %1507 = vrot.lane.b32.xlu0 %v1474, 104
  %v1508 = vpop.permute.xlu0 %1507
  %1509 = vrot.lane.b32.xlu0 %v1475, 104
  %v1510 = vpop.permute.xlu0 %1509
  %vm1516 = vcmask 64512
  %v1517 = vsel %vm1516, %v980, %v1482
  %v1518 = vsel %vm1516, %v981, %v1484
  %v1519 = vsel %vm1516, %v982, %v1486
  %v1520 = vsel %vm1516, %v983, %v1488
  %v1521 = vsel %vm1516, %v984, %v1490
  %v1522 = vsel %vm97, %v1517, %v1502
  %v1523 = vsel %vm97, %v1518, %v1504
  %v1524 = vsel %vm97, %v1519, %v1506
  %v1525 = vsel %vm97, %v1520, %v1508
  %v1526 = vsel %vm97, %v1521, %v1510
  %v1527 = vld [vmem:[%s3] sm:$0xff]
  %v1528 = vld [vmem:[%s3 + $0x8] sm:$0xff]
  %v1529 = vld [vmem:[%s3 + $0x10] sm:$0xff]
  %v1530 = vld [vmem:[%s4] sm:$0x1]
  %v1532 = vlaneseq
  %v1533 = vshrl.u32 %v1532, 7
  %v1534 = vsub.s32 0, %v1533
  %v1535 = vrot.slane %v1530, %v1534
  %vm1537 = vcmask 195584
  %v1539 = vsel %vm1537, %v1522, 0
  %v1542 = vsel %vm1537, %v1523, 0
  %v1545 = vsel %vm1537, %v1524, 0
  %v1548 = vsel %vm1537, %v1525, 0
  %v1551 = vsel %vm1537, %v1526, 0
  %1553 = vmatprep.subr.mxu0 0.0
  %1554 = vmatpush1.msra.mxu0 %v1527
  %1555 = vmatprep.subr.mxu0 0.0
  %1556 = vmatpush1.msra.mxu0 %v1528
  %1557 = vmatprep.subr.mxu0 0.0
  %1558 = vmatpush1.msra.mxu0 %v1529
  %1559 = vmatprep.subr.mxu0 0.0
  %1560 = vmatpush1.msra.mxu0 0.0
  %1561 = vmatprep.subr.mxu0 0.0
  %1562 = vmatpush1.msra.mxu0 0.0
  %1563 = vmatprep.subr.mxu0 0.0
  %1564 = vmatpush1.msra.mxu0 0.0
  %1565 = vmatprep.subr.mxu0 0.0
  %1566 = vmatpush1.msra.mxu0 0.0
  %1567 = vmatprep.subr.mxu0 0.0
  %1568 = vmatpush1.msra.mxu0 0.0
  %1569 = vmatprep.subr.mxu0 0.0
  %1570 = vmatpush1.msra.mxu0 0.0
  %1571 = vmatprep.subr.mxu0 0.0
  %1572 = vmatpush1.msra.mxu0 0.0
  %1573 = vmatprep.subr.mxu0 0.0
  %1574 = vmatpush1.msra.mxu0 0.0
  %1575 = vmatprep.subr.mxu0 0.0
  %1576 = vmatpush1.msra.mxu0 0.0
  %1577 = vmatprep.subr.mxu0 0.0
  %1578 = vmatpush1.msra.mxu0 0.0
  %1579 = vmatprep.subr.mxu0 0.0
  %1580 = vmatpush1.msra.mxu0 0.0
  %1581 = vmatprep.subr.mxu0 0.0
  %1582 = vmatpush1.msra.mxu0 0.0
  %1583 = vmatprep.subr.mxu0 0.0
  %1584 = vmatpush1.msra.mxu0 0.0
  %1585 = vmatprep.subr.mxu0 0.0
  %1586 = vmatpush1.msra.mxu0 0.0
  %1587 = vmatprep.subr.mxu0 0.0
  %1588 = vmatpush1.msra.mxu0 0.0
  %1589 = vmatprep.subr.mxu0 0.0
  %1590 = vmatpush1.msra.mxu0 0.0
  %1591 = vmatprep.subr.mxu0 0.0
  %1592 = vmatpush1.msra.mxu0 0.0
  %1593 = vmatprep.subr.mxu0 0.0
  %1594 = vmatpush1.msra.mxu0 0.0
  %1595 = vmatprep.subr.mxu0 0.0
  %1596 = vmatpush1.msra.mxu0 0.0
  %1597 = vmatprep.subr.mxu0 0.0
  %1598 = vmatpush1.msra.mxu0 0.0
  %1599 = vmatprep.subr.mxu0 0.0
  %1600 = vmatpush1.msra.mxu0 0.0
  %1601 = vmatprep.subr.mxu0 0.0
  %1602 = vmatpush1.msra.mxu0 0.0
  %1603 = vmatprep.subr.mxu0 0.0
  %1604 = vmatpush1.msra.mxu0 0.0
  %1605 = vmatprep.subr.mxu0 0.0
  %1606 = vmatpush1.msra.mxu0 0.0
  %1607 = vmatprep.subr.mxu0 0.0
  %1608 = vmatpush1.msra.mxu0 0.0
  %1609 = vmatprep.subr.mxu0 0.0
  %1610 = vmatpush1.msra.mxu0 0.0
  %1611 = vmatprep.subr.mxu0 0.0
  %1612 = vmatpush1.msra.mxu0 0.0
  %1613 = vmatprep.subr.mxu0 0.0
  %1614 = vmatpush1.msra.mxu0 0.0
  %1615 = vmatprep.subr.mxu0 0.0
  %1616 = vmatpush1.msra.mxu0 0.0
  %1617 = vmatprep.mubr.f32.mxu0 0.0
  %1618 = vmatmul.mubr.f32.gmra.mrb[0].mxu0 %v1539
  %v1619 = vpop.f32.mrb[0].mxu0
  %v1620 = vadd.f32 %v1535, %v1619
  %v1621 = vpop.f32.mrb[0].mxu0
  %1622 = vmatprep.mubr.f32.mxu0 0.0
  %1623 = vmatmul.mubr.f32.gmra.mrb[0].mxu0 %v1542
  %v1624 = vpop.f32.mrb[0].mxu0
  %v1625 = vadd.f32 %v1535, %v1624
  %v1626 = vpop.f32.mrb[0].mxu0
  %1627 = vmatprep.mubr.f32.mxu0 0.0
  %1628 = vmatmul.mubr.f32.gmra.mrb[0].mxu0 %v1545
  %v1629 = vpop.f32.mrb[0].mxu0
  %v1630 = vadd.f32 %v1535, %v1629
  %v1631 = vpop.f32.mrb[0].mxu0
  %1632 = vmatprep.mubr.f32.mxu0 0.0
  %1633 = vmatmul.mubr.f32.gmra.mrb[0].mxu0 %v1548
  %v1634 = vpop.f32.mrb[0].mxu0
  %v1635 = vadd.f32 %v1535, %v1634
  %v1636 = vpop.f32.mrb[0].mxu0
  %1637 = vmatprep.mubr.f32.mxu0 0.0
  %1638 = vmatmul.mubr.f32.gmra.mrb[0].mxu0 %v1551
  %v1639 = vpop.f32.mrb[0].mxu0
  %v1640 = vadd.f32 %v1535, %v1639
  %v1641 = vpop.f32.mrb[0].mxu0
  %1642 = vdwg.mxu0
  %v1643 = vld [vmem:[%s5] sm:$0xff]
  %v1644 = vld [vmem:[%s5 + $0x8] sm:$0xff]
  %v1645 = vld [vmem:[%s6] sm:$0xff]
  %v1646 = vld [vmem:[%s6 + $0x8] sm:$0xff]
  %v1648 = vsel %vm97, 0.0, 0
  %1650 = vmatprep.subr.mxu0 0.0
  %1651 = vmatpush1.msra.mxu0 %v1643
  %1652 = vmatprep.subr.mxu0 0.0
  %1653 = vmatpush1.msra.mxu0 %v1644
  %1654 = vmatprep.subr.mxu0 0.0
  %1655 = vmatpush1.msra.mxu0 0.0
  %1656 = vmatprep.subr.mxu0 0.0
  %1657 = vmatpush1.msra.mxu0 0.0
  %1658 = vmatprep.subr.mxu0 0.0
  %1659 = vmatpush1.msra.mxu0 0.0
  %1660 = vmatprep.subr.mxu0 0.0
  %1661 = vmatpush1.msra.mxu0 0.0
  %1662 = vmatprep.subr.mxu0 0.0
  %1663 = vmatpush1.msra.mxu0 0.0
  %1664 = vmatprep.subr.mxu0 0.0
  %1665 = vmatpush1.msra.mxu0 0.0
  %1666 = vmatprep.subr.mxu0 0.0
  %1667 = vmatpush1.msra.mxu0 0.0
  %1668 = vmatprep.subr.mxu0 0.0
  %1669 = vmatpush1.msra.mxu0 0.0
  %1670 = vmatprep.subr.mxu0 0.0
  %1671 = vmatpush1.msra.mxu0 0.0
  %1672 = vmatprep.subr.mxu0 0.0
  %1673 = vmatpush1.msra.mxu0 0.0
  %1674 = vmatprep.subr.mxu0 0.0
  %1675 = vmatpush1.msra.mxu0 0.0
  %1676 = vmatprep.subr.mxu0 0.0
  %1677 = vmatpush1.msra.mxu0 0.0
  %1678 = vmatprep.subr.mxu0 0.0
  %1679 = vmatpush1.msra.mxu0 0.0
  %1680 = vmatprep.subr.mxu0 0.0
  %1681 = vmatpush1.msra.mxu0 0.0
  %1682 = vmatprep.subr.mxu0 0.0
  %1683 = vmatpush1.msra.mxu0 0.0
  %1684 = vmatprep.subr.mxu0 0.0
  %1685 = vmatpush1.msra.mxu0 0.0
  %1686 = vmatprep.subr.mxu0 0.0
  %1687 = vmatpush1.msra.mxu0 0.0
  %1688 = vmatprep.subr.mxu0 0.0
  %1689 = vmatpush1.msra.mxu0 0.0
  %1690 = vmatprep.subr.mxu0 0.0
  %1691 = vmatpush1.msra.mxu0 0.0
  %1692 = vmatprep.subr.mxu0 0.0
  %1693 = vmatpush1.msra.mxu0 0.0
  %1694 = vmatprep.subr.mxu0 0.0
  %1695 = vmatpush1.msra.mxu0 0.0
  %1696 = vmatprep.subr.mxu0 0.0
  %1697 = vmatpush1.msra.mxu0 0.0
  %1698 = vmatprep.subr.mxu0 0.0
  %1699 = vmatpush1.msra.mxu0 0.0
  %1700 = vmatprep.subr.mxu0 0.0
  %1701 = vmatpush1.msra.mxu0 0.0
  %1702 = vmatprep.subr.mxu0 0.0
  %1703 = vmatpush1.msra.mxu0 0.0
  %1704 = vmatprep.subr.mxu0 0.0
  %1705 = vmatpush1.msra.mxu0 0.0
  %1706 = vmatprep.subr.mxu0 0.0
  %1707 = vmatpush1.msra.mxu0 0.0
  %1708 = vmatprep.subr.mxu0 0.0
  %1709 = vmatpush1.msra.mxu0 0.0
  %1710 = vmatprep.subr.mxu0 0.0
  %1711 = vmatpush1.msra.mxu0 0.0
  %1712 = vmatprep.subr.mxu0 0.0
  %1713 = vmatpush1.msra.mxu0 0.0
  %1714 = vmatprep.mubr.f32.mxu0 0.0
  %1715 = vmatmul.mubr.f32.gmra.mrb[0].mxu0 %v1648
  %v1716 = vpop.f32.mrb[0].mxu0
  %v1717 = vadd.f32 0.0, %v1716
  %v1718 = vpop.f32.mrb[0].mxu0
  %1719 = vdwg.mxu0
  %v1720 = vadd.f32 %v1620, %v1717
  %v1721 = vxor.u32 %v1720, 2147483648
  %v1722 = vmul.f32 %v1721, 1.442695
  %v1723 = vpow.pop %v1722
  %v1724 = vadd.f32 %v1723, 1.0
  %v1725 = vrcp.pop %v1724
  %v1726 = vmul.f32 1.0, %v1725
  %v1727 = vtanh.pop %v1720
  %v1728 = vmul.f32 %v1726, 0.0
  %1730 = vrot.lane.b32.xlu0 %v1727, 96
  %v1731 = vpop.permute.xlu0 %1730
  %v1733 = vmul.f32 %v1726, %v1731
  %1735 = vrot.lane.b32.xlu0 %v1733, 16
  %v1736 = vpop.permute.xlu0 %1735
  %v1738 = vadd.f32 %v1728, %v1736
  %v1739 = vtanh.pop %v1738
  %1741 = vrot.lane.b32.xlu0 %v1739, 32
  %v1742 = vpop.permute.xlu0 %1741
  %v1744 = vmul.f32 %v1726, %v1742
  %1745 = vmatprep.subr.mxu0 0.0
  %1746 = vmatpush1.msra.mxu0 %v1645
  %1747 = vmatprep.subr.mxu0 0.0
  %1748 = vmatpush1.msra.mxu0 %v1646
  %1749 = vmatprep.subr.mxu0 0.0
  %1750 = vmatpush1.msra.mxu0 0.0
  %1751 = vmatprep.subr.mxu0 0.0
  %1752 = vmatpush1.msra.mxu0 0.0
  %1753 = vmatprep.subr.mxu0 0.0
  %1754 = vmatpush1.msra.mxu0 0.0
  %1755 = vmatprep.subr.mxu0 0.0
  %1756 = vmatpush1.msra.mxu0 0.0
  %1757 = vmatprep.subr.mxu0 0.0
  %1758 = vmatpush1.msra.mxu0 0.0
  %1759 = vmatprep.subr.mxu0 0.0
  %1760 = vmatpush1.msra.mxu0 0.0
  %1761 = vmatprep.subr.mxu0 0.0
  %1762 = vmatpush1.msra.mxu0 0.0
  %1763 = vmatprep.subr.mxu0 0.0
  %1764 = vmatpush1.msra.mxu0 0.0
  %1765 = vmatprep.subr.mxu0 0.0
  %1766 = vmatpush1.msra.mxu0 0.0
  %1767 = vmatprep.subr.mxu0 0.0
  %1768 = vmatpush1.msra.mxu0 0.0
  %1769 = vmatprep.subr.mxu0 0.0
  %1770 = vmatpush1.msra.mxu0 0.0
  %1771 = vmatprep.subr.mxu0 0.0
  %1772 = vmatpush1.msra.mxu0 0.0
  %1773 = vmatprep.subr.mxu0 0.0
  %1774 = vmatpush1.msra.mxu0 0.0
  %1775 = vmatprep.subr.mxu0 0.0
  %1776 = vmatpush1.msra.mxu0 0.0
  %1777 = vmatprep.subr.mxu0 0.0
  %1778 = vmatpush1.msra.mxu0 0.0
  %1779 = vmatprep.subr.mxu0 0.0
  %1780 = vmatpush1.msra.mxu0 0.0
  %1781 = vmatprep.subr.mxu0 0.0
  %1782 = vmatpush1.msra.mxu0 0.0
  %1783 = vmatprep.subr.mxu0 0.0
  %1784 = vmatpush1.msra.mxu0 0.0
  %1785 = vmatprep.subr.mxu0 0.0
  %1786 = vmatpush1.msra.mxu0 0.0
  %1787 = vmatprep.subr.mxu0 0.0
  %1788 = vmatpush1.msra.mxu0 0.0
  %1789 = vmatprep.subr.mxu0 0.0
  %1790 = vmatpush1.msra.mxu0 0.0
  %1791 = vmatprep.subr.mxu0 0.0
  %1792 = vmatpush1.msra.mxu0 0.0
  %1793 = vmatprep.subr.mxu0 0.0
  %1794 = vmatpush1.msra.mxu0 0.0
  %1795 = vmatprep.subr.mxu0 0.0
  %1796 = vmatpush1.msra.mxu0 0.0
  %1797 = vmatprep.subr.mxu0 0.0
  %1798 = vmatpush1.msra.mxu0 0.0
  %1799 = vmatprep.subr.mxu0 0.0
  %1800 = vmatpush1.msra.mxu0 0.0
  %1801 = vmatprep.subr.mxu0 0.0
  %1802 = vmatpush1.msra.mxu0 0.0
  %1803 = vmatprep.subr.mxu0 0.0
  %1804 = vmatpush1.msra.mxu0 0.0
  %1805 = vmatprep.subr.mxu0 0.0
  %1806 = vmatpush1.msra.mxu0 0.0
  %1807 = vmatprep.subr.mxu0 0.0
  %1808 = vmatpush1.msra.mxu0 0.0
  %1809 = vmatprep.mubr.f32.mxu0 0.0
  %1810 = vmatmul.mubr.f32.gmra.mrb[0].mxu0 %v1648
  %v1811 = vpop.f32.mrb[0].mxu0
  %v1812 = vadd.f32 0.0, %v1811
  %v1813 = vpop.f32.mrb[0].mxu0
  %1814 = vdwg.mxu0
  %1816 = vrot.lane.b32.xlu0 %v1812, 64
  %v1817 = vpop.permute.xlu0 %1816
  %v1819 = vadd.f32 %v1640, %v1817
  %v1820 = vxor.u32 %v1819, 2147483648
  %v1821 = vmul.f32 %v1820, 1.442695
  %v1822 = vpow.pop %v1821
  %v1823 = vadd.f32 %v1822, 1.0
  %v1824 = vrcp.pop %v1823
  %v1825 = vmul.f32 1.0, %v1824
  %v1826 = vtanh.pop %v1819
  %v1827 = vmul.f32 %v1825, 0.0
  %1829 = vrot.lane.b32.xlu0 %v1826, 96
  %v1830 = vpop.permute.xlu0 %1829
  %v1832 = vmul.f32 %v1825, %v1830
  %1834 = vrot.lane.b32.xlu0 %v1832, 16
  %v1835 = vpop.permute.xlu0 %1834
  %v1837 = vadd.f32 %v1827, %v1835
  %v1838 = vtanh.pop %v1837
  %1840 = vrot.lane.b32.xlu0 %v1838, 32
  %v1841 = vpop.permute.xlu0 %1840
  %v1843 = vmul.f32 %v1825, %v1841
  %1845 = vrot.lane.b32.xlu0 %v1744, 80
  %v1846 = vpop.permute.xlu0 %1845
  %v1847 = vsel %vm97, %v1846, 0
  %1849 = vmatprep.subr.mxu0 0.0
  %1850 = vmatpush1.msra.mxu0 %v1643
  %1851 = vmatprep.subr.mxu0 0.0
  %1852 = vmatpush1.msra.mxu0 %v1644
  %1853 = vmatprep.subr.mxu0 0.0
  %1854 = vmatpush1.msra.mxu0 0.0
  %1855 = vmatprep.subr.mxu0 0.0
  %1856 = vmatpush1.msra.mxu0 0.0
  %1857 = vmatprep.subr.mxu0 0.0
  %1858 = vmatpush1.msra.mxu0 0.0
  %1859 = vmatprep.subr.mxu0 0.0
  %1860 = vmatpush1.msra.mxu0 0.0
  %1861 = vmatprep.subr.mxu0 0.0
  %1862 = vmatpush1.msra.mxu0 0.0
  %1863 = vmatprep.subr.mxu0 0.0
  %1864 = vmatpush1.msra.mxu0 0.0
  %1865 = vmatprep.subr.mxu0 0.0
  %1866 = vmatpush1.msra.mxu0 0.0
  %1867 = vmatprep.subr.mxu0 0.0
  %1868 = vmatpush1.msra.mxu0 0.0
  %1869 = vmatprep.subr.mxu0 0.0
  %1870 = vmatpush1.msra.mxu0 0.0
  %1871 = vmatprep.subr.mxu0 0.0
  %1872 = vmatpush1.msra.mxu0 0.0
  %1873 = vmatprep.subr.mxu0 0.0
  %1874 = vmatpush1.msra.mxu0 0.0
  %1875 = vmatprep.subr.mxu0 0.0
  %1876 = vmatpush1.msra.mxu0 0.0
  %1877 = vmatprep.subr.mxu0 0.0
  %1878 = vmatpush1.msra.mxu0 0.0
  %1879 = vmatprep.subr.mxu0 0.0
  %1880 = vmatpush1.msra.mxu0 0.0
  %1881 = vmatprep.subr.mxu0 0.0
  %1882 = vmatpush1.msra.mxu0 0.0
  %1883 = vmatprep.subr.mxu0 0.0
  %1884 = vmatpush1.msra.mxu0 0.0
  %1885 = vmatprep.subr.mxu0 0.0
  %1886 = vmatpush1.msra.mxu0 0.0
  %1887 = vmatprep.subr.mxu0 0.0
  %1888 = vmatpush1.msra.mxu0 0.0
  %1889 = vmatprep.subr.mxu0 0.0
  %1890 = vmatpush1.msra.mxu0 0.0
  %1891 = vmatprep.subr.mxu0 0.0
  %1892 = vmatpush1.msra.mxu0 0.0
  %1893 = vmatprep.subr.mxu0 0.0
  %1894 = vmatpush1.msra.mxu0 0.0
  %1895 = vmatprep.subr.mxu0 0.0
  %1896 = vmatpush1.msra.mxu0 0.0
  %1897 = vmatprep.subr.mxu0 0.0
  %1898 = vmatpush1.msra.mxu0 0.0
  %1899 = vmatprep.subr.mxu0 0.0
  %1900 = vmatpush1.msra.mxu0 0.0
  %1901 = vmatprep.subr.mxu0 0.0
  %1902 = vmatpush1.msra.mxu0 0.0
  %1903 = vmatprep.subr.mxu0 0.0
  %1904 = vmatpush1.msra.mxu0 0.0
  %1905 = vmatprep.subr.mxu0 0.0
  %1906 = vmatpush1.msra.mxu0 0.0
  %1907 = vmatprep.subr.mxu0 0.0
  %1908 = vmatpush1.msra.mxu0 0.0
  %1909 = vmatprep.subr.mxu0 0.0
  %1910 = vmatpush1.msra.mxu0 0.0
  %1911 = vmatprep.subr.mxu0 0.0
  %1912 = vmatpush1.msra.mxu0 0.0
  %1913 = vmatprep.mubr.f32.mxu0 0.0
  %1914 = vmatmul.mubr.f32.gmra.mrb[0].mxu0 %v1847
  %v1915 = vpop.f32.mrb[0].mxu0
  %v1916 = vadd.f32 0.0, %v1915
  %v1917 = vpop.f32.mrb[0].mxu0
  %1918 = vdwg.mxu0
  %v1919 = vadd.f32 %v1625, %v1916
  %v1920 = vxor.u32 %v1919, 2147483648
  %v1921 = vmul.f32 %v1920, 1.442695
  %v1922 = vpow.pop %v1921
  %v1923 = vadd.f32 %v1922, 1.0
  %v1924 = vrcp.pop %v1923
  %v1925 = vmul.f32 1.0, %v1924
  %v1926 = vtanh.pop %v1919
  %v1927 = vmul.f32 %v1925, %v1738
  %1929 = vrot.lane.b32.xlu0 %v1926, 96
  %v1930 = vpop.permute.xlu0 %1929
  %v1932 = vmul.f32 %v1925, %v1930
  %1934 = vrot.lane.b32.xlu0 %v1932, 16
  %v1935 = vpop.permute.xlu0 %1934
  %v1937 = vadd.f32 %v1927, %v1935
  %v1938 = vtanh.pop %v1937
  %1940 = vrot.lane.b32.xlu0 %v1938, 32
  %v1941 = vpop.permute.xlu0 %1940
  %v1943 = vmul.f32 %v1925, %v1941
  %1945 = vrot.lane.b32.xlu0 %v1843, 16
  %v1946 = vpop.permute.xlu0 %1945
  %v1947 = vsel %vm97, %v1946, 0
  %1949 = vmatprep.subr.mxu0 0.0
  %1950 = vmatpush1.msra.mxu0 %v1645
  %1951 = vmatprep.subr.mxu0 0.0
  %1952 = vmatpush1.msra.mxu0 %v1646
  %1953 = vmatprep.subr.mxu0 0.0
  %1954 = vmatpush1.msra.mxu0 0.0
  %1955 = vmatprep.subr.mxu0 0.0
  %1956 = vmatpush1.msra.mxu0 0.0
  %1957 = vmatprep.subr.mxu0 0.0
  %1958 = vmatpush1.msra.mxu0 0.0
  %1959 = vmatprep.subr.mxu0 0.0
  %1960 = vmatpush1.msra.mxu0 0.0
  %1961 = vmatprep.subr.mxu0 0.0
  %1962 = vmatpush1.msra.mxu0 0.0
  %1963 = vmatprep.subr.mxu0 0.0
  %1964 = vmatpush1.msra.mxu0 0.0
  %1965 = vmatprep.subr.mxu0 0.0
  %1966 = vmatpush1.msra.mxu0 0.0
  %1967 = vmatprep.subr.mxu0 0.0
  %1968 = vmatpush1.msra.mxu0 0.0
  %1969 = vmatprep.subr.mxu0 0.0
  %1970 = vmatpush1.msra.mxu0 0.0
  %1971 = vmatprep.subr.mxu0 0.0
  %1972 = vmatpush1.msra.mxu0 0.0
  %1973 = vmatprep.subr.mxu0 0.0
  %1974 = vmatpush1.msra.mxu0 0.0
  %1975 = vmatprep.subr.mxu0 0.0
  %1976 = vmatpush1.msra.mxu0 0.0
  %1977 = vmatprep.subr.mxu0 0.0
  %1978 = vmatpush1.msra.mxu0 0.0
  %1979 = vmatprep.subr.mxu0 0.0
  %1980 = vmatpush1.msra.mxu0 0.0
  %1981 = vmatprep.subr.mxu0 0.0
  %1982 = vmatpush1.msra.mxu0 0.0
  %1983 = vmatprep.subr.mxu0 0.0
  %1984 = vmatpush1.msra.mxu0 0.0
  %1985 = vmatprep.subr.mxu0 0.0
  %1986 = vmatpush1.msra.mxu0 0.0
  %1987 = vmatprep.subr.mxu0 0.0
  %1988 = vmatpush1.msra.mxu0 0.0
  %1989 = vmatprep.subr.mxu0 0.0
  %1990 = vmatpush1.msra.mxu0 0.0
  %1991 = vmatprep.subr.mxu0 0.0
  %1992 = vmatpush1.msra.mxu0 0.0
  %1993 = vmatprep.subr.mxu0 0.0
  %1994 = vmatpush1.msra.mxu0 0.0
  %1995 = vmatprep.subr.mxu0 0.0
  %1996 = vmatpush1.msra.mxu0 0.0
  %1997 = vmatprep.subr.mxu0 0.0
  %1998 = vmatpush1.msra.mxu0 0.0
  %1999 = vmatprep.subr.mxu0 0.0
  %2000 = vmatpush1.msra.mxu0 0.0
  %2001 = vmatprep.subr.mxu0 0.0
  %2002 = vmatpush1.msra.mxu0 0.0
  %2003 = vmatprep.subr.mxu0 0.0
  %2004 = vmatpush1.msra.mxu0 0.0
  %2005 = vmatprep.subr.mxu0 0.0
  %2006 = vmatpush1.msra.mxu0 0.0
  %2007 = vmatprep.subr.mxu0 0.0
  %2008 = vmatpush1.msra.mxu0 0.0
  %2009 = vmatprep.subr.mxu0 0.0
  %2010 = vmatpush1.msra.mxu0 0.0
  %2011 = vmatprep.subr.mxu0 0.0
  %2012 = vmatpush1.msra.mxu0 0.0
  %2013 = vmatprep.mubr.f32.mxu0 0.0
  %2014 = vmatmul.mubr.f32.gmra.mrb[0].mxu0 %v1947
  %v2015 = vpop.f32.mrb[0].mxu0
  %v2016 = vadd.f32 0.0, %v2015
  %v2017 = vpop.f32.mrb[0].mxu0
  %2018 = vdwg.mxu0
  %2020 = vrot.lane.b32.xlu0 %v2016, 64
  %v2021 = vpop.permute.xlu0 %2020
  %v2023 = vadd.f32 %v1635, %v2021
  %v2024 = vxor.u32 %v2023, 2147483648
  %v2025 = vmul.f32 %v2024, 1.442695
  %v2026 = vpow.pop %v2025
  %v2027 = vadd.f32 %v2026, 1.0
  %v2028 = vrcp.pop %v2027
  %v2029 = vmul.f32 1.0, %v2028
  %v2030 = vtanh.pop %v2023
  %v2031 = vmul.f32 %v2029, %v1837
  %2033 = vrot.lane.b32.xlu0 %v2030, 96
  %v2034 = vpop.permute.xlu0 %2033
  %v2036 = vmul.f32 %v2029, %v2034
  %2038 = vrot.lane.b32.xlu0 %v2036, 16
  %v2039 = vpop.permute.xlu0 %2038
  %v2041 = vadd.f32 %v2031, %v2039
  %v2042 = vtanh.pop %v2041
  %2044 = vrot.lane.b32.xlu0 %v2042, 32
  %v2045 = vpop.permute.xlu0 %2044
  %v2047 = vmul.f32 %v2029, %v2045
  %2049 = vrot.lane.b32.xlu0 %v1943, 80
  %v2050 = vpop.permute.xlu0 %2049
  %v2051 = vsel %vm97, %v2050, 0
  %2053 = vmatprep.subr.mxu0 0.0
  %2054 = vmatpush1.msra.mxu0 %v1643
  %2055 = vmatprep.subr.mxu0 0.0
  %2056 = vmatpush1.msra.mxu0 %v1644
  %2057 = vmatprep.subr.mxu0 0.0
  %2058 = vmatpush1.msra.mxu0 0.0
  %2059 = vmatprep.subr.mxu0 0.0
  %2060 = vmatpush1.msra.mxu0 0.0
  %2061 = vmatprep.subr.mxu0 0.0
  %2062 = vmatpush1.msra.mxu0 0.0
  %2063 = vmatprep.subr.mxu0 0.0
  %2064 = vmatpush1.msra.mxu0 0.0
  %2065 = vmatprep.subr.mxu0 0.0
  %2066 = vmatpush1.msra.mxu0 0.0
  %2067 = vmatprep.subr.mxu0 0.0
  %2068 = vmatpush1.msra.mxu0 0.0
  %2069 = vmatprep.subr.mxu0 0.0
  %2070 = vmatpush1.msra.mxu0 0.0
  %2071 = vmatprep.subr.mxu0 0.0
  %2072 = vmatpush1.msra.mxu0 0.0
  %2073 = vmatprep.subr.mxu0 0.0
  %2074 = vmatpush1.msra.mxu0 0.0
  %2075 = vmatprep.subr.mxu0 0.0
  %2076 = vmatpush1.msra.mxu0 0.0
  %2077 = vmatprep.subr.mxu0 0.0
  %2078 = vmatpush1.msra.mxu0 0.0
  %2079 = vmatprep.subr.mxu0 0.0
  %2080 = vmatpush1.msra.mxu0 0.0
  %2081 = vmatprep.subr.mxu0 0.0
  %2082 = vmatpush1.msra.mxu0 0.0
  %2083 = vmatprep.subr.mxu0 0.0
  %2084 = vmatpush1.msra.mxu0 0.0
  %2085 = vmatprep.subr.mxu0 0.0
  %2086 = vmatpush1.msra.mxu0 0.0
  %2087 = vmatprep.subr.mxu0 0.0
  %2088 = vmatpush1.msra.mxu0 0.0
  %2089 = vmatprep.subr.mxu0 0.0
  %2090 = vmatpush1.msra.mxu0 0.0
  %2091 = vmatprep.subr.mxu0 0.0
  %2092 = vmatpush1.msra.mxu0 0.0
  %2093 = vmatprep.subr.mxu0 0.0
  %2094 = vmatpush1.msra.mxu0 0.0
  %2095 = vmatprep.subr.mxu0 0.0
  %2096 = vmatpush1.msra.mxu0 0.0
  %2097 = vmatprep.subr.mxu0 0.0
  %2098 = vmatpush1.msra.mxu0 0.0
  %2099 = vmatprep.subr.mxu0 0.0
  %2100 = vmatpush1.msra.mxu0 0.0
  %2101 = vmatprep.subr.mxu0 0.0
  %2102 = vmatpush1.msra.mxu0 0.0
  %2103 = vmatprep.subr.mxu0 0.0
  %2104 = vmatpush1.msra.mxu0 0.0
  %2105 = vmatprep.subr.mxu0 0.0
  %2106 = vmatpush1.msra.mxu0 0.0
  %2107 = vmatprep.subr.mxu0 0.0
  %2108 = vmatpush1.msra.mxu0 0.0
  %2109 = vmatprep.subr.mxu0 0.0
  %2110 = vmatpush1.msra.mxu0 0.0
  %2111 = vmatprep.subr.mxu0 0.0
  %2112 = vmatpush1.msra.mxu0 0.0
  %2113 = vmatprep.subr.mxu0 0.0
  %2114 = vmatpush1.msra.mxu0 0.0
  %2115 = vmatprep.subr.mxu0 0.0
  %2116 = vmatpush1.msra.mxu0 0.0
  %2117 = vmatprep.mubr.f32.mxu0 0.0
  %2118 = vmatmul.mubr.f32.gmra.mrb[0].mxu0 %v2051
  %v2119 = vpop.f32.mrb[0].mxu0
  %v2120 = vadd.f32 0.0, %v2119
  %v2121 = vpop.f32.mrb[0].mxu0
  %2122 = vdwg.mxu0
  %v2123 = vadd.f32 %v1630, %v2120
  %v2124 = vxor.u32 %v2123, 2147483648
  %v2125 = vmul.f32 %v2124, 1.442695
  %v2126 = vpow.pop %v2125
  %v2127 = vadd.f32 %v2126, 1.0
  %v2128 = vrcp.pop %v2127
  %v2129 = vmul.f32 1.0, %v2128
  %v2130 = vtanh.pop %v2123
  %v2131 = vmul.f32 %v2129, %v1937
  %2133 = vrot.lane.b32.xlu0 %v2130, 96
  %v2134 = vpop.permute.xlu0 %2133
  %v2136 = vmul.f32 %v2129, %v2134
  %2138 = vrot.lane.b32.xlu0 %v2136, 16
  %v2139 = vpop.permute.xlu0 %2138
  %v2141 = vadd.f32 %v2131, %v2139
  %v2142 = vtanh.pop %v2141
  %2144 = vrot.lane.b32.xlu0 %v2142, 32
  %v2145 = vpop.permute.xlu0 %2144
  %v2147 = vmul.f32 %v2129, %v2145
  %2149 = vrot.lane.b32.xlu0 %v2047, 16
  %v2150 = vpop.permute.xlu0 %2149
  %v2151 = vsel %vm97, %v2150, 0
  %2153 = vmatprep.subr.mxu0 0.0
  %2154 = vmatpush1.msra.mxu0 %v1645
  %2155 = vmatprep.subr.mxu0 0.0
  %2156 = vmatpush1.msra.mxu0 %v1646
  %2157 = vmatprep.subr.mxu0 0.0
  %2158 = vmatpush1.msra.mxu0 0.0
  %2159 = vmatprep.subr.mxu0 0.0
  %2160 = vmatpush1.msra.mxu0 0.0
  %2161 = vmatprep.subr.mxu0 0.0
  %2162 = vmatpush1.msra.mxu0 0.0
  %2163 = vmatprep.subr.mxu0 0.0
  %2164 = vmatpush1.msra.mxu0 0.0
  %2165 = vmatprep.subr.mxu0 0.0
  %2166 = vmatpush1.msra.mxu0 0.0
  %2167 = vmatprep.subr.mxu0 0.0
  %2168 = vmatpush1.msra.mxu0 0.0
  %2169 = vmatprep.subr.mxu0 0.0
  %2170 = vmatpush1.msra.mxu0 0.0
  %2171 = vmatprep.subr.mxu0 0.0
  %2172 = vmatpush1.msra.mxu0 0.0
  %2173 = vmatprep.subr.mxu0 0.0
  %2174 = vmatpush1.msra.mxu0 0.0
  %2175 = vmatprep.subr.mxu0 0.0
  %2176 = vmatpush1.msra.mxu0 0.0
  %2177 = vmatprep.subr.mxu0 0.0
  %2178 = vmatpush1.msra.mxu0 0.0
  %2179 = vmatprep.subr.mxu0 0.0
  %2180 = vmatpush1.msra.mxu0 0.0
  %2181 = vmatprep.subr.mxu0 0.0
  %2182 = vmatpush1.msra.mxu0 0.0
  %2183 = vmatprep.subr.mxu0 0.0
  %2184 = vmatpush1.msra.mxu0 0.0
  %2185 = vmatprep.subr.mxu0 0.0
  %2186 = vmatpush1.msra.mxu0 0.0
  %2187 = vmatprep.subr.mxu0 0.0
  %2188 = vmatpush1.msra.mxu0 0.0
  %2189 = vmatprep.subr.mxu0 0.0
  %2190 = vmatpush1.msra.mxu0 0.0
  %2191 = vmatprep.subr.mxu0 0.0
  %2192 = vmatpush1.msra.mxu0 0.0
  %2193 = vmatprep.subr.mxu0 0.0
  %2194 = vmatpush1.msra.mxu0 0.0
  %2195 = vmatprep.subr.mxu0 0.0
  %2196 = vmatpush1.msra.mxu0 0.0
  %2197 = vmatprep.subr.mxu0 0.0
  %2198 = vmatpush1.msra.mxu0 0.0
  %2199 = vmatprep.subr.mxu0 0.0
  %2200 = vmatpush1.msra.mxu0 0.0
  %2201 = vmatprep.subr.mxu0 0.0
  %2202 = vmatpush1.msra.mxu0 0.0
  %2203 = vmatprep.subr.mxu0 0.0
  %2204 = vmatpush1.msra.mxu0 0.0
  %2205 = vmatprep.subr.mxu0 0.0
  %2206 = vmatpush1.msra.mxu0 0.0
  %2207 = vmatprep.subr.mxu0 0.0
  %2208 = vmatpush1.msra.mxu0 0.0
  %2209 = vmatprep.subr.mxu0 0.0
  %2210 = vmatpush1.msra.mxu0 0.0
  %2211 = vmatprep.subr.mxu0 0.0
  %2212 = vmatpush1.msra.mxu0 0.0
  %2213 = vmatprep.subr.mxu0 0.0
  %2214 = vmatpush1.msra.mxu0 0.0
  %2215 = vmatprep.subr.mxu0 0.0
  %2216 = vmatpush1.msra.mxu0 0.0
  %2217 = vmatprep.mubr.f32.mxu0 0.0
  %2218 = vmatmul.mubr.f32.gmra.mrb[0].mxu0 %v2151
  %v2219 = vpop.f32.mrb[0].mxu0
  %v2220 = vadd.f32 0.0, %v2219
  %v2221 = vpop.f32.mrb[0].mxu0
  %2222 = vdwg.mxu0
  %2224 = vrot.lane.b32.xlu0 %v2220, 64
  %v2225 = vpop.permute.xlu0 %2224
  %v2227 = vadd.f32 %v1630, %v2225
  %v2228 = vxor.u32 %v2227, 2147483648
  %v2229 = vmul.f32 %v2228, 1.442695
  %v2230 = vpow.pop %v2229
  %v2231 = vadd.f32 %v2230, 1.0
  %v2232 = vrcp.pop %v2231
  %v2233 = vmul.f32 1.0, %v2232
  %v2234 = vtanh.pop %v2227
  %v2235 = vmul.f32 %v2233, %v2041
  %2237 = vrot.lane.b32.xlu0 %v2234, 96
  %v2238 = vpop.permute.xlu0 %2237
  %v2240 = vmul.f32 %v2233, %v2238
  %2242 = vrot.lane.b32.xlu0 %v2240, 16
  %v2243 = vpop.permute.xlu0 %2242
  %v2245 = vadd.f32 %v2235, %v2243
  %v2246 = vtanh.pop %v2245
  %2248 = vrot.lane.b32.xlu0 %v2246, 32
  %v2249 = vpop.permute.xlu0 %2248
  %v2251 = vmul.f32 %v2233, %v2249
  %2253 = vrot.lane.b32.xlu0 %v2147, 80
  %v2254 = vpop.permute.xlu0 %2253
  %v2255 = vsel %vm97, %v2254, 0
  %2257 = vmatprep.subr.mxu0 0.0
  %2258 = vmatpush1.msra.mxu0 %v1643
  %2259 = vmatprep.subr.mxu0 0.0
  %2260 = vmatpush1.msra.mxu0 %v1644
  %2261 = vmatprep.subr.mxu0 0.0
  %2262 = vmatpush1.msra.mxu0 0.0
  %2263 = vmatprep.subr.mxu0 0.0
  %2264 = vmatpush1.msra.mxu0 0.0
  %2265 = vmatprep.subr.mxu0 0.0
  %2266 = vmatpush1.msra.mxu0 0.0
  %2267 = vmatprep.subr.mxu0 0.0
  %2268 = vmatpush1.msra.mxu0 0.0
  %2269 = vmatprep.subr.mxu0 0.0
  %2270 = vmatpush1.msra.mxu0 0.0
  %2271 = vmatprep.subr.mxu0 0.0
  %2272 = vmatpush1.msra.mxu0 0.0
  %2273 = vmatprep.subr.mxu0 0.0
  %2274 = vmatpush1.msra.mxu0 0.0
  %2275 = vmatprep.subr.mxu0 0.0
  %2276 = vmatpush1.msra.mxu0 0.0
  %2277 = vmatprep.subr.mxu0 0.0
  %2278 = vmatpush1.msra.mxu0 0.0
  %2279 = vmatprep.subr.mxu0 0.0
  %2280 = vmatpush1.msra.mxu0 0.0
  %2281 = vmatprep.subr.mxu0 0.0
  %2282 = vmatpush1.msra.mxu0 0.0
  %2283 = vmatprep.subr.mxu0 0.0
  %2284 = vmatpush1.msra.mxu0 0.0
  %2285 = vmatprep.subr.mxu0 0.0
  %2286 = vmatpush1.msra.mxu0 0.0
  %2287 = vmatprep.subr.mxu0 0.0
  %2288 = vmatpush1.msra.mxu0 0.0
  %2289 = vmatprep.subr.mxu0 0.0
  %2290 = vmatpush1.msra.mxu0 0.0
  %2291 = vmatprep.subr.mxu0 0.0
  %2292 = vmatpush1.msra.mxu0 0.0
  %2293 = vmatprep.subr.mxu0 0.0
  %2294 = vmatpush1.msra.mxu0 0.0
  %2295 = vmatprep.subr.mxu0 0.0
  %2296 = vmatpush1.msra.mxu0 0.0
  %2297 = vmatprep.subr.mxu0 0.0
  %2298 = vmatpush1.msra.mxu0 0.0
  %2299 = vmatprep.subr.mxu0 0.0
  %2300 = vmatpush1.msra.mxu0 0.0
  %2301 = vmatprep.subr.mxu0 0.0
  %2302 = vmatpush1.msra.mxu0 0.0
  %2303 = vmatprep.subr.mxu0 0.0
  %2304 = vmatpush1.msra.mxu0 0.0
  %2305 = vmatprep.subr.mxu0 0.0
  %2306 = vmatpush1.msra.mxu0 0.0
  %2307 = vmatprep.subr.mxu0 0.0
  %2308 = vmatpush1.msra.mxu0 0.0
  %2309 = vmatprep.subr.mxu0 0.0
  %2310 = vmatpush1.msra.mxu0 0.0
  %2311 = vmatprep.subr.mxu0 0.0
  %2312 = vmatpush1.msra.mxu0 0.0
  %2313 = vmatprep.subr.mxu0 0.0
  %2314 = vmatpush1.msra.mxu0 0.0
  %2315 = vmatprep.subr.mxu0 0.0
  %2316 = vmatpush1.msra.mxu0 0.0
  %2317 = vmatprep.subr.mxu0 0.0
  %2318 = vmatpush1.msra.mxu0 0.0
  %2319 = vmatprep.subr.mxu0 0.0
  %2320 = vmatpush1.msra.mxu0 0.0
  %2321 = vmatprep.mubr.f32.mxu0 0.0
  %2322 = vmatmul.mubr.f32.gmra.mrb[0].mxu0 %v2255
  %v2323 = vpop.f32.mrb[0].mxu0
  %v2324 = vadd.f32 0.0, %v2323
  %v2325 = vpop.f32.mrb[0].mxu0
  %2326 = vdwg.mxu0
  %v2327 = vadd.f32 %v1635, %v2324
  %v2328 = vxor.u32 %v2327, 2147483648
  %v2329 = vmul.f32 %v2328, 1.442695
  %v2330 = vpow.pop %v2329
  %v2331 = vadd.f32 %v2330, 1.0
  %v2332 = vrcp.pop %v2331
  %v2333 = vmul.f32 1.0, %v2332
  %v2334 = vtanh.pop %v2327
  %v2335 = vmul.f32 %v2333, %v2141
  %2337 = vrot.lane.b32.xlu0 %v2334, 96
  %v2338 = vpop.permute.xlu0 %2337
  %v2340 = vmul.f32 %v2333, %v2338
  %2342 = vrot.lane.b32.xlu0 %v2340, 16
  %v2343 = vpop.permute.xlu0 %2342
  %v2345 = vadd.f32 %v2335, %v2343
  %v2346 = vtanh.pop %v2345
  %2348 = vrot.lane.b32.xlu0 %v2346, 32
  %v2349 = vpop.permute.xlu0 %2348
  %v2351 = vmul.f32 %v2333, %v2349
  %2353 = vrot.lane.b32.xlu0 %v2251, 16
  %v2354 = vpop.permute.xlu0 %2353
  %v2355 = vsel %vm97, %v2354, 0
  %2357 = vmatprep.subr.mxu0 0.0
  %2358 = vmatpush1.msra.mxu0 %v1645
  %2359 = vmatprep.subr.mxu0 0.0
  %2360 = vmatpush1.msra.mxu0 %v1646
  %2361 = vmatprep.subr.mxu0 0.0
  %2362 = vmatpush1.msra.mxu0 0.0
  %2363 = vmatprep.subr.mxu0 0.0
  %2364 = vmatpush1.msra.mxu0 0.0
  %2365 = vmatprep.subr.mxu0 0.0
  %2366 = vmatpush1.msra.mxu0 0.0
  %2367 = vmatprep.subr.mxu0 0.0
  %2368 = vmatpush1.msra.mxu0 0.0
  %2369 = vmatprep.subr.mxu0 0.0
  %2370 = vmatpush1.msra.mxu0 0.0
  %2371 = vmatprep.subr.mxu0 0.0
  %2372 = vmatpush1.msra.mxu0 0.0
  %2373 = vmatprep.subr.mxu0 0.0
  %2374 = vmatpush1.msra.mxu0 0.0
  %2375 = vmatprep.subr.mxu0 0.0
  %2376 = vmatpush1.msra.mxu0 0.0
  %2377 = vmatprep.subr.mxu0 0.0
  %2378 = vmatpush1.msra.mxu0 0.0
  %2379 = vmatprep.subr.mxu0 0.0
  %2380 = vmatpush1.msra.mxu0 0.0
  %2381 = vmatprep.subr.mxu0 0.0
  %2382 = vmatpush1.msra.mxu0 0.0
  %2383 = vmatprep.subr.mxu0 0.0
  %2384 = vmatpush1.msra.mxu0 0.0
  %2385 = vmatprep.subr.mxu0 0.0
  %2386 = vmatpush1.msra.mxu0 0.0
  %2387 = vmatprep.subr.mxu0 0.0
  %2388 = vmatpush1.msra.mxu0 0.0
  %2389 = vmatprep.subr.mxu0 0.0
  %2390 = vmatpush1.msra.mxu0 0.0
  %2391 = vmatprep.subr.mxu0 0.0
  %2392 = vmatpush1.msra.mxu0 0.0
  %2393 = vmatprep.subr.mxu0 0.0
  %2394 = vmatpush1.msra.mxu0 0.0
  %2395 = vmatprep.subr.mxu0 0.0
  %2396 = vmatpush1.msra.mxu0 0.0
  %2397 = vmatprep.subr.mxu0 0.0
  %2398 = vmatpush1.msra.mxu0 0.0
  %2399 = vmatprep.subr.mxu0 0.0
  %2400 = vmatpush1.msra.mxu0 0.0
  %2401 = vmatprep.subr.mxu0 0.0
  %2402 = vmatpush1.msra.mxu0 0.0
  %2403 = vmatprep.subr.mxu0 0.0
  %2404 = vmatpush1.msra.mxu0 0.0
  %2405 = vmatprep.subr.mxu0 0.0
  %2406 = vmatpush1.msra.mxu0 0.0
  %2407 = vmatprep.subr.mxu0 0.0
  %2408 = vmatpush1.msra.mxu0 0.0
  %2409 = vmatprep.subr.mxu0 0.0
  %2410 = vmatpush1.msra.mxu0 0.0
  %2411 = vmatprep.subr.mxu0 0.0
  %2412 = vmatpush1.msra.mxu0 0.0
  %2413 = vmatprep.subr.mxu0 0.0
  %2414 = vmatpush1.msra.mxu0 0.0
  %2415 = vmatprep.subr.mxu0 0.0
  %2416 = vmatpush1.msra.mxu0 0.0
  %2417 = vmatprep.subr.mxu0 0.0
  %2418 = vmatpush1.msra.mxu0 0.0
  %2419 = vmatprep.subr.mxu0 0.0
  %2420 = vmatpush1.msra.mxu0 0.0
  %2421 = vmatprep.mubr.f32.mxu0 0.0
  %2422 = vmatmul.mubr.f32.gmra.mrb[0].mxu0 %v2355
  %v2423 = vpop.f32.mrb[0].mxu0
  %v2424 = vadd.f32 0.0, %v2423
  %v2425 = vpop.f32.mrb[0].mxu0
  %2426 = vdwg.mxu0
  %2428 = vrot.lane.b32.xlu0 %v2424, 64
  %v2429 = vpop.permute.xlu0 %2428
  %v2431 = vadd.f32 %v1625, %v2429
  %v2432 = vxor.u32 %v2431, 2147483648
  %v2433 = vmul.f32 %v2432, 1.442695
  %v2434 = vpow.pop %v2433
  %v2435 = vadd.f32 %v2434, 1.0
  %v2436 = vrcp.pop %v2435
  %v2437 = vmul.f32 1.0, %v2436
  %v2438 = vtanh.pop %v2431
  %v2439 = vmul.f32 %v2437, %v2245
  %2441 = vrot.lane.b32.xlu0 %v2438, 96
  %v2442 = vpop.permute.xlu0 %2441
  %v2444 = vmul.f32 %v2437, %v2442
  %2446 = vrot.lane.b32.xlu0 %v2444, 16
  %v2447 = vpop.permute.xlu0 %2446
  %v2449 = vadd.f32 %v2439, %v2447
  %v2450 = vtanh.pop %v2449
  %2452 = vrot.lane.b32.xlu0 %v2450, 32
  %v2453 = vpop.permute.xlu0 %2452
  %v2455 = vmul.f32 %v2437, %v2453
  %2457 = vrot.lane.b32.xlu0 %v2351, 80
  %v2458 = vpop.permute.xlu0 %2457
  %v2459 = vsel %vm97, %v2458, 0
  %2461 = vmatprep.subr.mxu0 0.0
  %2462 = vmatpush1.msra.mxu0 %v1643
  %2463 = vmatprep.subr.mxu0 0.0
  %2464 = vmatpush1.msra.mxu0 %v1644
  %2465 = vmatprep.subr.mxu0 0.0
  %2466 = vmatpush1.msra.mxu0 0.0
  %2467 = vmatprep.subr.mxu0 0.0
  %2468 = vmatpush1.msra.mxu0 0.0
  %2469 = vmatprep.subr.mxu0 0.0
  %2470 = vmatpush1.msra.mxu0 0.0
  %2471 = vmatprep.subr.mxu0 0.0
  %2472 = vmatpush1.msra.mxu0 0.0
  %2473 = vmatprep.subr.mxu0 0.0
  %2474 = vmatpush1.msra.mxu0 0.0
  %2475 = vmatprep.subr.mxu0 0.0
  %2476 = vmatpush1.msra.mxu0 0.0
  %2477 = vmatprep.subr.mxu0 0.0
  %2478 = vmatpush1.msra.mxu0 0.0
  %2479 = vmatprep.subr.mxu0 0.0
  %2480 = vmatpush1.msra.mxu0 0.0
  %2481 = vmatprep.subr.mxu0 0.0
  %2482 = vmatpush1.msra.mxu0 0.0
  %2483 = vmatprep.subr.mxu0 0.0
  %2484 = vmatpush1.msra.mxu0 0.0
  %2485 = vmatprep.subr.mxu0 0.0
  %2486 = vmatpush1.msra.mxu0 0.0
  %2487 = vmatprep.subr.mxu0 0.0
  %2488 = vmatpush1.msra.mxu0 0.0
  %2489 = vmatprep.subr.mxu0 0.0
  %2490 = vmatpush1.msra.mxu0 0.0
  %2491 = vmatprep.subr.mxu0 0.0
  %2492 = vmatpush1.msra.mxu0 0.0
  %2493 = vmatprep.subr.mxu0 0.0
  %2494 = vmatpush1.msra.mxu0 0.0
  %2495 = vmatprep.subr.mxu0 0.0
  %2496 = vmatpush1.msra.mxu0 0.0
  %2497 = vmatprep.subr.mxu0 0.0
  %2498 = vmatpush1.msra.mxu0 0.0
  %2499 = vmatprep.subr.mxu0 0.0
  %2500 = vmatpush1.msra.mxu0 0.0
  %2501 = vmatprep.subr.mxu0 0.0
  %2502 = vmatpush1.msra.mxu0 0.0
  %2503 = vmatprep.subr.mxu0 0.0
  %2504 = vmatpush1.msra.mxu0 0.0
  %2505 = vmatprep.subr.mxu0 0.0
  %2506 = vmatpush1.msra.mxu0 0.0
  %2507 = vmatprep.subr.mxu0 0.0
  %2508 = vmatpush1.msra.mxu0 0.0
  %2509 = vmatprep.subr.mxu0 0.0
  %2510 = vmatpush1.msra.mxu0 0.0
  %2511 = vmatprep.subr.mxu0 0.0
  %2512 = vmatpush1.msra.mxu0 0.0
  %2513 = vmatprep.subr.mxu0 0.0
  %2514 = vmatpush1.msra.mxu0 0.0
  %2515 = vmatprep.subr.mxu0 0.0
  %2516 = vmatpush1.msra.mxu0 0.0
  %2517 = vmatprep.subr.mxu0 0.0
  %2518 = vmatpush1.msra.mxu0 0.0
  %2519 = vmatprep.subr.mxu0 0.0
  %2520 = vmatpush1.msra.mxu0 0.0
  %2521 = vmatprep.subr.mxu0 0.0
  %2522 = vmatpush1.msra.mxu0 0.0
  %2523 = vmatprep.subr.mxu0 0.0
  %2524 = vmatpush1.msra.mxu0 0.0
  %2525 = vmatprep.mubr.f32.mxu0 0.0
  %2526 = vmatmul.mubr.f32.gmra.mrb[0].mxu0 %v2459
  %v2527 = vpop.f32.mrb[0].mxu0
  %v2528 = vadd.f32 0.0, %v2527
  %v2529 = vpop.f32.mrb[0].mxu0
  %2530 = vdwg.mxu0
  %v2531 = vadd.f32 %v1640, %v2528
  %v2532 = vxor.u32 %v2531, 2147483648
  %v2533 = vmul.f32 %v2532, 1.442695
  %v2534 = vpow.pop %v2533
  %v2535 = vadd.f32 %v2534, 1.0
  %v2536 = vrcp.pop %v2535
  %v2537 = vmul.f32 1.0, %v2536
  %v2538 = vtanh.pop %v2531
  %v2539 = vmul.f32 %v2537, %v2345
  %2541 = vrot.lane.b32.xlu0 %v2538, 96
  %v2542 = vpop.permute.xlu0 %2541
  %v2544 = vmul.f32 %v2537, %v2542
  %2546 = vrot.lane.b32.xlu0 %v2544, 16
  %v2547 = vpop.permute.xlu0 %2546
  %v2549 = vadd.f32 %v2539, %v2547
  %v2550 = vtanh.pop %v2549
  %2552 = vrot.lane.b32.xlu0 %v2550, 32
  %v2553 = vpop.permute.xlu0 %2552
  %v2555 = vmul.f32 %v2537, %v2553
  %2557 = vrot.lane.b32.xlu0 %v2455, 16
  %v2558 = vpop.permute.xlu0 %2557
  %v2559 = vsel %vm97, %v2558, 0
  %2561 = vmatprep.subr.mxu0 0.0
  %2562 = vmatpush1.msra.mxu0 %v1645
  %2563 = vmatprep.subr.mxu0 0.0
  %2564 = vmatpush1.msra.mxu0 %v1646
  %2565 = vmatprep.subr.mxu0 0.0
  %2566 = vmatpush1.msra.mxu0 0.0
  %2567 = vmatprep.subr.mxu0 0.0
  %2568 = vmatpush1.msra.mxu0 0.0
  %2569 = vmatprep.subr.mxu0 0.0
  %2570 = vmatpush1.msra.mxu0 0.0
  %2571 = vmatprep.subr.mxu0 0.0
  %2572 = vmatpush1.msra.mxu0 0.0
  %2573 = vmatprep.subr.mxu0 0.0
  %2574 = vmatpush1.msra.mxu0 0.0
  %2575 = vmatprep.subr.mxu0 0.0
  %2576 = vmatpush1.msra.mxu0 0.0
  %2577 = vmatprep.subr.mxu0 0.0
  %2578 = vmatpush1.msra.mxu0 0.0
  %2579 = vmatprep.subr.mxu0 0.0
  %2580 = vmatpush1.msra.mxu0 0.0
  %2581 = vmatprep.subr.mxu0 0.0
  %2582 = vmatpush1.msra.mxu0 0.0
  %2583 = vmatprep.subr.mxu0 0.0
  %2584 = vmatpush1.msra.mxu0 0.0
  %2585 = vmatprep.subr.mxu0 0.0
  %2586 = vmatpush1.msra.mxu0 0.0
  %2587 = vmatprep.subr.mxu0 0.0
  %2588 = vmatpush1.msra.mxu0 0.0
  %2589 = vmatprep.subr.mxu0 0.0
  %2590 = vmatpush1.msra.mxu0 0.0
  %2591 = vmatprep.subr.mxu0 0.0
  %2592 = vmatpush1.msra.mxu0 0.0
  %2593 = vmatprep.subr.mxu0 0.0
  %2594 = vmatpush1.msra.mxu0 0.0
  %2595 = vmatprep.subr.mxu0 0.0
  %2596 = vmatpush1.msra.mxu0 0.0
  %2597 = vmatprep.subr.mxu0 0.0
  %2598 = vmatpush1.msra.mxu0 0.0
  %2599 = vmatprep.subr.mxu0 0.0
  %2600 = vmatpush1.msra.mxu0 0.0
  %2601 = vmatprep.subr.mxu0 0.0
  %2602 = vmatpush1.msra.mxu0 0.0
  %2603 = vmatprep.subr.mxu0 0.0
  %2604 = vmatpush1.msra.mxu0 0.0
  %2605 = vmatprep.subr.mxu0 0.0
  %2606 = vmatpush1.msra.mxu0 0.0
  %2607 = vmatprep.subr.mxu0 0.0
  %2608 = vmatpush1.msra.mxu0 0.0
  %2609 = vmatprep.subr.mxu0 0.0
  %2610 = vmatpush1.msra.mxu0 0.0
  %2611 = vmatprep.subr.mxu0 0.0
  %2612 = vmatpush1.msra.mxu0 0.0
  %2613 = vmatprep.subr.mxu0 0.0
  %2614 = vmatpush1.msra.mxu0 0.0
  %2615 = vmatprep.subr.mxu0 0.0
  %2616 = vmatpush1.msra.mxu0 0.0
  %2617 = vmatprep.subr.mxu0 0.0
  %2618 = vmatpush1.msra.mxu0 0.0
  %2619 = vmatprep.subr.mxu0 0.0
  %2620 = vmatpush1.msra.mxu0 0.0
  %2621 = vmatprep.subr.mxu0 0.0
  %2622 = vmatpush1.msra.mxu0 0.0
  %2623 = vmatprep.subr.mxu0 0.0
  %2624 = vmatpush1.msra.mxu0 0.0
  %2625 = vmatprep.mubr.f32.mxu0 0.0
  %2626 = vmatmul.mubr.f32.gmra.mrb[0].mxu0 %v2559
  %v2627 = vpop.f32.mrb[0].mxu0
  %v2628 = vadd.f32 0.0, %v2627
  %v2629 = vpop.f32.mrb[0].mxu0
  %2630 = vdwg.mxu0
  %2632 = vrot.lane.b32.xlu0 %v2628, 64
  %v2633 = vpop.permute.xlu0 %2632
  %v2635 = vadd.f32 %v1620, %v2633
  %v2636 = vxor.u32 %v2635, 2147483648
  %v2637 = vmul.f32 %v2636, 1.442695
  %v2638 = vpow.pop %v2637
  %v2639 = vadd.f32 %v2638, 1.0
  %v2640 = vrcp.pop %v2639
  %v2641 = vmul.f32 1.0, %v2640
  %v2642 = vtanh.pop %v2635
  %v2643 = vmul.f32 %v2641, %v2449
  %2645 = vrot.lane.b32.xlu0 %v2642, 96
  %v2646 = vpop.permute.xlu0 %2645
  %v2648 = vmul.f32 %v2641, %v2646
  %2650 = vrot.lane.b32.xlu0 %v2648, 16
  %v2651 = vpop.permute.xlu0 %2650
  %v2653 = vadd.f32 %v2643, %v2651
  %v2654 = vtanh.pop %v2653
  %2656 = vrot.lane.b32.xlu0 %v2654, 32
  %v2657 = vpop.permute.xlu0 %2656
  %v2659 = vmul.f32 %v2641, %v2657
  %v2660 = vld [vmem:[%s7] sm:$0xff]
  %v2661 = vld [vmem:[%s7 + $0x8] sm:$0xff]
  %v2662 = vld [vmem:[%s8] sm:$0xff]
  %v2663 = vld [vmem:[%s8 + $0x8] sm:$0xff]
  %2665 = vrot.lane.b32.xlu0 %v2659, 16
  %v2666 = vpop.permute.xlu0 %2665
  %v2667 = vsel %vm97, %v2666, 0
  %2669 = vmatprep.subr.mxu0 0.0
  %2670 = vmatpush1.msra.mxu0 %v2662
  %2671 = vmatprep.subr.mxu0 0.0
  %2672 = vmatpush1.msra.mxu0 %v2663
  %2673 = vmatprep.subr.mxu0 0.0
  %2674 = vmatpush1.msra.mxu0 0.0
  %2675 = vmatprep.subr.mxu0 0.0
  %2676 = vmatpush1.msra.mxu0 0.0
  %2677 = vmatprep.subr.mxu0 0.0
  %2678 = vmatpush1.msra.mxu0 0.0
  %2679 = vmatprep.subr.mxu0 0.0
  %2680 = vmatpush1.msra.mxu0 0.0
  %2681 = vmatprep.subr.mxu0 0.0
  %2682 = vmatpush1.msra.mxu0 0.0
  %2683 = vmatprep.subr.mxu0 0.0
  %2684 = vmatpush1.msra.mxu0 0.0
  %2685 = vmatprep.subr.mxu0 0.0
  %2686 = vmatpush1.msra.mxu0 0.0
  %2687 = vmatprep.subr.mxu0 0.0
  %2688 = vmatpush1.msra.mxu0 0.0
  %2689 = vmatprep.subr.mxu0 0.0
  %2690 = vmatpush1.msra.mxu0 0.0
  %2691 = vmatprep.subr.mxu0 0.0
  %2692 = vmatpush1.msra.mxu0 0.0
  %2693 = vmatprep.subr.mxu0 0.0
  %2694 = vmatpush1.msra.mxu0 0.0
  %2695 = vmatprep.subr.mxu0 0.0
  %2696 = vmatpush1.msra.mxu0 0.0
  %2697 = vmatprep.subr.mxu0 0.0
  %2698 = vmatpush1.msra.mxu0 0.0
  %2699 = vmatprep.subr.mxu0 0.0
  %2700 = vmatpush1.msra.mxu0 0.0
  %2701 = vmatprep.subr.mxu0 0.0
  %2702 = vmatpush1.msra.mxu0 0.0
  %2703 = vmatprep.subr.mxu0 0.0
  %2704 = vmatpush1.msra.mxu0 0.0
  %2705 = vmatprep.subr.mxu0 0.0
  %2706 = vmatpush1.msra.mxu0 0.0
  %2707 = vmatprep.subr.mxu0 0.0
  %2708 = vmatpush1.msra.mxu0 0.0
  %2709 = vmatprep.subr.mxu0 0.0
  %2710 = vmatpush1.msra.mxu0 0.0
  %2711 = vmatprep.subr.mxu0 0.0
  %2712 = vmatpush1.msra.mxu0 0.0
  %2713 = vmatprep.subr.mxu0 0.0
  %2714 = vmatpush1.msra.mxu0 0.0
  %2715 = vmatprep.subr.mxu0 0.0
  %2716 = vmatpush1.msra.mxu0 0.0
  %2717 = vmatprep.subr.mxu0 0.0
  %2718 = vmatpush1.msra.mxu0 0.0
  %2719 = vmatprep.subr.mxu0 0.0
  %2720 = vmatpush1.msra.mxu0 0.0
  %2721 = vmatprep.subr.mxu0 0.0
  %2722 = vmatpush1.msra.mxu0 0.0
  %2723 = vmatprep.subr.mxu0 0.0
  %2724 = vmatpush1.msra.mxu0 0.0
  %2725 = vmatprep.subr.mxu0 0.0
  %2726 = vmatpush1.msra.mxu0 0.0
  %2727 = vmatprep.subr.mxu0 0.0
  %2728 = vmatpush1.msra.mxu0 0.0
  %2729 = vmatprep.subr.mxu0 0.0
  %2730 = vmatpush1.msra.mxu0 0.0
  %2731 = vmatprep.subr.mxu0 0.0
  %2732 = vmatpush1.msra.mxu0 0.0
  %2733 = vmatprep.mubr.f32.mxu0 0.0
  %2734 = vmatmul.mubr.f32.gmra.mrb[0].mxu0 %v2667
  %v2735 = vpop.f32.mrb[0].mxu0
  %v2736 = vadd.f32 0.0, %v2735
  %v2737 = vpop.f32.mrb[0].mxu0
  %2738 = vmatprep.mubr.f32.mxu0 0.0
  %2739 = vmatmul.mubr.f32.gmra.mrb[0].mxu0 %v2559
  %v2740 = vpop.f32.mrb[0].mxu0
  %v2741 = vadd.f32 0.0, %v2740
  %v2742 = vpop.f32.mrb[0].mxu0
  %2743 = vmatprep.mubr.f32.mxu0 0.0
  %2744 = vmatmul.mubr.f32.gmra.mrb[0].mxu0 %v2355
  %v2745 = vpop.f32.mrb[0].mxu0
  %v2746 = vadd.f32 0.0, %v2745
  %v2747 = vpop.f32.mrb[0].mxu0
  %2748 = vmatprep.mubr.f32.mxu0 0.0
  %2749 = vmatmul.mubr.f32.gmra.mrb[0].mxu0 %v2151
  %v2750 = vpop.f32.mrb[0].mxu0
  %v2751 = vadd.f32 0.0, %v2750
  %v2752 = vpop.f32.mrb[0].mxu0
  %2753 = vmatprep.mubr.f32.mxu0 0.0
  %2754 = vmatmul.mubr.f32.gmra.mrb[0].mxu0 %v1947
  %v2755 = vpop.f32.mrb[0].mxu0
  %v2756 = vadd.f32 0.0, %v2755
  %v2757 = vpop.f32.mrb[0].mxu0
  %2758 = vdwg.mxu0
  %2760 = vrot.lane.b32.xlu0 %v2555, 80
  %v2761 = vpop.permute.xlu0 %2760
  %v2762 = vsel %vm97, %v2761, 0
  %2764 = vmatprep.subr.mxu0 0.0
  %2765 = vmatpush1.msra.mxu0 %v2660
  %2766 = vmatprep.subr.mxu0 0.0
  %2767 = vmatpush1.msra.mxu0 %v2661
  %2768 = vmatprep.subr.mxu0 0.0
  %2769 = vmatpush1.msra.mxu0 0.0
  %2770 = vmatprep.subr.mxu0 0.0
  %2771 = vmatpush1.msra.mxu0 0.0
  %2772 = vmatprep.subr.mxu0 0.0
  %2773 = vmatpush1.msra.mxu0 0.0
  %2774 = vmatprep.subr.mxu0 0.0
  %2775 = vmatpush1.msra.mxu0 0.0
  %2776 = vmatprep.subr.mxu0 0.0
  %2777 = vmatpush1.msra.mxu0 0.0
  %2778 = vmatprep.subr.mxu0 0.0
  %2779 = vmatpush1.msra.mxu0 0.0
  %2780 = vmatprep.subr.mxu0 0.0
  %2781 = vmatpush1.msra.mxu0 0.0
  %2782 = vmatprep.subr.mxu0 0.0
  %2783 = vmatpush1.msra.mxu0 0.0
  %2784 = vmatprep.subr.mxu0 0.0
  %2785 = vmatpush1.msra.mxu0 0.0
  %2786 = vmatprep.subr.mxu0 0.0
  %2787 = vmatpush1.msra.mxu0 0.0
  %2788 = vmatprep.subr.mxu0 0.0
  %2789 = vmatpush1.msra.mxu0 0.0
  %2790 = vmatprep.subr.mxu0 0.0
  %2791 = vmatpush1.msra.mxu0 0.0
  %2792 = vmatprep.subr.mxu0 0.0
  %2793 = vmatpush1.msra.mxu0 0.0
  %2794 = vmatprep.subr.mxu0 0.0
  %2795 = vmatpush1.msra.mxu0 0.0
  %2796 = vmatprep.subr.mxu0 0.0
  %2797 = vmatpush1.msra.mxu0 0.0
  %2798 = vmatprep.subr.mxu0 0.0
  %2799 = vmatpush1.msra.mxu0 0.0
  %2800 = vmatprep.subr.mxu0 0.0
  %2801 = vmatpush1.msra.mxu0 0.0
  %2802 = vmatprep.subr.mxu0 0.0
  %2803 = vmatpush1.msra.mxu0 0.0
  %2804 = vmatprep.subr.mxu0 0.0
  %2805 = vmatpush1.msra.mxu0 0.0
  %2806 = vmatprep.subr.mxu0 0.0
  %2807 = vmatpush1.msra.mxu0 0.0
  %2808 = vmatprep.subr.mxu0 0.0
  %2809 = vmatpush1.msra.mxu0 0.0
  %2810 = vmatprep.subr.mxu0 0.0
  %2811 = vmatpush1.msra.mxu0 0.0
  %2812 = vmatprep.subr.mxu0 0.0
  %2813 = vmatpush1.msra.mxu0 0.0
  %2814 = vmatprep.subr.mxu0 0.0
  %2815 = vmatpush1.msra.mxu0 0.0
  %2816 = vmatprep.subr.mxu0 0.0
  %2817 = vmatpush1.msra.mxu0 0.0
  %2818 = vmatprep.subr.mxu0 0.0
  %2819 = vmatpush1.msra.mxu0 0.0
  %2820 = vmatprep.subr.mxu0 0.0
  %2821 = vmatpush1.msra.mxu0 0.0
  %2822 = vmatprep.subr.mxu0 0.0
  %2823 = vmatpush1.msra.mxu0 0.0
  %2824 = vmatprep.subr.mxu0 0.0
  %2825 = vmatpush1.msra.mxu0 0.0
  %2826 = vmatprep.subr.mxu0 0.0
  %2827 = vmatpush1.msra.mxu0 0.0
  %2828 = vmatprep.mubr.f32.mxu0 0.0
  %2829 = vmatmul.mubr.f32.gmra.mrb[0].mxu0 %v1847
  %v2830 = vpop.f32.mrb[0].mxu0
  %v2831 = vadd.f32 %v2736, %v2830
  %v2832 = vpop.f32.mrb[0].mxu0
  %2833 = vmatprep.mubr.f32.mxu0 0.0
  %2834 = vmatmul.mubr.f32.gmra.mrb[0].mxu0 %v2051
  %v2835 = vpop.f32.mrb[0].mxu0
  %v2836 = vadd.f32 %v2741, %v2835
  %v2837 = vpop.f32.mrb[0].mxu0
  %2838 = vmatprep.mubr.f32.mxu0 0.0
  %2839 = vmatmul.mubr.f32.gmra.mrb[0].mxu0 %v2255
  %v2840 = vpop.f32.mrb[0].mxu0
  %v2841 = vadd.f32 %v2746, %v2840
  %v2842 = vpop.f32.mrb[0].mxu0
  %2843 = vmatprep.mubr.f32.mxu0 0.0
  %2844 = vmatmul.mubr.f32.gmra.mrb[0].mxu0 %v2459
  %v2845 = vpop.f32.mrb[0].mxu0
  %v2846 = vadd.f32 %v2751, %v2845
  %v2847 = vpop.f32.mrb[0].mxu0
  %2848 = vmatprep.mubr.f32.mxu0 0.0
  %2849 = vmatmul.mubr.f32.gmra.mrb[0].mxu0 %v2762
  %v2850 = vpop.f32.mrb[0].mxu0
  %v2851 = vadd.f32 %v2756, %v2850
  %v2852 = vpop.f32.mrb[0].mxu0
  %2853 = vdwg.mxu0
  %v2854 = vld [vmem:[%s9] sm:$0x1]
  %v2856 = vlaneseq
  %v2857 = vshrl.u32 %v2856, 7
  %v2858 = vsub.s32 0, %v2857
  %v2859 = vrot.slane %v2854, %v2858
  %v2861 = vadd.f32 %v2831, %v2859
  %v2862 = vadd.f32 %v2836, %v2859
  %v2863 = vadd.f32 %v2841, %v2859
  %v2864 = vadd.f32 %v2846, %v2859
  %v2865 = vadd.f32 %v2851, %v2859
  %vm2866 = vcmask 31744
  %2867 = vst.msk [vmem:[%s10] sm:$0xff] %vm2866, %v2861
  %2868 = vst.msk [vmem:[%s10 + $0x8] sm:$0xff] %vm2866, %v2862
  %2869 = vst.msk [vmem:[%s10 + $0x10] sm:$0xff] %vm2866, %v2863
  %2870 = vst.msk [vmem:[%s10 + $0x18] sm:$0xff] %vm2866, %v2864
  %2871 = vst.msk [vmem:[%s10 + $0x20] sm:$0xff] %vm2866, %v2865
  // Predicated region
  $region42: #{tpu_custom_call.1} parent=0 // pred_check
    _
  $region43: #{tpu_custom_call.1} parent=0 // pred_check_branch
    %2873 = sbr.rel (0) target = $region45
  $region44: #{tpu_custom_call.1} parent=0 // pred_region
    _
  $region45: #{tpu_custom_call.1} parent=0 // pred_fallthru
    _
  // Predicated region
  $region46: #{tpu_custom_call.1} parent=0 // pred_check
    _
  $region47: #{tpu_custom_call.1} parent=0 // pred_check_branch
    %2875 = sbr.rel (0) target = $region49
  $region48: #{tpu_custom_call.1} parent=0 // pred_region
    _
  $region49: #{tpu_custom_call.1} parent=0 // pred_fallthru
    _

</llo_original>
